<compile_context>
chip_gen: v5e
topology: v5e:2x2
jax: 0.10.0
libtpu: 0.0.40
codegen_flags: <defaults>
</compile_context>

<pallas_src>
import functools

import jax
import jax.numpy as jnp
from jax.experimental import pallas as pl
from jax.experimental.pallas import tpu as pltpu

# bf16 MXU operands (native MXU dtype on v5e/v6e/v7x). Set to jnp.float32 for
# exact PyTorch f32 parity; accumulation / bias / ReLU / BN math stay f32 either way.
MXU_DTYPE = jnp.bfloat16
VMEM_LIMIT_BYTES = 64 * 1024 * 1024


def _round_up(x, m):
    return ((x + m - 1) // m) * m


def _compiler_params():
    return pltpu.CompilerParams(dimension_semantics=("parallel",),
                                vmem_limit_bytes=VMEM_LIMIT_BYTES)


# ----------------------------- Pallas kernels ------------------------------

def _deconv_kernel(x_ref, w_ref, b_ref, o_ref):
    """(R, K) @ (K, TM) + b  -- ConvTranspose2d(2,2,s=2) as per-pixel channel matmul."""
    acc = jnp.dot(w_ref[...], x_ref[...], preferred_element_type=jnp.float32)
    o_ref[...] = (acc + b_ref[...]).astype(o_ref.dtype)


def _mm_bias_relu_stats(xs_ref, w_ref, b_ref, y_ref, st_ref, *, W, Wp):
    """One tap-stacked matmul + bias + ReLU + masked BN batch statistics."""
    acc = jnp.dot(w_ref[...], xs_ref[...], preferred_element_type=jnp.float32)
    acc = jnp.maximum(acc + b_ref[...], 0.0)           # ReLU, f32
    y_ref[0] = acc.astype(y_ref.dtype)
    lout = acc.shape[1]
    col = jax.lax.broadcasted_iota(jnp.int32, (1, lout), 1) % Wp
    av = jnp.where(col < W, acc, 0.0)                  # mask width-padding garbage cols
    st_ref[0, :, 0:1] = jnp.sum(av, axis=1, keepdims=True)
    st_ref[0, :, 1:2] = jnp.sum(av * av, axis=1, keepdims=True)


def _conv1_kernel(up_ref, sk_ref, w_ref, b_ref, y_ref, st_ref, xs_ref, *, H, W, Wp):
    """conv1: concat folded into one tap-stacked K; conv + bias + ReLU + BN stats."""
    lout = H * Wp
    ci_u = up_ref.shape[1]
    ci_s = sk_ref.shape[1]
    ci = ci_u + ci_s
    # Build the (9*ci, lout) tap-stacked operand in VMEM (both sources share K).
    # TODO(synk): lane-align the row stride (Wp -> round_up(Wp,128)) or pre-roll
    # the padded image so these shifted copies are unrotated.
    for dy in range(3):
        for dx in range(3):
            off = dy * Wp + dx
            base = (dy * 3 + dx) * ci
            xs_ref[base:base + ci_u, :] = up_ref[0, :, off:off + lout].astype(xs_ref.dtype)
            xs_ref[base + ci_u:base + ci, :] = sk_ref[0, :, off:off + lout].astype(xs_ref.dtype)
    _mm_bias_relu_stats(xs_ref, w_ref, b_ref, y_ref, st_ref, W=W, Wp=Wp)


def _conv2_kernel(y1_ref, sc_ref, sh_ref, w_ref, b_ref, y_ref, st_ref,
                  xpad_ref, xs_ref, *, H, W, Wp):
    """conv2 with BN1-apply + re-zero-pad fused in (x2 never written to HBM)."""
    lout = H * Wp
    ci = y1_ref.shape[1]
    lbuf = xpad_ref.shape[1]
    # BN1 affine, mask the width-padding garbage columns, scatter into the
    # zero-padded layout held in a VMEM scratch (head/tail zeros only).
    a = y1_ref[0].astype(jnp.float32) * sc_ref[...] + sh_ref[...]
    col = jax.lax.broadcasted_iota(jnp.int32, (1, lout), 1) % Wp
    a = jnp.where(col < W, a, 0.0)
    xpad_ref[:, 0:Wp + 1] = jnp.zeros((ci, Wp + 1), xpad_ref.dtype)
    xpad_ref[:, Wp + 1:Wp + 1 + lout] = a.astype(xpad_ref.dtype)
    xpad_ref[:, Wp + 1 + lout:lbuf] = jnp.zeros((ci, lbuf - (Wp + 1 + lout)), xpad_ref.dtype)
    # Tap-stacked single matmul.
    for dy in range(3):
        for dx in range(3):
            off = dy * Wp + dx
            base = (dy * 3 + dx) * ci
            xs_ref[base:base + ci, :] = xpad_ref[:, off:off + lout]
    _mm_bias_relu_stats(xs_ref, w_ref, b_ref, y_ref, st_ref, W=W, Wp=Wp)


def _bn_affine_kernel(y_ref, sc_ref, sh_ref, o_ref):
    """Final BN2 per-channel affine, lane-dense over (C, H*Wp)."""
    o_ref[0] = (y_ref[0].astype(jnp.float32) * sc_ref[...] + sh_ref[...]).astype(o_ref.dtype)


# ------------------------------- wrappers -----------------------------------

def _pick_tile(M, cap=2048):
    best = 128
    t = 128
    while t <= cap and t <= M:
        if M % t == 0:
            best = t
        t *= 2
    return best


def _deconv_matmul(x2d, wd, b4):
    """out (R, M) = wd (R, K) @ x2d (K, M) + b, lane-dense over M = N*H0*W0."""
    K, M = x2d.shape
    R = wd.shape[0]
    Mp = _round_up(M, 128)
    if Mp != M:
        x2d = jnp.pad(x2d, ((0, 0), (0, Mp - M)))
    TM = _pick_tile(Mp)
    y = pl.pallas_call(
        _deconv_kernel,
        out_shape=jax.ShapeDtypeStruct((R, Mp), MXU_DTYPE),
        grid=(Mp // TM,),
        in_specs=[pl.BlockSpec((K, TM), lambda j: (0, j)),
                  pl.BlockSpec((R, K), lambda j: (0, 0)),
                  pl.BlockSpec((R, 1), lambda j: (0, 0))],
        out_specs=pl.BlockSpec((R, TM), lambda j: (0, j)),
        compiler_params=_compiler_params(),
    )(x2d, wd, b4.reshape(R, 1))
    return y[:, :M] if Mp != M else y


def _conv1(up_pad, sk_pad, w_stk, bias, *, H, W):
    N, Cu, Lbuf = up_pad.shape
    Cs = sk_pad.shape[1]
    Co, K = w_stk.shape
    Wp = W + 2
    lout = H * Wp
    kernel = functools.partial(_conv1_kernel, H=H, W=W, Wp=Wp)
    # TODO(synk): add a row-block spatial grid axis (2-row halo) for v7x-sized images.
    return pl.pallas_call(
        kernel,
        out_shape=[jax.ShapeDtypeStruct((N, Co, lout), MXU_DTYPE),
                   jax.ShapeDtypeStruct((N, Co, 2), jnp.float32)],
        grid=(N,),
        in_specs=[pl.BlockSpec((1, Cu, Lbuf), lambda n: (n, 0, 0)),
                  pl.BlockSpec((1, Cs, Lbuf), lambda n: (n, 0, 0)),
                  pl.BlockSpec((Co, K), lambda n: (0, 0)),
                  pl.BlockSpec((Co, 1), lambda n: (0, 0))],
        out_specs=[pl.BlockSpec((1, Co, lout), lambda n: (n, 0, 0)),
                   pl.BlockSpec((1, Co, 2), lambda n: (n, 0, 0))],
        scratch_shapes=[pltpu.VMEM((K, lout), MXU_DTYPE)],
        compiler_params=_compiler_params(),
    )(up_pad, sk_pad, w_stk, bias.reshape(Co, 1).astype(jnp.float32))


def _conv2(y1, sc1, sh1, w_stk, bias, *, H, W):
    N, C1, lout = y1.shape
    Co, K = w_stk.shape
    Wp = W + 2
    Lbuf = _round_up((H + 2) * Wp + 2, 128)
    kernel = functools.partial(_conv2_kernel, H=H, W=W, Wp=Wp)
    return pl.pallas_call(
        kernel,
        out_shape=[jax.ShapeDtypeStruct((N, Co, lout), MXU_DTYPE),
                   jax.ShapeDtypeStruct((N, Co, 2), jnp.float32)],
        grid=(N,),
        in_specs=[pl.BlockSpec((1, C1, lout), lambda n: (n, 0, 0)),
                  pl.BlockSpec((C1, 1), lambda n: (0, 0)),
                  pl.BlockSpec((C1, 1), lambda n: (0, 0)),
                  pl.BlockSpec((Co, K), lambda n: (0, 0)),
                  pl.BlockSpec((Co, 1), lambda n: (0, 0))],
        out_specs=[pl.BlockSpec((1, Co, lout), lambda n: (n, 0, 0)),
                   pl.BlockSpec((1, Co, 2), lambda n: (n, 0, 0))],
        scratch_shapes=[pltpu.VMEM((C1, Lbuf), MXU_DTYPE),
                        pltpu.VMEM((K, lout), MXU_DTYPE)],
        compiler_params=_compiler_params(),
    )(y1, sc1.reshape(C1, 1).astype(jnp.float32),
      sh1.reshape(C1, 1).astype(jnp.float32),
      w_stk, bias.reshape(Co, 1).astype(jnp.float32))


def _bn_apply(y, scale, shift):
    N, C, L = y.shape
    # TODO(synk): fuse the final W-unpad into this kernel (write (N,C,H,W) directly).
    return pl.pallas_call(
        _bn_affine_kernel,
        out_shape=jax.ShapeDtypeStruct((N, C, L), jnp.float32),
        grid=(N,),
        in_specs=[pl.BlockSpec((1, C, L), lambda n: (n, 0, 0)),
                  pl.BlockSpec((C, 1), lambda n: (0, 0)),
                  pl.BlockSpec((C, 1), lambda n: (0, 0))],
        out_specs=pl.BlockSpec((1, C, L), lambda n: (n, 0, 0)),
        compiler_params=_compiler_params(),
    )(y, scale.reshape(C, 1).astype(jnp.float32),
      shift.reshape(C, 1).astype(jnp.float32))


def _bn_scale_shift(stats, gamma, beta, count, eps=1e-5):
    """Training-mode BatchNorm: biased batch variance -> per-channel affine."""
    s = jnp.sum(stats[:, :, 0], axis=0)
    ss = jnp.sum(stats[:, :, 1], axis=0)
    mean = s / count
    var = jnp.maximum(ss / count - mean * mean, 0.0)
    scale = gamma / jnp.sqrt(var + eps)
    shift = beta - mean * scale
    return scale, shift


# ------------------------------ forward pass -------------------------------

def _stack_conv_weight(w):
    """Conv2d weight (Co, Ci, 3, 3) -> (Co, 9*Ci), K index = (kh*3+kw)*Ci + ci."""
    co, ci = w.shape[0], w.shape[1]
    return jnp.transpose(w, (0, 2, 3, 1)).reshape(co, 9 * ci).astype(MXU_DTYPE)


def conv_up_block(x_nchw, skip_nchw, params, eps=1e-5):
    N, Cin, H0, W0 = x_nchw.shape
    Co_up = Cin // 2
    H, W = 2 * H0, 2 * W0
    Hp, Wp = H + 2, W + 2
    Lbuf = _round_up(Hp * Wp + 2, 128)       # covers max tap offset (dy=2,dx=2)

    # --- ConvTranspose2d(Cin, Cin//2, 2, stride=2) as one channels-first matmul ---
    x2d = jnp.transpose(x_nchw, (1, 0, 2, 3)).reshape(Cin, N * H0 * W0).astype(MXU_DTYPE)
    wd = jnp.transpose(params["up_w"], (2, 3, 1, 0)).reshape(4 * Co_up, Cin).astype(MXU_DTYPE)
    b4 = jnp.tile(params["up_b"], 4).astype(jnp.float32)
    y4 = _deconv_matmul(x2d, wd, b4)                       # (4*Co_up, N*H0*W0)
    # TODO(synk): scatter the four (kh,kw) planes straight into the zero-padded
    # (N, Co_up, Lbuf) layout inside the deconv kernel to drop this XLA glue.
    up = (y4.reshape(2, 2, Co_up, N, H0, W0)
            .transpose(3, 2, 4, 0, 5, 1)
            .reshape(N, Co_up, H, W))

    # --- reflect pad skip on right/bottom to match (F.pad(..., mode='reflect')) ---
    skip = skip_nchw
    h_diff = H - skip.shape[2]
    w_diff = W - skip.shape[3]
    if h_diff > 0 or w_diff > 0:
        skip = jnp.pad(skip, ((0, 0), (0, 0), (0, h_diff), (0, w_diff)), mode="reflect")
    skip = skip.astype(MXU_DTYPE)
    Cs = skip.shape[1]

    def zero_pad_flat(t):
        c = t.shape[1]
        tp = jnp.pad(t, ((0, 0), (0, 0), (1, 1), (1, 1))).reshape(t.shape[0], c, Hp * Wp)
        return jnp.pad(tp, ((0, 0), (0, 0), (0, Lbuf - Hp * Wp)))

    up_pad = zero_pad_flat(up)                             # (N, Co_up, Lbuf) bf16
    sk_pad = zero_pad_flat(skip)                           # (N, Cs,    Lbuf) bf16

    # --- conv1: concat folded into one K=9*(Co_up+Cs) tap-stacked matmul ---
    w1 = _stack_conv_weight(params["c1_w"])
    y1, st1 = _conv1(up_pad, sk_pad, w1, params["c1_b"], H=H, W=W)
    sc1, sh1 = _bn_scale_shift(st1, params["bn1_g"], params["bn1_b"], N * H * W, eps)

    # --- conv2 with fused BN1-apply + re-zero-pad (x2 never hits HBM) ---
    w2 = _stack_conv_weight(params["c2_w"])
    y2, st2 = _conv2(y1, sc1, sh1, w2, params["c2_b"], H=H, W=W)
    sc2, sh2 = _bn_scale_shift(st2, params["bn2_g"], params["bn2_b"], N * H * W, eps)

    out = _bn_apply(y2, sc2, sh2)                          # (N, Co, H*Wp) f32
    Co2 = params["c2_w"].shape[0]
    return out.reshape(N, Co2, H, Wp)[:, :, :, :W]         # drop width-padding cols


# ---------------------------------- main ------------------------------------

if __name__ == "__main__":
    in_channel, out_channel = 16, 8
    N, H0, W0 = 2, 16, 16                  # x: (N, Cin, H0, W0); skip is 2x spatial

    key = jax.random.PRNGKey(0)
    ks = jax.random.split(key, 8)
    x = jax.random.normal(ks[0], (N, in_channel, H0, W0), jnp.float32)
    x_skip = jax.random.normal(ks[1], (N, out_channel, 2 * H0, 2 * W0), jnp.float32)

    params = dict(
        # ConvTranspose2d weight: (in_channels, out_channels, kH, kW)
        up_w=0.1 * jax.random.normal(ks[2], (in_channel, in_channel // 2, 2, 2), jnp.float32),
        up_b=0.1 * jax.random.normal(ks[3], (in_channel // 2,), jnp.float32),
        # Conv2d weight: (out_channels, in_channels, 3, 3)
        c1_w=0.1 * jax.random.normal(ks[4], (out_channel, in_channel // 2 + out_channel, 3, 3), jnp.float32),
        c1_b=0.1 * jax.random.normal(ks[5], (out_channel,), jnp.float32),
        c2_w=0.1 * jax.random.normal(ks[6], (out_channel, out_channel, 3, 3), jnp.float32),
        c2_b=0.1 * jax.random.normal(ks[7], (out_channel,), jnp.float32),
        # BatchNorm2d params at PyTorch defaults (weight=1, bias=0)
        bn1_g=jnp.ones((out_channel,), jnp.float32),
        bn1_b=jnp.zeros((out_channel,), jnp.float32),
        bn2_g=jnp.ones((out_channel,), jnp.float32),
        bn2_b=jnp.zeros((out_channel,), jnp.float32),
    )

    out = jax.jit(conv_up_block)(x, x_skip, params)
    out = jax.block_until_ready(out)
    assert out.shape == (N, out_channel, 2 * H0, 2 * W0), out.shape
    assert jnp.isfinite(out).all()
    print("KERNEL_OK")
</pallas_src>

<mosaic_0001>
module attributes {stable_mosaic.version = 11 : i64} {
  func.func @_deconv_kernel(%arg0: i32, %arg1: memref<16x512xbf16, #tpu.memory_space<vmem>>, %arg2: memref<32x16xbf16, #tpu.memory_space<vmem>>, %arg3: memref<32x1xf32, #tpu.memory_space<vmem>>, %arg4: memref<32x512xbf16, #tpu.memory_space<vmem>>) attributes {dimension_semantics = [#tpu.dimension_semantics<parallel>], iteration_bounds = array<i64: 1>, scalar_prefetch = 0 : i64, scratch_operands = 0 : i64, tpu.core_type = #tpu.core_type<tc>, window_params = [{transform_indices = @transform_0, window_bounds = array<i64: 16, 512>}, {pipeline_mode = #tpu.pipeline_mode<synchronous>, transform_indices = @transform_1, window_bounds = array<i64: 32, 16>}, {pipeline_mode = #tpu.pipeline_mode<synchronous>, transform_indices = @transform_2, window_bounds = array<i64: 32, 1>}, {transform_indices = @transform_3, window_bounds = array<i64: 32, 512>}]} {
    %c0 = arith.constant 0 : index
    %c0_0 = arith.constant 0 : index
    %0 = vector.load %arg2[%c0, %c0_0] : memref<32x16xbf16, #tpu.memory_space<vmem>>, vector<32x16xbf16>
    %c0_1 = arith.constant 0 : index
    %c0_2 = arith.constant 0 : index
    %1 = vector.load %arg1[%c0_1, %c0_2] : memref<16x512xbf16, #tpu.memory_space<vmem>>, vector<16x512xbf16>
    %cst = arith.constant dense<0.000000e+00> : vector<32x512xf32>
    %2 = tpu.matmul %0, %1, %cst {dimension_numbers = #tpu.dot_dimension_numbers<[1], [0], [0], [1], [0, 0, 1, 1], [], []>} : vector<32x16xbf16>, vector<16x512xbf16>, vector<32x512xf32> -> vector<32x512xf32>
    %c0_3 = arith.constant 0 : index
    %c0_4 = arith.constant 0 : index
    %3 = vector.load %arg3[%c0_3, %c0_4] : memref<32x1xf32, #tpu.memory_space<vmem>>, vector<32x1xf32>
    %4 = vector.broadcast %3 : vector<32x1xf32> to vector<32x512xf32>
    %5 = arith.addf %2, %4 : vector<32x512xf32>
    %6 = arith.truncf %5 : vector<32x512xf32> to vector<32x512xbf16>
    %c0_5 = arith.constant 0 : index
    %c0_6 = arith.constant 0 : index
    %7 = vector.load %arg4[%c0_5, %c0_6] : memref<32x512xbf16, #tpu.memory_space<vmem>>, vector<32x512xbf16>
    tpu.vector_store %arg4[%c0_5, %c0_6], %6 {strides = array<i32>} : memref<32x512xbf16, #tpu.memory_space<vmem>>, vector<32x512xbf16>,
    return
  }
  func.func @transform_0(%arg0: i32) -> (i32, i32) {
    %c0_i32 = arith.constant 0 : i32
    %c0_i32_0 = arith.constant 0 : i32
    return %c0_i32, %arg0 : i32, i32
  }
  func.func @transform_1(%arg0: i32) -> (i32, i32) {
    %c0_i32 = arith.constant 0 : i32
    %c0_i32_0 = arith.constant 0 : i32
    %c0_i32_1 = arith.constant 0 : i32
    return %c0_i32, %c0_i32_0 : i32, i32
  }
  func.func @transform_2(%arg0: i32) -> (i32, i32) {
    %c0_i32 = arith.constant 0 : i32
    %c0_i32_0 = arith.constant 0 : i32
    %c0_i32_1 = arith.constant 0 : i32
    return %c0_i32, %c0_i32_0 : i32, i32
  }
  func.func @transform_3(%arg0: i32) -> (i32, i32) {
    %c0_i32 = arith.constant 0 : i32
    %c0_i32_0 = arith.constant 0 : i32
    return %c0_i32, %arg0 : i32, i32
  }
}

module attributes {stable_mosaic.version = 11 : i64} {
  func.func @_conv1_kernel(%arg0: i32, %arg1: memref<1x8x1280xbf16, #tpu.memory_space<vmem>>, %arg2: memref<1x8x1280xbf16, #tpu.memory_space<vmem>>, %arg3: memref<8x144xbf16, #tpu.memory_space<vmem>>, %arg4: memref<8x1xf32, #tpu.memory_space<vmem>>, %arg5: memref<1x8x1088xbf16, #tpu.memory_space<vmem>>, %arg6: memref<1x8x2xf32, #tpu.memory_space<vmem>>, %arg7: memref<144x1088xbf16, #tpu.memory_space<vmem>>) attributes {dimension_semantics = [#tpu.dimension_semantics<parallel>], iteration_bounds = array<i64: 2>, scalar_prefetch = 0 : i64, scratch_operands = 1 : i64, tpu.core_type = #tpu.core_type<tc>, window_params = [{transform_indices = @transform_0, window_bounds = array<i64: 1, 8, 1280>}, {transform_indices = @transform_1, window_bounds = array<i64: 1, 8, 1280>}, {pipeline_mode = #tpu.pipeline_mode<synchronous>, transform_indices = @transform_2, window_bounds = array<i64: 8, 144>}, {pipeline_mode = #tpu.pipeline_mode<synchronous>, transform_indices = @transform_3, window_bounds = array<i64: 8, 1>}, {transform_indices = @transform_4, window_bounds = array<i64: 1, 8, 1088>}, {transform_indices = @transform_5, window_bounds = array<i64: 1, 8, 2>}]} {
    %c0 = arith.constant 0 : index
    %c0_0 = arith.constant 0 : index
    %c0_1 = arith.constant 0 : index
    %0 = vector.load %arg1[%c0, %c0_0, %c0_1] : memref<1x8x1280xbf16, #tpu.memory_space<vmem>>, vector<1x8x1088xbf16>
    %1 = vector.shape_cast %0 : vector<1x8x1088xbf16> to vector<8x1088xbf16>
    %c0_2 = arith.constant 0 : index
    %c0_3 = arith.constant 0 : index
    %2 = vector.load %arg7[%c0_2, %c0_3] : memref<144x1088xbf16, #tpu.memory_space<vmem>>, vector<8x1088xbf16>
    tpu.vector_store %arg7[%c0_2, %c0_3], %1 {strides = array<i32>} : memref<144x1088xbf16, #tpu.memory_space<vmem>>, vector<8x1088xbf16>,
    %c0_4 = arith.constant 0 : index
    %c0_5 = arith.constant 0 : index
    %c0_6 = arith.constant 0 : index
    %3 = vector.load %arg2[%c0_4, %c0_5, %c0_6] : memref<1x8x1280xbf16, #tpu.memory_space<vmem>>, vector<1x8x1088xbf16>
    %4 = vector.shape_cast %3 : vector<1x8x1088xbf16> to vector<8x1088xbf16>
    %c8 = arith.constant 8 : index
    %c0_7 = arith.constant 0 : index
    %5 = vector.load %arg7[%c8, %c0_7] : memref<144x1088xbf16, #tpu.memory_space<vmem>>, vector<8x1088xbf16>
    tpu.vector_store %arg7[%c8, %c0_7], %4 {strides = array<i32>} : memref<144x1088xbf16, #tpu.memory_space<vmem>>, vector<8x1088xbf16>,
    %c0_8 = arith.constant 0 : index
    %c0_9 = arith.constant 0 : index
    %c1 = arith.constant 1 : index
    %6 = vector.load %arg1[%c0_8, %c0_9, %c1] : memref<1x8x1280xbf16, #tpu.memory_space<vmem>>, vector<1x8x1088xbf16>
    %7 = vector.shape_cast %6 : vector<1x8x1088xbf16> to vector<8x1088xbf16>
    %c16 = arith.constant 16 : index
    %c0_10 = arith.constant 0 : index
    %8 = vector.load %arg7[%c16, %c0_10] : memref<144x1088xbf16, #tpu.memory_space<vmem>>, vector<8x1088xbf16>
    tpu.vector_store %arg7[%c16, %c0_10], %7 {strides = array<i32>} : memref<144x1088xbf16, #tpu.memory_space<vmem>>, vector<8x1088xbf16>,
    %c0_11 = arith.constant 0 : index
    %c0_12 = arith.constant 0 : index
    %c1_13 = arith.constant 1 : index
    %9 = vector.load %arg2[%c0_11, %c0_12, %c1_13] : memref<1x8x1280xbf16, #tpu.memory_space<vmem>>, vector<1x8x1088xbf16>
    %10 = vector.shape_cast %9 : vector<1x8x1088xbf16> to vector<8x1088xbf16>
    %c24 = arith.constant 24 : index
    %c0_14 = arith.constant 0 : index
    %11 = vector.load %arg7[%c24, %c0_14] : memref<144x1088xbf16, #tpu.memory_space<vmem>>, vector<8x1088xbf16>
    tpu.vector_store %arg7[%c24, %c0_14], %10 {strides = array<i32>} : memref<144x1088xbf16, #tpu.memory_space<vmem>>, vector<8x1088xbf16>,
    %c0_15 = arith.constant 0 : index
    %c0_16 = arith.constant 0 : index
    %c2 = arith.constant 2 : index
    %12 = vector.load %arg1[%c0_15, %c0_16, %c2] : memref<1x8x1280xbf16, #tpu.memory_space<vmem>>, vector<1x8x1088xbf16>
    %13 = vector.shape_cast %12 : vector<1x8x1088xbf16> to vector<8x1088xbf16>
    %c32 = arith.constant 32 : index
    %c0_17 = arith.constant 0 : index
    %14 = vector.load %arg7[%c32, %c0_17] : memref<144x1088xbf16, #tpu.memory_space<vmem>>, vector<8x1088xbf16>
    tpu.vector_store %arg7[%c32, %c0_17], %13 {strides = array<i32>} : memref<144x1088xbf16, #tpu.memory_space<vmem>>, vector<8x1088xbf16>,
    %c0_18 = arith.constant 0 : index
    %c0_19 = arith.constant 0 : index
    %c2_20 = arith.constant 2 : index
    %15 = vector.load %arg2[%c0_18, %c0_19, %c2_20] : memref<1x8x1280xbf16, #tpu.memory_space<vmem>>, vector<1x8x1088xbf16>
    %16 = vector.shape_cast %15 : vector<1x8x1088xbf16> to vector<8x1088xbf16>
    %c40 = arith.constant 40 : index
    %c0_21 = arith.constant 0 : index
    %17 = vector.load %arg7[%c40, %c0_21] : memref<144x1088xbf16, #tpu.memory_space<vmem>>, vector<8x1088xbf16>
    tpu.vector_store %arg7[%c40, %c0_21], %16 {strides = array<i32>} : memref<144x1088xbf16, #tpu.memory_space<vmem>>, vector<8x1088xbf16>,
    %c0_22 = arith.constant 0 : index
    %c0_23 = arith.constant 0 : index
    %c34 = arith.constant 34 : index
    %18 = vector.load %arg1[%c0_22, %c0_23, %c34] : memref<1x8x1280xbf16, #tpu.memory_space<vmem>>, vector<1x8x1088xbf16>
    %19 = vector.shape_cast %18 : vector<1x8x1088xbf16> to vector<8x1088xbf16>
    %c48 = arith.constant 48 : index
    %c0_24 = arith.constant 0 : index
    %20 = vector.load %arg7[%c48, %c0_24] : memref<144x1088xbf16, #tpu.memory_space<vmem>>, vector<8x1088xbf16>
    tpu.vector_store %arg7[%c48, %c0_24], %19 {strides = array<i32>} : memref<144x1088xbf16, #tpu.memory_space<vmem>>, vector<8x1088xbf16>,
    %c0_25 = arith.constant 0 : index
    %c0_26 = arith.constant 0 : index
    %c34_27 = arith.constant 34 : index
    %21 = vector.load %arg2[%c0_25, %c0_26, %c34_27] : memref<1x8x1280xbf16, #tpu.memory_space<vmem>>, vector<1x8x1088xbf16>
    %22 = vector.shape_cast %21 : vector<1x8x1088xbf16> to vector<8x1088xbf16>
    %c56 = arith.constant 56 : index
    %c0_28 = arith.constant 0 : index
    %23 = vector.load %arg7[%c56, %c0_28] : memref<144x1088xbf16, #tpu.memory_space<vmem>>, vector<8x1088xbf16>
    tpu.vector_store %arg7[%c56, %c0_28], %22 {strides = array<i32>} : memref<144x1088xbf16, #tpu.memory_space<vmem>>, vector<8x1088xbf16>,
    %c0_29 = arith.constant 0 : index
    %c0_30 = arith.constant 0 : index
    %c35 = arith.constant 35 : index
    %24 = vector.load %arg1[%c0_29, %c0_30, %c35] : memref<1x8x1280xbf16, #tpu.memory_space<vmem>>, vector<1x8x1088xbf16>
    %25 = vector.shape_cast %24 : vector<1x8x1088xbf16> to vector<8x1088xbf16>
    %c64 = arith.constant 64 : index
    %c0_31 = arith.constant 0 : index
    %26 = vector.load %arg7[%c64, %c0_31] : memref<144x1088xbf16, #tpu.memory_space<vmem>>, vector<8x1088xbf16>
    tpu.vector_store %arg7[%c64, %c0_31], %25 {strides = array<i32>} : memref<144x1088xbf16, #tpu.memory_space<vmem>>, vector<8x1088xbf16>,
    %c0_32 = arith.constant 0 : index
    %c0_33 = arith.constant 0 : index
    %c35_34 = arith.constant 35 : index
    %27 = vector.load %arg2[%c0_32, %c0_33, %c35_34] : memref<1x8x1280xbf16, #tpu.memory_space<vmem>>, vector<1x8x1088xbf16>
    %28 = vector.shape_cast %27 : vector<1x8x1088xbf16> to vector<8x1088xbf16>
    %c72 = arith.constant 72 : index
    %c0_35 = arith.constant 0 : index
    %29 = vector.load %arg7[%c72, %c0_35] : memref<144x1088xbf16, #tpu.memory_space<vmem>>, vector<8x1088xbf16>
    tpu.vector_store %arg7[%c72, %c0_35], %28 {strides = array<i32>} : memref<144x1088xbf16, #tpu.memory_space<vmem>>, vector<8x1088xbf16>,
    %c0_36 = arith.constant 0 : index
    %c0_37 = arith.constant 0 : index
    %c36 = arith.constant 36 : index
    %30 = vector.load %arg1[%c0_36, %c0_37, %c36] : memref<1x8x1280xbf16, #tpu.memory_space<vmem>>, vector<1x8x1088xbf16>
    %31 = vector.shape_cast %30 : vector<1x8x1088xbf16> to vector<8x1088xbf16>
    %c80 = arith.constant 80 : index
    %c0_38 = arith.constant 0 : index
    %32 = vector.load %arg7[%c80, %c0_38] : memref<144x1088xbf16, #tpu.memory_space<vmem>>, vector<8x1088xbf16>
    tpu.vector_store %arg7[%c80, %c0_38], %31 {strides = array<i32>} : memref<144x1088xbf16, #tpu.memory_space<vmem>>, vector<8x1088xbf16>,
    %c0_39 = arith.constant 0 : index
    %c0_40 = arith.constant 0 : index
    %c36_41 = arith.constant 36 : index
    %33 = vector.load %arg2[%c0_39, %c0_40, %c36_41] : memref<1x8x1280xbf16, #tpu.memory_space<vmem>>, vector<1x8x1088xbf16>
    %34 = vector.shape_cast %33 : vector<1x8x1088xbf16> to vector<8x1088xbf16>
    %c88 = arith.constant 88 : index
    %c0_42 = arith.constant 0 : index
    %35 = vector.load %arg7[%c88, %c0_42] : memref<144x1088xbf16, #tpu.memory_space<vmem>>, vector<8x1088xbf16>
    tpu.vector_store %arg7[%c88, %c0_42], %34 {strides = array<i32>} : memref<144x1088xbf16, #tpu.memory_space<vmem>>, vector<8x1088xbf16>,
    %c0_43 = arith.constant 0 : index
    %c0_44 = arith.constant 0 : index
    %c68 = arith.constant 68 : index
    %36 = vector.load %arg1[%c0_43, %c0_44, %c68] : memref<1x8x1280xbf16, #tpu.memory_space<vmem>>, vector<1x8x1088xbf16>
    %37 = vector.shape_cast %36 : vector<1x8x1088xbf16> to vector<8x1088xbf16>
    %c96 = arith.constant 96 : index
    %c0_45 = arith.constant 0 : index
    %38 = vector.load %arg7[%c96, %c0_45] : memref<144x1088xbf16, #tpu.memory_space<vmem>>, vector<8x1088xbf16>
    tpu.vector_store %arg7[%c96, %c0_45], %37 {strides = array<i32>} : memref<144x1088xbf16, #tpu.memory_space<vmem>>, vector<8x1088xbf16>,
    %c0_46 = arith.constant 0 : index
    %c0_47 = arith.constant 0 : index
    %c68_48 = arith.constant 68 : index
    %39 = vector.load %arg2[%c0_46, %c0_47, %c68_48] : memref<1x8x1280xbf16, #tpu.memory_space<vmem>>, vector<1x8x1088xbf16>
    %40 = vector.shape_cast %39 : vector<1x8x1088xbf16> to vector<8x1088xbf16>
    %c104 = arith.constant 104 : index
    %c0_49 = arith.constant 0 : index
    %41 = vector.load %arg7[%c104, %c0_49] : memref<144x1088xbf16, #tpu.memory_space<vmem>>, vector<8x1088xbf16>
    tpu.vector_store %arg7[%c104, %c0_49], %40 {strides = array<i32>} : memref<144x1088xbf16, #tpu.memory_space<vmem>>, vector<8x1088xbf16>,
    %c0_50 = arith.constant 0 : index
    %c0_51 = arith.constant 0 : index
    %c69 = arith.constant 69 : index
    %42 = vector.load %arg1[%c0_50, %c0_51, %c69] : memref<1x8x1280xbf16, #tpu.memory_space<vmem>>, vector<1x8x1088xbf16>
    %43 = vector.shape_cast %42 : vector<1x8x1088xbf16> to vector<8x1088xbf16>
    %c112 = arith.constant 112 : index
    %c0_52 = arith.constant 0 : index
    %44 = vector.load %arg7[%c112, %c0_52] : memref<144x1088xbf16, #tpu.memory_space<vmem>>, vector<8x1088xbf16>
    tpu.vector_store %arg7[%c112, %c0_52], %43 {strides = array<i32>} : memref<144x1088xbf16, #tpu.memory_space<vmem>>, vector<8x1088xbf16>,
    %c0_53 = arith.constant 0 : index
    %c0_54 = arith.constant 0 : index
    %c69_55 = arith.constant 69 : index
    %45 = vector.load %arg2[%c0_53, %c0_54, %c69_55] : memref<1x8x1280xbf16, #tpu.memory_space<vmem>>, vector<1x8x1088xbf16>
    %46 = vector.shape_cast %45 : vector<1x8x1088xbf16> to vector<8x1088xbf16>
    %c120 = arith.constant 120 : index
    %c0_56 = arith.constant 0 : index
    %47 = vector.load %arg7[%c120, %c0_56] : memref<144x1088xbf16, #tpu.memory_space<vmem>>, vector<8x1088xbf16>
    tpu.vector_store %arg7[%c120, %c0_56], %46 {strides = array<i32>} : memref<144x1088xbf16, #tpu.memory_space<vmem>>, vector<8x1088xbf16>,
    %c0_57 = arith.constant 0 : index
    %c0_58 = arith.constant 0 : index
    %c70 = arith.constant 70 : index
    %48 = vector.load %arg1[%c0_57, %c0_58, %c70] : memref<1x8x1280xbf16, #tpu.memory_space<vmem>>, vector<1x8x1088xbf16>
    %49 = vector.shape_cast %48 : vector<1x8x1088xbf16> to vector<8x1088xbf16>
    %c128 = arith.constant 128 : index
    %c0_59 = arith.constant 0 : index
    %50 = vector.load %arg7[%c128, %c0_59] : memref<144x1088xbf16, #tpu.memory_space<vmem>>, vector<8x1088xbf16>
    tpu.vector_store %arg7[%c128, %c0_59], %49 {strides = array<i32>} : memref<144x1088xbf16, #tpu.memory_space<vmem>>, vector<8x1088xbf16>,
    %c0_60 = arith.constant 0 : index
    %c0_61 = arith.constant 0 : index
    %c70_62 = arith.constant 70 : index
    %51 = vector.load %arg2[%c0_60, %c0_61, %c70_62] : memref<1x8x1280xbf16, #tpu.memory_space<vmem>>, vector<1x8x1088xbf16>
    %52 = vector.shape_cast %51 : vector<1x8x1088xbf16> to vector<8x1088xbf16>
    %c136 = arith.constant 136 : index
    %c0_63 = arith.constant 0 : index
    %53 = vector.load %arg7[%c136, %c0_63] : memref<144x1088xbf16, #tpu.memory_space<vmem>>, vector<8x1088xbf16>
    tpu.vector_store %arg7[%c136, %c0_63], %52 {strides = array<i32>} : memref<144x1088xbf16, #tpu.memory_space<vmem>>, vector<8x1088xbf16>,
    %c0_64 = arith.constant 0 : index
    %c0_65 = arith.constant 0 : index
    %54 = vector.load %arg3[%c0_64, %c0_65] : memref<8x144xbf16, #tpu.memory_space<vmem>>, vector<8x144xbf16>
    %c0_66 = arith.constant 0 : index
    %c0_67 = arith.constant 0 : index
    %55 = vector.load %arg7[%c0_66, %c0_67] : memref<144x1088xbf16, #tpu.memory_space<vmem>>, vector<144x1088xbf16>
    %cst = arith.constant dense<0.000000e+00> : vector<8x1088xf32>
    %56 = tpu.matmul %54, %55, %cst {dimension_numbers = #tpu.dot_dimension_numbers<[1], [0], [0], [1], [0, 0, 1, 1], [], []>} : vector<8x144xbf16>, vector<144x1088xbf16>, vector<8x1088xf32> -> vector<8x1088xf32>
    %c0_68 = arith.constant 0 : index
    %c0_69 = arith.constant 0 : index
    %57 = vector.load %arg4[%c0_68, %c0_69] : memref<8x1xf32, #tpu.memory_space<vmem>>, vector<8x1xf32>
    %58 = vector.broadcast %57 : vector<8x1xf32> to vector<8x1088xf32>
    %59 = arith.addf %56, %58 : vector<8x1088xf32>
    %cst_70 = arith.constant 0.000000e+00 : f32
    %60 = vector.broadcast %cst_70 : f32 to vector<8x1088xf32>
    %61 = arith.maximumf %59, %60 : vector<8x1088xf32>
    %62 = arith.truncf %61 : vector<8x1088xf32> to vector<8x1088xbf16>
    %c0_71 = arith.constant 0 : index
    %c0_72 = arith.constant 0 : index
    %c0_73 = arith.constant 0 : index
    %63 = vector.load %arg5[%c0_71, %c0_72, %c0_73] : memref<1x8x1088xbf16, #tpu.memory_space<vmem>>, vector<1x8x1088xbf16>
    %64 = vector.shape_cast %63 : vector<1x8x1088xbf16> to vector<8x1088xbf16>
    %65 = vector.shape_cast %62 : vector<8x1088xbf16> to vector<1x8x1088xbf16>
    tpu.vector_store %arg5[%c0_71, %c0_72, %c0_73], %65 {strides = array<i32>} : memref<1x8x1088xbf16, #tpu.memory_space<vmem>>, vector<1x8x1088xbf16>,
    %66 = tpu.iota {dimensions = array<i32: 1>} : vector<1x1088xi32>
    %c34_i32 = arith.constant 34 : i32
    %c0_i32 = arith.constant 0 : i32
    %67 = arith.cmpi eq, %c34_i32, %c0_i32 : i32
    %c1_i32 = arith.constant 1 : i32
    %68 = arith.select %67, %c1_i32, %c34_i32 : i32
    %69 = vector.broadcast %68 : i32 to vector<1x1088xi32>
    %70 = arith.remsi %66, %69 : vector<1x1088xi32>
    %c0_i32_74 = arith.constant 0 : i32
    %71 = vector.broadcast %c0_i32_74 : i32 to vector<1x1088xi32>
    %72 = arith.cmpi ne, %70, %71 : vector<1x1088xi32>
    %c0_i32_75 = arith.constant 0 : i32
    %73 = vector.broadcast %c0_i32_75 : i32 to vector<1x1088xi32>
    %74 = arith.cmpi slt, %70, %73 : vector<1x1088xi32>
    %c0_i32_76 = arith.constant 0 : i32
    %75 = arith.cmpi slt, %68, %c0_i32_76 : i32
    %76 = vector.broadcast %75 : i1 to vector<1x1088xi1>
    %77 = vector.broadcast %76 : vector<1x1088xi1> to vector<1x1088xi1>
    %78 = arith.xori %74, %77 : vector<1x1088xi1>
    %79 = arith.andi %78, %72 : vector<1x1088xi1>
    %80 = vector.broadcast %68 : i32 to vector<1x1088xi32>
    %81 = arith.addi %70, %80 : vector<1x1088xi32>
    %82 = arith.select %79, %81, %70 : vector<1x1088xi1>, vector<1x1088xi32>
    %c32_i32 = arith.constant 32 : i32
    %83 = vector.broadcast %c32_i32 : i32 to vector<1x1088xi32>
    %84 = arith.cmpi slt, %82, %83 : vector<1x1088xi32>
    %cst_77 = arith.constant 0.000000e+00 : f32
    %85 = vector.shape_cast %84 : vector<1x1088xi1> to vector<1x1088xi1>
    %86 = vector.broadcast %85 : vector<1x1088xi1> to vector<8x1088xi1>
    %87 = vector.broadcast %cst_77 : f32 to vector<8x1088xf32>
    %88 = arith.select %86, %61, %87 : vector<8x1088xi1>, vector<8x1088xf32>
    %cst_78 = arith.constant dense<0.000000e+00> : vector<8xf32>
    %89 = vector.multi_reduction <add>, %88, %cst_78 [1] : vector<8x1088xf32> to vector<8xf32>
    %90 = vector.shape_cast %89 : vector<8xf32> to vector<8x1xf32>
    %c0_79 = arith.constant 0 : index
    %c0_80 = arith.constant 0 : index
    %c0_81 = arith.constant 0 : index
    %91 = vector.load %arg6[%c0_79, %c0_80, %c0_81] : memref<1x8x2xf32, #tpu.memory_space<vmem>>, vector<1x8x1xf32>
    %92 = vector.shape_cast %91 : vector<1x8x1xf32> to vector<8x1xf32>
    %93 = vector.shape_cast %90 : vector<8x1xf32> to vector<1x8x1xf32>
    tpu.vector_store %arg6[%c0_79, %c0_80, %c0_81], %93 {strides = array<i32>} : memref<1x8x2xf32, #tpu.memory_space<vmem>>, vector<1x8x1xf32>,
    %94 = arith.mulf %88, %88 : vector<8x1088xf32>
    %cst_82 = arith.constant dense<0.000000e+00> : vector<8xf32>
    %95 = vector.multi_reduction <add>, %94, %cst_82 [1] : vector<8x1088xf32> to vector<8xf32>
    %96 = vector.shape_cast %95 : vector<8xf32> to vector<8x1xf32>
    %c0_83 = arith.constant 0 : index
    %c0_84 = arith.constant 0 : index
    %c1_85 = arith.constant 1 : index
    %97 = vector.load %arg6[%c0_83, %c0_84, %c1_85] : memref<1x8x2xf32, #tpu.memory_space<vmem>>, vector<1x8x1xf32>
    %98 = vector.shape_cast %97 : vector<1x8x1xf32> to vector<8x1xf32>
    %99 = vector.shape_cast %96 : vector<8x1xf32> to vector<1x8x1xf32>
    tpu.vector_store %arg6[%c0_83, %c0_84, %c1_85], %99 {strides = array<i32>} : memref<1x8x2xf32, #tpu.memory_space<vmem>>, vector<1x8x1xf32>,
    return
  }
  func.func @transform_0(%arg0: i32) -> (i32, i32, i32) {
    %c0_i32 = arith.constant 0 : i32
    %c0_i32_0 = arith.constant 0 : i32
    %c0_i32_1 = arith.constant 0 : i32
    return %arg0, %c0_i32, %c0_i32_0 : i32, i32, i32
  }
  func.func @transform_1(%arg0: i32) -> (i32, i32, i32) {
    %c0_i32 = arith.constant 0 : i32
    %c0_i32_0 = arith.constant 0 : i32
    %c0_i32_1 = arith.constant 0 : i32
    return %arg0, %c0_i32, %c0_i32_0 : i32, i32, i32
  }
  func.func @transform_2(%arg0: i32) -> (i32, i32) {
    %c0_i32 = arith.constant 0 : i32
    %c0_i32_0 = arith.constant 0 : i32
    %c0_i32_1 = arith.constant 0 : i32
    return %c0_i32, %c0_i32_0 : i32, i32
  }
  func.func @transform_3(%arg0: i32) -> (i32, i32) {
    %c0_i32 = arith.constant 0 : i32
    %c0_i32_0 = arith.constant 0 : i32
    %c0_i32_1 = arith.constant 0 : i32
    return %c0_i32, %c0_i32_0 : i32, i32
  }
  func.func @transform_4(%arg0: i32) -> (i32, i32, i32) {
    %c0_i32 = arith.constant 0 : i32
    %c0_i32_0 = arith.constant 0 : i32
    %c0_i32_1 = arith.constant 0 : i32
    return %arg0, %c0_i32, %c0_i32_0 : i32, i32, i32
  }
  func.func @transform_5(%arg0: i32) -> (i32, i32, i32) {
    %c0_i32 = arith.constant 0 : i32
    %c0_i32_0 = arith.constant 0 : i32
    %c0_i32_1 = arith.constant 0 : i32
    return %arg0, %c0_i32, %c0_i32_0 : i32, i32, i32
  }
}

module attributes {stable_mosaic.version = 11 : i64} {
  func.func @_bn_affine_kernel(%arg0: i32, %arg1: memref<1x8x1088xbf16, #tpu.memory_space<vmem>>, %arg2: memref<8x1xf32, #tpu.memory_space<vmem>>, %arg3: memref<8x1xf32, #tpu.memory_space<vmem>>, %arg4: memref<1x8x1088xf32, #tpu.memory_space<vmem>>) attributes {dimension_semantics = [#tpu.dimension_semantics<parallel>], iteration_bounds = array<i64: 2>, scalar_prefetch = 0 : i64, scratch_operands = 0 : i64, tpu.core_type = #tpu.core_type<tc>, window_params = [{transform_indices = @transform_0, window_bounds = array<i64: 1, 8, 1088>}, {pipeline_mode = #tpu.pipeline_mode<synchronous>, transform_indices = @transform_1, window_bounds = array<i64: 8, 1>}, {pipeline_mode = #tpu.pipeline_mode<synchronous>, transform_indices = @transform_2, window_bounds = array<i64: 8, 1>}, {transform_indices = @transform_3, window_bounds = array<i64: 1, 8, 1088>}]} {
    %c0 = arith.constant 0 : index
    %c0_0 = arith.constant 0 : index
    %c0_1 = arith.constant 0 : index
    %0 = vector.load %arg1[%c0, %c0_0, %c0_1] : memref<1x8x1088xbf16, #tpu.memory_space<vmem>>, vector<1x8x1088xbf16>
    %1 = vector.shape_cast %0 : vector<1x8x1088xbf16> to vector<8x1088xbf16>
    %2 = arith.extf %1 : vector<8x1088xbf16> to vector<8x1088xf32>
    %c0_2 = arith.constant 0 : index
    %c0_3 = arith.constant 0 : index
    %3 = vector.load %arg2[%c0_2, %c0_3] : memref<8x1xf32, #tpu.memory_space<vmem>>, vector<8x1xf32>
    %4 = vector.broadcast %3 : vector<8x1xf32> to vector<8x1088xf32>
    %5 = arith.mulf %2, %4 : vector<8x1088xf32>
    %c0_4 = arith.constant 0 : index
    %c0_5 = arith.constant 0 : index
    %6 = vector.load %arg3[%c0_4, %c0_5] : memref<8x1xf32, #tpu.memory_space<vmem>>, vector<8x1xf32>
    %7 = vector.broadcast %6 : vector<8x1xf32> to vector<8x1088xf32>
    %8 = arith.addf %5, %7 : vector<8x1088xf32>
    %c0_6 = arith.constant 0 : index
    %c0_7 = arith.constant 0 : index
    %c0_8 = arith.constant 0 : index
    %9 = vector.load %arg4[%c0_6, %c0_7, %c0_8] : memref<1x8x1088xf32, #tpu.memory_space<vmem>>, vector<1x8x1088xf32>
    %10 = vector.shape_cast %9 : vector<1x8x1088xf32> to vector<8x1088xf32>
    %11 = vector.shape_cast %8 : vector<8x1088xf32> to vector<1x8x1088xf32>
    tpu.vector_store %arg4[%c0_6, %c0_7, %c0_8], %11 {strides = array<i32>} : memref<1x8x1088xf32, #tpu.memory_space<vmem>>, vector<1x8x1088xf32>,
    return
  }
  func.func @transform_0(%arg0: i32) -> (i32, i32, i32) {
    %c0_i32 = arith.constant 0 : i32
    %c0_i32_0 = arith.constant 0 : i32
    %c0_i32_1 = arith.constant 0 : i32
    return %arg0, %c0_i32, %c0_i32_0 : i32, i32, i32
  }
  func.func @transform_1(%arg0: i32) -> (i32, i32) {
    %c0_i32 = arith.constant 0 : i32
    %c0_i32_0 = arith.constant 0 : i32
    %c0_i32_1 = arith.constant 0 : i32
    return %c0_i32, %c0_i32_0 : i32, i32
  }
  func.func @transform_2(%arg0: i32) -> (i32, i32) {
    %c0_i32 = arith.constant 0 : i32
    %c0_i32_0 = arith.constant 0 : i32
    %c0_i32_1 = arith.constant 0 : i32
    return %c0_i32, %c0_i32_0 : i32, i32
  }
  func.func @transform_3(%arg0: i32) -> (i32, i32, i32) {
    %c0_i32 = arith.constant 0 : i32
    %c0_i32_0 = arith.constant 0 : i32
    %c0_i32_1 = arith.constant 0 : i32
    return %arg0, %c0_i32, %c0_i32_0 : i32, i32, i32
  }
}

module attributes {stable_mosaic.version = 11 : i64} {
  func.func @_conv2_kernel(%arg0: i32, %arg1: memref<1x8x1088xbf16, #tpu.memory_space<vmem>>, %arg2: memref<8x1xf32, #tpu.memory_space<vmem>>, %arg3: memref<8x1xf32, #tpu.memory_space<vmem>>, %arg4: memref<8x72xbf16, #tpu.memory_space<vmem>>, %arg5: memref<8x1xf32, #tpu.memory_space<vmem>>, %arg6: memref<1x8x1088xbf16, #tpu.memory_space<vmem>>, %arg7: memref<1x8x2xf32, #tpu.memory_space<vmem>>, %arg8: memref<8x1280xbf16, #tpu.memory_space<vmem>>, %arg9: memref<72x1088xbf16, #tpu.memory_space<vmem>>) attributes {dimension_semantics = [#tpu.dimension_semantics<parallel>], iteration_bounds = array<i64: 2>, scalar_prefetch = 0 : i64, scratch_operands = 2 : i64, tpu.core_type = #tpu.core_type<tc>, window_params = [{transform_indices = @transform_0, window_bounds = array<i64: 1, 8, 1088>}, {pipeline_mode = #tpu.pipeline_mode<synchronous>, transform_indices = @transform_1, window_bounds = array<i64: 8, 1>}, {pipeline_mode = #tpu.pipeline_mode<synchronous>, transform_indices = @transform_2, window_bounds = array<i64: 8, 1>}, {pipeline_mode = #tpu.pipeline_mode<synchronous>, transform_indices = @transform_3, window_bounds = array<i64: 8, 72>}, {pipeline_mode = #tpu.pipeline_mode<synchronous>, transform_indices = @transform_4, window_bounds = array<i64: 8, 1>}, {transform_indices = @transform_5, window_bounds = array<i64: 1, 8, 1088>}, {transform_indices = @transform_6, window_bounds = array<i64: 1, 8, 2>}]} {
    %c0 = arith.constant 0 : index
    %c0_0 = arith.constant 0 : index
    %c0_1 = arith.constant 0 : index
    %0 = vector.load %arg1[%c0, %c0_0, %c0_1] : memref<1x8x1088xbf16, #tpu.memory_space<vmem>>, vector<1x8x1088xbf16>
    %1 = vector.shape_cast %0 : vector<1x8x1088xbf16> to vector<8x1088xbf16>
    %2 = arith.extf %1 : vector<8x1088xbf16> to vector<8x1088xf32>
    %c0_2 = arith.constant 0 : index
    %c0_3 = arith.constant 0 : index
    %3 = vector.load %arg2[%c0_2, %c0_3] : memref<8x1xf32, #tpu.memory_space<vmem>>, vector<8x1xf32>
    %4 = vector.broadcast %3 : vector<8x1xf32> to vector<8x1088xf32>
    %5 = arith.mulf %2, %4 : vector<8x1088xf32>
    %c0_4 = arith.constant 0 : index
    %c0_5 = arith.constant 0 : index
    %6 = vector.load %arg3[%c0_4, %c0_5] : memref<8x1xf32, #tpu.memory_space<vmem>>, vector<8x1xf32>
    %7 = vector.broadcast %6 : vector<8x1xf32> to vector<8x1088xf32>
    %8 = arith.addf %5, %7 : vector<8x1088xf32>
    %9 = tpu.iota {dimensions = array<i32: 1>} : vector<1x1088xi32>
    %c34_i32 = arith.constant 34 : i32
    %c0_i32 = arith.constant 0 : i32
    %10 = arith.cmpi eq, %c34_i32, %c0_i32 : i32
    %c1_i32 = arith.constant 1 : i32
    %11 = arith.select %10, %c1_i32, %c34_i32 : i32
    %12 = vector.broadcast %11 : i32 to vector<1x1088xi32>
    %13 = arith.remsi %9, %12 : vector<1x1088xi32>
    %c0_i32_6 = arith.constant 0 : i32
    %14 = vector.broadcast %c0_i32_6 : i32 to vector<1x1088xi32>
    %15 = arith.cmpi ne, %13, %14 : vector<1x1088xi32>
    %c0_i32_7 = arith.constant 0 : i32
    %16 = vector.broadcast %c0_i32_7 : i32 to vector<1x1088xi32>
    %17 = arith.cmpi slt, %13, %16 : vector<1x1088xi32>
    %c0_i32_8 = arith.constant 0 : i32
    %18 = arith.cmpi slt, %11, %c0_i32_8 : i32
    %19 = vector.broadcast %18 : i1 to vector<1x1088xi1>
    %20 = vector.broadcast %19 : vector<1x1088xi1> to vector<1x1088xi1>
    %21 = arith.xori %17, %20 : vector<1x1088xi1>
    %22 = arith.andi %21, %15 : vector<1x1088xi1>
    %23 = vector.broadcast %11 : i32 to vector<1x1088xi32>
    %24 = arith.addi %13, %23 : vector<1x1088xi32>
    %25 = arith.select %22, %24, %13 : vector<1x1088xi1>, vector<1x1088xi32>
    %c32_i32 = arith.constant 32 : i32
    %26 = vector.broadcast %c32_i32 : i32 to vector<1x1088xi32>
    %27 = arith.cmpi slt, %25, %26 : vector<1x1088xi32>
    %cst = arith.constant 0.000000e+00 : f32
    %28 = vector.shape_cast %27 : vector<1x1088xi1> to vector<1x1088xi1>
    %29 = vector.broadcast %28 : vector<1x1088xi1> to vector<8x1088xi1>
    %30 = vector.broadcast %cst : f32 to vector<8x1088xf32>
    %31 = arith.select %29, %8, %30 : vector<8x1088xi1>, vector<8x1088xf32>
    %cst_9 = arith.constant 0.000000e+00 : bf16
    %32 = vector.broadcast %cst_9 : bf16 to vector<8x35xbf16>
    %c0_10 = arith.constant 0 : index
    %c0_11 = arith.constant 0 : index
    %33 = vector.load %arg8[%c0_10, %c0_11] : memref<8x1280xbf16, #tpu.memory_space<vmem>>, vector<8x35xbf16>
    tpu.vector_store %arg8[%c0_10, %c0_11], %32 {strides = array<i32>} : memref<8x1280xbf16, #tpu.memory_space<vmem>>, vector<8x35xbf16>,
    %34 = arith.truncf %31 : vector<8x1088xf32> to vector<8x1088xbf16>
    %c0_12 = arith.constant 0 : index
    %c35 = arith.constant 35 : index
    %35 = vector.load %arg8[%c0_12, %c35] : memref<8x1280xbf16, #tpu.memory_space<vmem>>, vector<8x1088xbf16>
    tpu.vector_store %arg8[%c0_12, %c35], %34 {strides = array<i32>} : memref<8x1280xbf16, #tpu.memory_space<vmem>>, vector<8x1088xbf16>,
    %cst_13 = arith.constant 0.000000e+00 : bf16
    %36 = vector.broadcast %cst_13 : bf16 to vector<8x157xbf16>
    %c0_14 = arith.constant 0 : index
    %c1123 = arith.constant 1123 : index
    %37 = vector.load %arg8[%c0_14, %c1123] : memref<8x1280xbf16, #tpu.memory_space<vmem>>, vector<8x157xbf16>
    tpu.vector_store %arg8[%c0_14, %c1123], %36 {strides = array<i32>} : memref<8x1280xbf16, #tpu.memory_space<vmem>>, vector<8x157xbf16>,
    %c0_15 = arith.constant 0 : index
    %c0_16 = arith.constant 0 : index
    %38 = vector.load %arg8[%c0_15, %c0_16] : memref<8x1280xbf16, #tpu.memory_space<vmem>>, vector<8x1088xbf16>
    %c0_17 = arith.constant 0 : index
    %c0_18 = arith.constant 0 : index
    %39 = vector.load %arg9[%c0_17, %c0_18] : memref<72x1088xbf16, #tpu.memory_space<vmem>>, vector<8x1088xbf16>
    tpu.vector_store %arg9[%c0_17, %c0_18], %38 {strides = array<i32>} : memref<72x1088xbf16, #tpu.memory_space<vmem>>, vector<8x1088xbf16>,
    %c0_19 = arith.constant 0 : index
    %c1 = arith.constant 1 : index
    %40 = vector.load %arg8[%c0_19, %c1] : memref<8x1280xbf16, #tpu.memory_space<vmem>>, vector<8x1088xbf16>
    %c8 = arith.constant 8 : index
    %c0_20 = arith.constant 0 : index
    %41 = vector.load %arg9[%c8, %c0_20] : memref<72x1088xbf16, #tpu.memory_space<vmem>>, vector<8x1088xbf16>
    tpu.vector_store %arg9[%c8, %c0_20], %40 {strides = array<i32>} : memref<72x1088xbf16, #tpu.memory_space<vmem>>, vector<8x1088xbf16>,
    %c0_21 = arith.constant 0 : index
    %c2 = arith.constant 2 : index
    %42 = vector.load %arg8[%c0_21, %c2] : memref<8x1280xbf16, #tpu.memory_space<vmem>>, vector<8x1088xbf16>
    %c16 = arith.constant 16 : index
    %c0_22 = arith.constant 0 : index
    %43 = vector.load %arg9[%c16, %c0_22] : memref<72x1088xbf16, #tpu.memory_space<vmem>>, vector<8x1088xbf16>
    tpu.vector_store %arg9[%c16, %c0_22], %42 {strides = array<i32>} : memref<72x1088xbf16, #tpu.memory_space<vmem>>, vector<8x1088xbf16>,
    %c0_23 = arith.constant 0 : index
    %c34 = arith.constant 34 : index
    %44 = vector.load %arg8[%c0_23, %c34] : memref<8x1280xbf16, #tpu.memory_space<vmem>>, vector<8x1088xbf16>
    %c24 = arith.constant 24 : index
    %c0_24 = arith.constant 0 : index
    %45 = vector.load %arg9[%c24, %c0_24] : memref<72x1088xbf16, #tpu.memory_space<vmem>>, vector<8x1088xbf16>
    tpu.vector_store %arg9[%c24, %c0_24], %44 {strides = array<i32>} : memref<72x1088xbf16, #tpu.memory_space<vmem>>, vector<8x1088xbf16>,
    %c0_25 = arith.constant 0 : index
    %c35_26 = arith.constant 35 : index
    %46 = vector.load %arg8[%c0_25, %c35_26] : memref<8x1280xbf16, #tpu.memory_space<vmem>>, vector<8x1088xbf16>
    %c32 = arith.constant 32 : index
    %c0_27 = arith.constant 0 : index
    %47 = vector.load %arg9[%c32, %c0_27] : memref<72x1088xbf16, #tpu.memory_space<vmem>>, vector<8x1088xbf16>
    tpu.vector_store %arg9[%c32, %c0_27], %46 {strides = array<i32>} : memref<72x1088xbf16, #tpu.memory_space<vmem>>, vector<8x1088xbf16>,
    %c0_28 = arith.constant 0 : index
    %c36 = arith.constant 36 : index
    %48 = vector.load %arg8[%c0_28, %c36] : memref<8x1280xbf16, #tpu.memory_space<vmem>>, vector<8x1088xbf16>
    %c40 = arith.constant 40 : index
    %c0_29 = arith.constant 0 : index
    %49 = vector.load %arg9[%c40, %c0_29] : memref<72x1088xbf16, #tpu.memory_space<vmem>>, vector<8x1088xbf16>
    tpu.vector_store %arg9[%c40, %c0_29], %48 {strides = array<i32>} : memref<72x1088xbf16, #tpu.memory_space<vmem>>, vector<8x1088xbf16>,
    %c0_30 = arith.constant 0 : index
    %c68 = arith.constant 68 : index
    %50 = vector.load %arg8[%c0_30, %c68] : memref<8x1280xbf16, #tpu.memory_space<vmem>>, vector<8x1088xbf16>
    %c48 = arith.constant 48 : index
    %c0_31 = arith.constant 0 : index
    %51 = vector.load %arg9[%c48, %c0_31] : memref<72x1088xbf16, #tpu.memory_space<vmem>>, vector<8x1088xbf16>
    tpu.vector_store %arg9[%c48, %c0_31], %50 {strides = array<i32>} : memref<72x1088xbf16, #tpu.memory_space<vmem>>, vector<8x1088xbf16>,
    %c0_32 = arith.constant 0 : index
    %c69 = arith.constant 69 : index
    %52 = vector.load %arg8[%c0_32, %c69] : memref<8x1280xbf16, #tpu.memory_space<vmem>>, vector<8x1088xbf16>
    %c56 = arith.constant 56 : index
    %c0_33 = arith.constant 0 : index
    %53 = vector.load %arg9[%c56, %c0_33] : memref<72x1088xbf16, #tpu.memory_space<vmem>>, vector<8x1088xbf16>
    tpu.vector_store %arg9[%c56, %c0_33], %52 {strides = array<i32>} : memref<72x1088xbf16, #tpu.memory_space<vmem>>, vector<8x1088xbf16>,
    %c0_34 = arith.constant 0 : index
    %c70 = arith.constant 70 : index
    %54 = vector.load %arg8[%c0_34, %c70] : memref<8x1280xbf16, #tpu.memory_space<vmem>>, vector<8x1088xbf16>
    %c64 = arith.constant 64 : index
    %c0_35 = arith.constant 0 : index
    %55 = vector.load %arg9[%c64, %c0_35] : memref<72x1088xbf16, #tpu.memory_space<vmem>>, vector<8x1088xbf16>
    tpu.vector_store %arg9[%c64, %c0_35], %54 {strides = array<i32>} : memref<72x1088xbf16, #tpu.memory_space<vmem>>, vector<8x1088xbf16>,
    %c0_36 = arith.constant 0 : index
    %c0_37 = arith.constant 0 : index
    %56 = vector.load %arg4[%c0_36, %c0_37] : memref<8x72xbf16, #tpu.memory_space<vmem>>, vector<8x72xbf16>
    %c0_38 = arith.constant 0 : index
    %c0_39 = arith.constant 0 : index
    %57 = vector.load %arg9[%c0_38, %c0_39] : memref<72x1088xbf16, #tpu.memory_space<vmem>>, vector<72x1088xbf16>
    %cst_40 = arith.constant dense<0.000000e+00> : vector<8x1088xf32>
    %58 = tpu.matmul %56, %57, %cst_40 {dimension_numbers = #tpu.dot_dimension_numbers<[1], [0], [0], [1], [0, 0, 1, 1], [], []>} : vector<8x72xbf16>, vector<72x1088xbf16>, vector<8x1088xf32> -> vector<8x1088xf32>
    %c0_41 = arith.constant 0 : index
    %c0_42 = arith.constant 0 : index
    %59 = vector.load %arg5[%c0_41, %c0_42] : memref<8x1xf32, #tpu.memory_space<vmem>>, vector<8x1xf32>
    %60 = vector.broadcast %59 : vector<8x1xf32> to vector<8x1088xf32>
    %61 = arith.addf %58, %60 : vector<8x1088xf32>
    %cst_43 = arith.constant 0.000000e+00 : f32
    %62 = vector.broadcast %cst_43 : f32 to vector<8x1088xf32>
    %63 = arith.maximumf %61, %62 : vector<8x1088xf32>
    %64 = arith.truncf %63 : vector<8x1088xf32> to vector<8x1088xbf16>
    %c0_44 = arith.constant 0 : index
    %c0_45 = arith.constant 0 : index
    %c0_46 = arith.constant 0 : index
    %65 = vector.load %arg6[%c0_44, %c0_45, %c0_46] : memref<1x8x1088xbf16, #tpu.memory_space<vmem>>, vector<1x8x1088xbf16>
    %66 = vector.shape_cast %65 : vector<1x8x1088xbf16> to vector<8x1088xbf16>
    %67 = vector.shape_cast %64 : vector<8x1088xbf16> to vector<1x8x1088xbf16>
    tpu.vector_store %arg6[%c0_44, %c0_45, %c0_46], %67 {strides = array<i32>} : memref<1x8x1088xbf16, #tpu.memory_space<vmem>>, vector<1x8x1088xbf16>,
    %68 = tpu.iota {dimensions = array<i32: 1>} : vector<1x1088xi32>
    %c34_i32_47 = arith.constant 34 : i32
    %c0_i32_48 = arith.constant 0 : i32
    %69 = arith.cmpi eq, %c34_i32_47, %c0_i32_48 : i32
    %c1_i32_49 = arith.constant 1 : i32
    %70 = arith.select %69, %c1_i32_49, %c34_i32_47 : i32
    %71 = vector.broadcast %70 : i32 to vector<1x1088xi32>
    %72 = arith.remsi %68, %71 : vector<1x1088xi32>
    %c0_i32_50 = arith.constant 0 : i32
    %73 = vector.broadcast %c0_i32_50 : i32 to vector<1x1088xi32>
    %74 = arith.cmpi ne, %72, %73 : vector<1x1088xi32>
    %c0_i32_51 = arith.constant 0 : i32
    %75 = vector.broadcast %c0_i32_51 : i32 to vector<1x1088xi32>
    %76 = arith.cmpi slt, %72, %75 : vector<1x1088xi32>
    %c0_i32_52 = arith.constant 0 : i32
    %77 = arith.cmpi slt, %70, %c0_i32_52 : i32
    %78 = vector.broadcast %77 : i1 to vector<1x1088xi1>
    %79 = vector.broadcast %78 : vector<1x1088xi1> to vector<1x1088xi1>
    %80 = arith.xori %76, %79 : vector<1x1088xi1>
    %81 = arith.andi %80, %74 : vector<1x1088xi1>
    %82 = vector.broadcast %70 : i32 to vector<1x1088xi32>
    %83 = arith.addi %72, %82 : vector<1x1088xi32>
    %84 = arith.select %81, %83, %72 : vector<1x1088xi1>, vector<1x1088xi32>
    %c32_i32_53 = arith.constant 32 : i32
    %85 = vector.broadcast %c32_i32_53 : i32 to vector<1x1088xi32>
    %86 = arith.cmpi slt, %84, %85 : vector<1x1088xi32>
    %cst_54 = arith.constant 0.000000e+00 : f32
    %87 = vector.shape_cast %86 : vector<1x1088xi1> to vector<1x1088xi1>
    %88 = vector.broadcast %87 : vector<1x1088xi1> to vector<8x1088xi1>
    %89 = vector.broadcast %cst_54 : f32 to vector<8x1088xf32>
    %90 = arith.select %88, %63, %89 : vector<8x1088xi1>, vector<8x1088xf32>
    %cst_55 = arith.constant dense<0.000000e+00> : vector<8xf32>
    %91 = vector.multi_reduction <add>, %90, %cst_55 [1] : vector<8x1088xf32> to vector<8xf32>
    %92 = vector.shape_cast %91 : vector<8xf32> to vector<8x1xf32>
    %c0_56 = arith.constant 0 : index
    %c0_57 = arith.constant 0 : index
    %c0_58 = arith.constant 0 : index
    %93 = vector.load %arg7[%c0_56, %c0_57, %c0_58] : memref<1x8x2xf32, #tpu.memory_space<vmem>>, vector<1x8x1xf32>
    %94 = vector.shape_cast %93 : vector<1x8x1xf32> to vector<8x1xf32>
    %95 = vector.shape_cast %92 : vector<8x1xf32> to vector<1x8x1xf32>
    tpu.vector_store %arg7[%c0_56, %c0_57, %c0_58], %95 {strides = array<i32>} : memref<1x8x2xf32, #tpu.memory_space<vmem>>, vector<1x8x1xf32>,
    %96 = arith.mulf %90, %90 : vector<8x1088xf32>
    %cst_59 = arith.constant dense<0.000000e+00> : vector<8xf32>
    %97 = vector.multi_reduction <add>, %96, %cst_59 [1] : vector<8x1088xf32> to vector<8xf32>
    %98 = vector.shape_cast %97 : vector<8xf32> to vector<8x1xf32>
    %c0_60 = arith.constant 0 : index
    %c0_61 = arith.constant 0 : index
    %c1_62 = arith.constant 1 : index
    %99 = vector.load %arg7[%c0_60, %c0_61, %c1_62] : memref<1x8x2xf32, #tpu.memory_space<vmem>>, vector<1x8x1xf32>
    %100 = vector.shape_cast %99 : vector<1x8x1xf32> to vector<8x1xf32>
    %101 = vector.shape_cast %98 : vector<8x1xf32> to vector<1x8x1xf32>
    tpu.vector_store %arg7[%c0_60, %c0_61, %c1_62], %101 {strides = array<i32>} : memref<1x8x2xf32, #tpu.memory_space<vmem>>, vector<1x8x1xf32>,
    return
  }
  func.func @transform_0(%arg0: i32) -> (i32, i32, i32) {
    %c0_i32 = arith.constant 0 : i32
    %c0_i32_0 = arith.constant 0 : i32
    %c0_i32_1 = arith.constant 0 : i32
    return %arg0, %c0_i32, %c0_i32_0 : i32, i32, i32
  }
  func.func @transform_1(%arg0: i32) -> (i32, i32) {
    %c0_i32 = arith.constant 0 : i32
    %c0_i32_0 = arith.constant 0 : i32
    %c0_i32_1 = arith.constant 0 : i32
    return %c0_i32, %c0_i32_0 : i32, i32
  }
  func.func @transform_2(%arg0: i32) -> (i32, i32) {
    %c0_i32 = arith.constant 0 : i32
    %c0_i32_0 = arith.constant 0 : i32
    %c0_i32_1 = arith.constant 0 : i32
    return %c0_i32, %c0_i32_0 : i32, i32
  }
  func.func @transform_3(%arg0: i32) -> (i32, i32) {
    %c0_i32 = arith.constant 0 : i32
    %c0_i32_0 = arith.constant 0 : i32
    %c0_i32_1 = arith.constant 0 : i32
    return %c0_i32, %c0_i32_0 : i32, i32
  }
  func.func @transform_4(%arg0: i32) -> (i32, i32) {
    %c0_i32 = arith.constant 0 : i32
    %c0_i32_0 = arith.constant 0 : i32
    %c0_i32_1 = arith.constant 0 : i32
    return %c0_i32, %c0_i32_0 : i32, i32
  }
  func.func @transform_5(%arg0: i32) -> (i32, i32, i32) {
    %c0_i32 = arith.constant 0 : i32
    %c0_i32_0 = arith.constant 0 : i32
    %c0_i32_1 = arith.constant 0 : i32
    return %arg0, %c0_i32, %c0_i32_0 : i32, i32, i32
  }
  func.func @transform_6(%arg0: i32) -> (i32, i32, i32) {
    %c0_i32 = arith.constant 0 : i32
    %c0_i32_0 = arith.constant 0 : i32
    %c0_i32_1 = arith.constant 0 : i32
    return %arg0, %c0_i32, %c0_i32_0 : i32, i32, i32
  }
}

</mosaic_0001>

<llo_original>
// kernel: tile.8
$region0: #{tile.8}
  #allocation0 [shape = 's32[1]{0}', space=sflag, size = 0x4, scoped, tag = 'scoped memory for tile.8']
  %s0 = inlined_call_operand.vmem [shape: f32[8], index: 0, kind: input, shape index: {}]
  %s1 = inlined_call_operand.vmem [shape: f32[4,8], index: 1, kind: output, shape index: {}]
  // Predicated region
  $region2: #{tile.8} parent=0 // pred_check
    _
  $region3: #{tile.8} parent=0 // pred_check_branch
    %3 = sbr.rel (0) target = $region5
  $region4: #{tile.8} parent=0 // pred_region
    _
  $region5: #{tile.8} parent=0 // pred_fallthru
    _
  %v4 = vld [vmem:[%s0] ss:$0 sm:$0xff]
  %5 = vst [vmem:[%s1] sm:$0xf] %v4

// kernel: tile.0
$region0: #{tile.0}
  %s0 = inlined_call_operand.vmem [shape: f32[4,8], index: 0, kind: input, shape index: {}]
  %s1 = inlined_call_operand.vmem [shape: f32[32,1], index: 1, kind: output, shape index: {}]
  $region1: #{tile.0} parent=0
    #allocation0 [shape = 'u8[4096]{0}', space=vmem, size = 0x1000, scoped, tag = 'scoped mem for input reshape']
    %s3 = ssub.s32 16, 1
    %v4 = vld [vmem:[%s0] sm:%s3]
    %5 = vst [vmem:[#allocation0] sm:%s3] %v4
    %v6 = vld [vmem:[#allocation0] sm:$0xf]
    %vm7 = vcmask 7168
    %8 = vst.msk [vmem:[%s1] ss:$8 sm:$0xf] %vm7, %v6
    %v9 = vld [vmem:[#allocation0] sm:$0xf]
    %10 = vrot.lane.b32.xlu0 %v9, 127
    %v11 = vpop.permute.xlu0 %10
    %vm12 = vcmask 7168
    %s13 = scalar_lea.vmem %s1, 1
    %14 = vst.msk [vmem:[%s13] ss:$8 sm:$0xf] %vm12, %v11
    %v15 = vld [vmem:[#allocation0] sm:$0xf]
    %16 = vrot.lane.b32.xlu0 %v15, 126
    %v17 = vpop.permute.xlu0 %16
    %vm18 = vcmask 7168
    %s19 = scalar_lea.vmem %s1, 2
    %20 = vst.msk [vmem:[%s19] ss:$8 sm:$0xf] %vm18, %v17
    %v21 = vld [vmem:[#allocation0] sm:$0xf]
    %22 = vrot.lane.b32.xlu0 %v21, 125
    %v23 = vpop.permute.xlu0 %22
    %vm24 = vcmask 7168
    %s25 = scalar_lea.vmem %s1, 3
    %26 = vst.msk [vmem:[%s25] ss:$8 sm:$0xf] %vm24, %v23
    %v27 = vld [vmem:[#allocation0] sm:$0xf]
    %28 = vrot.lane.b32.xlu0 %v27, 124
    %v29 = vpop.permute.xlu0 %28
    %vm30 = vcmask 7168
    %s31 = scalar_lea.vmem %s1, 4
    %32 = vst.msk [vmem:[%s31] ss:$8 sm:$0xf] %vm30, %v29
    %v33 = vld [vmem:[#allocation0] sm:$0xf]
    %34 = vrot.lane.b32.xlu0 %v33, 123
    %v35 = vpop.permute.xlu0 %34
    %vm36 = vcmask 7168
    %s37 = scalar_lea.vmem %s1, 5
    %38 = vst.msk [vmem:[%s37] ss:$8 sm:$0xf] %vm36, %v35
    %v39 = vld [vmem:[#allocation0] sm:$0xf]
    %40 = vrot.lane.b32.xlu0 %v39, 122
    %v41 = vpop.permute.xlu0 %40
    %vm42 = vcmask 7168
    %s43 = scalar_lea.vmem %s1, 6
    %44 = vst.msk [vmem:[%s43] ss:$8 sm:$0xf] %vm42, %v41
    %v45 = vld [vmem:[#allocation0] sm:$0xf]
    %46 = vrot.lane.b32.xlu0 %v45, 121
    %v47 = vpop.permute.xlu0 %46
    %vm48 = vcmask 7168
    %s49 = scalar_lea.vmem %s1, 7
    %50 = vst.msk [vmem:[%s49] ss:$8 sm:$0xf] %vm48, %v47

// kernel: conv_up_block.4
$region0: #{conv_up_block.4}
  #allocation0 [shape = 'u32[]', space=smem, size = 0x4, offset = 0x4, fixed_abs, tag = 'smem constant byte address 0x4 - core index']
  #allocation1 [shape = 'u32[72,128]{1,0:T(1,128)}', space=vmem, size = 0x9000, scoped, tag = 'internal scratch']
  %s0 = inlined_call_operand.vmem [shape: bf16[16,512], index: 0, kind: input, shape index: {}]
  %s1 = inlined_call_operand.vmem [shape: bf16[32,16], index: 1, kind: input, shape index: {}]
  %s2 = inlined_call_operand.vmem [shape: f32[32,1], index: 2, kind: input, shape index: {}]
  %s3 = inlined_call_operand.vmem [shape: bf16[32,512], index: 3, kind: output, shape index: {}]
  %s4 = sld [smem:[#allocation0]]
  $region22: #{conv_up_block.4} parent=0
    _
  %s6 = ssub.s32 1, %s4
  %s7 = scalar_select 0, %s6, %s4
  // Predicated region
  $region2: #{conv_up_block.4} parent=0 // pred_check
    _
  $region3: #{conv_up_block.4} parent=0 // pred_check_branch
    %9 = sbr.rel (0) target = $region5
  $region4: #{conv_up_block.4} parent=0 // pred_region
    _
  $region5: #{conv_up_block.4} parent=0 // pred_fallthru
    _
  // Predicated region
  $region6: #{conv_up_block.4} parent=0 // pred_check
    _
  $region7: #{conv_up_block.4} parent=0 // pred_check_branch
    %11 = sbr.rel (0) target = $region9
  $region8: #{conv_up_block.4} parent=0 // pred_region
    _
  $region9: #{conv_up_block.4} parent=0 // pred_fallthru
    _
  // Predicated region
  $region10: #{conv_up_block.4} parent=0 // pred_check
    _
  $region11: #{conv_up_block.4} parent=0 // pred_check_branch
    %13 = sbr.rel (0) target = $region13
  $region12: #{conv_up_block.4} parent=0 // pred_region
    _
  $region13: #{conv_up_block.4} parent=0 // pred_fallthru
    _
  %v15 = vld [vmem:[%s1] sm:$0xf]
  %v16 = vld [vmem:[%s1 + $0x4] sm:$0xf]
  %v17 = vld [vmem:[%s1 + $0x8] sm:$0xf]
  %v18 = vld [vmem:[%s1 + $0xc] sm:$0xf]
  %v19 = vld [vmem:[%s0] sm:$0xff]
  %v20 = vld [vmem:[%s0 + $0x8] sm:$0xff]
  %v21 = vld [vmem:[%s0 + $0x10] sm:$0xff]
  %v22 = vld [vmem:[%s0 + $0x18] sm:$0xff]
  %v23 = vld [vmem:[%s2] sm:$0xff]
  %v24 = vld [vmem:[%s2 + $0x8] sm:$0xff]
  %v25 = vld [vmem:[%s2 + $0x10] sm:$0xff]
  %v26 = vld [vmem:[%s2 + $0x18] sm:$0xff]
  %28 = vset.pattern.permute.xlu0 0
  %29 = vperm.xlu0 %28, %v23
  %v30 = vpop.permute.xlu0 %29
  %33 = vset.pattern.permute.xlu0 0
  %34 = vperm.xlu0 %33, %v24
  %v35 = vpop.permute.xlu0 %34
  %38 = vset.pattern.permute.xlu0 0
  %39 = vperm.xlu0 %38, %v25
  %v40 = vpop.permute.xlu0 %39
  %43 = vset.pattern.permute.xlu0 0
  %44 = vperm.xlu0 %43, %v26
  %v45 = vpop.permute.xlu0 %44
  %v51 = vunpack.c.l.b16 %v15
  %v52 = vunpack.c.l.b16 %v16
  %v53 = vunpack.c.l.b16 %v17
  %v54 = vunpack.c.l.b16 %v18
  %v55 = vpack.c.b16 %v52, %v51
  %v56 = vpack.c.b16 %v54, %v53
  %v61 = vunpack.c.l.b16 %v19
  %v62 = vunpack.c.h.b16 %v19
  %v63 = vunpack.c.l.b16 %v20
  %v64 = vunpack.c.h.b16 %v20
  %v65 = vunpack.c.l.b16 %v21
  %v66 = vunpack.c.h.b16 %v21
  %v67 = vunpack.c.l.b16 %v22
  %v68 = vunpack.c.h.b16 %v22
  %v69 = vpack.c.b16 %v65, %v61
  %v70 = vpack.c.b16 %v66, %v62
  %v71 = vpack.c.b16 %v67, %v63
  %v72 = vpack.c.b16 %v68, %v64
  %vm77 = vcmask 130048
  %v79 = vsel %vm77, %v55, 0
  %v82 = vsel %vm77, %v56, 0
  %84 = vmatpush.bf16.msra.mxu0 0
  %85 = vmatpush.bf16.msra.mxu0 0
  %86 = vmatpush.bf16.msra.mxu0 0
  %87 = vmatpush.bf16.msra.mxu0 0
  %88 = vmatpush.bf16.msra.mxu0 0
  %89 = vmatpush.bf16.msra.mxu0 0
  %90 = vmatpush.bf16.msra.mxu0 0
  %91 = vmatpush.bf16.msra.mxu0 %v69
  %92 = vmatmul.bf16.gmra.mxu0 %v79
  %v93 = vpop.f32.mrf.mxu0
  %v94 = vadd.f32 %v30, %v93
  %v95 = vpop.f32.mrf.mxu0
  %v96 = vadd.f32 %v35, %v95
  %97 = vmatmul.bf16.gmra.mxu0 %v82
  %v98 = vpop.f32.mrf.mxu0
  %v99 = vadd.f32 %v40, %v98
  %v100 = vpop.f32.mrf.mxu0
  %v101 = vadd.f32 %v45, %v100
  %102 = vdwg.mxu0
  %103 = vmatpush.bf16.msra.mxu0 0
  %104 = vmatpush.bf16.msra.mxu0 0
  %105 = vmatpush.bf16.msra.mxu0 0
  %106 = vmatpush.bf16.msra.mxu0 0
  %107 = vmatpush.bf16.msra.mxu0 0
  %108 = vmatpush.bf16.msra.mxu0 0
  %109 = vmatpush.bf16.msra.mxu0 0
  %110 = vmatpush.bf16.msra.mxu0 %v70
  %111 = vmatmul.bf16.gmra.mxu0 %v79
  %v112 = vpop.f32.mrf.mxu0
  %v113 = vadd.f32 %v30, %v112
  %v114 = vpop.f32.mrf.mxu0
  %v115 = vadd.f32 %v35, %v114
  %116 = vmatmul.bf16.gmra.mxu0 %v82
  %v117 = vpop.f32.mrf.mxu0
  %v118 = vadd.f32 %v40, %v117
  %v119 = vpop.f32.mrf.mxu0
  %v120 = vadd.f32 %v45, %v119
  %121 = vdwg.mxu0
  %122 = vmatpush.bf16.msra.mxu0 0
  %123 = vmatpush.bf16.msra.mxu0 0
  %124 = vmatpush.bf16.msra.mxu0 0
  %125 = vmatpush.bf16.msra.mxu0 0
  %126 = vmatpush.bf16.msra.mxu0 0
  %127 = vmatpush.bf16.msra.mxu0 0
  %128 = vmatpush.bf16.msra.mxu0 0
  %129 = vmatpush.bf16.msra.mxu0 %v71
  %130 = vmatmul.bf16.gmra.mxu0 %v79
  %v131 = vpop.f32.mrf.mxu0
  %v132 = vadd.f32 %v30, %v131
  %v133 = vpop.f32.mrf.mxu0
  %v134 = vadd.f32 %v35, %v133
  %135 = vmatmul.bf16.gmra.mxu0 %v82
  %v136 = vpop.f32.mrf.mxu0
  %v137 = vadd.f32 %v40, %v136
  %v138 = vpop.f32.mrf.mxu0
  %v139 = vadd.f32 %v45, %v138
  %140 = vdwg.mxu0
  %141 = vmatpush.bf16.msra.mxu0 0
  %142 = vmatpush.bf16.msra.mxu0 0
  %143 = vmatpush.bf16.msra.mxu0 0
  %144 = vmatpush.bf16.msra.mxu0 0
  %145 = vmatpush.bf16.msra.mxu0 0
  %146 = vmatpush.bf16.msra.mxu0 0
  %147 = vmatpush.bf16.msra.mxu0 0
  %148 = vmatpush.bf16.msra.mxu0 %v72
  %149 = vmatmul.bf16.gmra.mxu0 %v79
  %v150 = vpop.f32.mrf.mxu0
  %v151 = vadd.f32 %v30, %v150
  %v152 = vpop.f32.mrf.mxu0
  %v153 = vadd.f32 %v35, %v152
  %154 = vmatmul.bf16.gmra.mxu0 %v82
  %v155 = vpop.f32.mrf.mxu0
  %v156 = vadd.f32 %v40, %v155
  %v157 = vpop.f32.mrf.mxu0
  %v158 = vadd.f32 %v45, %v157
  %159 = vdwg.mxu0
  %v160 = vpack.c.bf16 %v113, %v94
  %v161 = vpack.c.bf16 %v151, %v132
  %v162 = vpack.c.bf16 %v115, %v96
  %v163 = vpack.c.bf16 %v153, %v134
  %v164 = vpack.c.bf16 %v118, %v99
  %v165 = vpack.c.bf16 %v156, %v137
  %v166 = vpack.c.bf16 %v120, %v101
  %v167 = vpack.c.bf16 %v158, %v139
  %168 = vst [vmem:[%s3] sm:$0xff] %v160
  %169 = vst [vmem:[%s3 + $0x8] sm:$0xff] %v161
  %170 = vst [vmem:[%s3 + $0x10] sm:$0xff] %v162
  %171 = vst [vmem:[%s3 + $0x18] sm:$0xff] %v163
  %172 = vst [vmem:[%s3 + $0x20] sm:$0xff] %v164
  %173 = vst [vmem:[%s3 + $0x28] sm:$0xff] %v165
  %174 = vst [vmem:[%s3 + $0x30] sm:$0xff] %v166
  %175 = vst [vmem:[%s3 + $0x38] sm:$0xff] %v167
  // Predicated region
  $region14: #{conv_up_block.4} parent=0 // pred_check
    _
  $region15: #{conv_up_block.4} parent=0 // pred_check_branch
    %177 = sbr.rel (0) target = $region17
  $region16: #{conv_up_block.4} parent=0 // pred_region
    _
  $region17: #{conv_up_block.4} parent=0 // pred_fallthru
    _
  // Predicated region
  $region18: #{conv_up_block.4} parent=0 // pred_check
    _
  $region19: #{conv_up_block.4} parent=0 // pred_check_branch
    %179 = sbr.rel (0) target = $region21
  $region20: #{conv_up_block.4} parent=0 // pred_region
    _
  $region21: #{conv_up_block.4} parent=0 // pred_fallthru
    _

// kernel: conv_up_block.7
$region0: #{conv_up_block.7}
  #allocation0 [shape = 'u32[]', space=smem, size = 0x4, offset = 0x4, fixed_abs, tag = 'smem constant byte address 0x4 - core index']
  #allocation1 [shape = 'u32[72,128]{1,0:T(1,128)}', space=vmem, size = 0x9000, scoped, tag = 'internal scratch']
  %s0 = inlined_call_operand.vmem [shape: bf16[2,8,1088], index: 0, kind: input, shape index: {}]
  %s1 = inlined_call_operand.vmem [shape: f32[8,1], index: 1, kind: input, shape index: {}]
  %s2 = inlined_call_operand.vmem [shape: f32[8,1], index: 2, kind: input, shape index: {}]
  %s3 = inlined_call_operand.vmem [shape: f32[2,8,1088], index: 3, kind: output, shape index: {}]
  %s4 = sld [smem:[#allocation0]]
  $region45: #{conv_up_block.7} parent=0
    _
  %s6 = ssub.s32 1, %s4
  %s7 = scalar_select 0, %s6, %s4
  loop: start=0, step=1, limit=4
  $region2: #{conv_up_block.7} parent=0 // loop_pre_header
    _
  $region3: #{conv_up_block.7} parent=0 // loop_header
    %s9 = sphi 0, %s13
    %p10 = scmp.ge.s32.totalorder %s9, 4
    %s19 = sphi 0, %s21
    %s22 = sphi 0, %s19
    %s23 = sphi 0, %s22
    %s39 = sphi 0, %s23
    %s43 = sphi 0, %s43
    %s45 = sphi 0, %s43
    %s46 = sphi 0, %s45
    %s60 = sphi 0, %s46
    %s64 = sphi 0, %s64
    %s66 = sphi 0, %s64
    %s67 = sphi 0, %s66
    %s81 = sphi 0, %s67
    %s87 = sphi 0, %s89
    %s90 = sphi 0, %s87
    %s91 = sphi 0, %s90
    %s107 = sphi 0, %s91
  $region4: #{conv_up_block.7} parent=0 // loop_header_branch
    %12 = sbr.rel (%p10) target = $region8
  $region5: #{conv_up_block.7} parent=0 // loop_body
    %s14 = ssub.s32 %s9, 1
    %s15 = ssub.s32 %s9, 2
    %s16 = sadd.s32 %s9, 1
    %s17 = ssub.s32 %s9, %s16
    %p18 = scmp.eq.s32.totalorder %s17, 0
    %s20 = sadd.s32 %s19, 1
    %s21 = scalar_select %p18, %s19, %s20
    %p24 = pneg %p18
    %p25 = scmp.eq.s32.totalorder %s9, 1
    %p26 = por %p24, %p25
    %p27 = scmp.ne.s32.totalorder %s19, %s22
    %p28 = scmp.eq.s32.totalorder %s9, 0
    %p29 = por %p27, %p28
    %p30 = scmp.ne.s32.totalorder %s19, %s22
    %p31 = scmp.eq.s32.totalorder %s14, 1
    %p32 = por %p30, %p31
    %p33 = scmp.ne.s32.totalorder %s22, %s23
    %p34 = scmp.eq.s32.totalorder %s14, 0
    %p35 = por %p33, %p34
    %p36 = scmp.ne.s32.totalorder %s22, %s23
    %p37 = scmp.eq.s32.totalorder %s15, 1
    %p38 = por %p36, %p37
    %p40 = scmp.ne.s32.totalorder %s23, %s39
    %p41 = scmp.eq.s32.totalorder %s15, 0
    %p42 = por %p40, %p41
    %s44 = sadd.s32 %s43, 1
    %p47 = scmp.eq.s32.totalorder %s9, 1
    %p48 = scmp.ne.s32.totalorder %s43, %s45
    %p49 = scmp.eq.s32.totalorder %s9, 0
    %p50 = por %p48, %p49
    %p51 = scmp.ne.s32.totalorder %s43, %s45
    %p52 = scmp.eq.s32.totalorder %s14, 1
    %p53 = por %p51, %p52
    %p54 = scmp.ne.s32.totalorder %s45, %s46
    %p55 = scmp.eq.s32.totalorder %s14, 0
    %p56 = por %p54, %p55
    %p57 = scmp.ne.s32.totalorder %s45, %s46
    %p58 = scmp.eq.s32.totalorder %s15, 1
    %p59 = por %p57, %p58
    %p61 = scmp.ne.s32.totalorder %s46, %s60
    %p62 = scmp.eq.s32.totalorder %s15, 0
    %p63 = por %p61, %p62
    %s65 = sadd.s32 %s64, 1
    %p68 = scmp.eq.s32.totalorder %s9, 1
    %p69 = scmp.ne.s32.totalorder %s64, %s66
    %p70 = scmp.eq.s32.totalorder %s9, 0
    %p71 = por %p69, %p70
    %p72 = scmp.ne.s32.totalorder %s64, %s66
    %p73 = scmp.eq.s32.totalorder %s14, 1
    %p74 = por %p72, %p73
    %p75 = scmp.ne.s32.totalorder %s66, %s67
    %p76 = scmp.eq.s32.totalorder %s14, 0
    %p77 = por %p75, %p76
    %p78 = scmp.ne.s32.totalorder %s66, %s67
    %p79 = scmp.eq.s32.totalorder %s15, 1
    %p80 = por %p78, %p79
    %p82 = scmp.ne.s32.totalorder %s67, %s81
    %p83 = scmp.eq.s32.totalorder %s15, 0
    %p84 = por %p82, %p83
    %s85 = ssub.s32 %s9, %s16
    %p86 = scmp.eq.s32.totalorder %s85, 0
    %s88 = sadd.s32 %s87, 1
    %s89 = scalar_select %p86, %s87, %s88
    %p92 = pneg %p86
    %p93 = scmp.eq.s32.totalorder %s9, 1
    %p94 = por %p92, %p93
    %p95 = scmp.ne.s32.totalorder %s87, %s90
    %p96 = scmp.eq.s32.totalorder %s9, 0
    %p97 = por %p95, %p96
    %p98 = scmp.ne.s32.totalorder %s87, %s90
    %p99 = scmp.eq.s32.totalorder %s14, 1
    %p100 = por %p98, %p99
    %p101 = scmp.ne.s32.totalorder %s90, %s91
    %p102 = scmp.eq.s32.totalorder %s14, 0
    %p103 = por %p101, %p102
    %p104 = scmp.ne.s32.totalorder %s90, %s91
    %p105 = scmp.eq.s32.totalorder %s15, 1
    %p106 = por %p104, %p105
    %p108 = scmp.ne.s32.totalorder %s91, %s107
    %p109 = scmp.eq.s32.totalorder %s15, 0
    %p110 = por %p108, %p109
    %p111 = scmp.le.s32.totalorder 1, %s9
    %p112 = scmp.lt.s32.totalorder %s9, 3
    %p113 = pnand %p111, %p112
    %p114 = pneg %p113
    // Predicated region
    $region9: #{conv_up_block.7} parent=5 // pred_check
      _
    $region10: #{conv_up_block.7} parent=5 // pred_check_branch
      %116 = sbr.rel (%p113) target = $region12
    $region11: #{conv_up_block.7} parent=5 // pred_region
      %s117 = ssub.s32 %s9, 1
      // Predicated region
      $region13: #{conv_up_block.7} parent=11 // pred_check
        %p118 = pneg %p56
      $region14: #{conv_up_block.7} parent=11 // pred_check_branch
        %120 = sbr.rel (%p118) target = $region16
      $region15: #{conv_up_block.7} parent=11 // pred_region
        _
      $region16: #{conv_up_block.7} parent=11 // pred_fallthru
        _
      // Predicated region
      $region17: #{conv_up_block.7} parent=11 // pred_check
        %p121 = pneg %p77
      $region18: #{conv_up_block.7} parent=11 // pred_check_branch
        %123 = sbr.rel (%p121) target = $region20
      $region19: #{conv_up_block.7} parent=11 // pred_region
        _
      $region20: #{conv_up_block.7} parent=11 // pred_fallthru
        _
    $region12: #{conv_up_block.7} parent=5 // pred_fallthru
      _
    %p124 = scmp.lt.s32.totalorder %s9, 2
    // Predicated region
    $region21: #{conv_up_block.7} parent=5 // pred_check
      %p125 = pneg %p124
    $region22: #{conv_up_block.7} parent=5 // pred_check_branch
      %127 = sbr.rel (%p125) target = $region24
    $region23: #{conv_up_block.7} parent=5 // pred_region
      // Predicated region
      $region25: #{conv_up_block.7} parent=23 // pred_check
        %p128 = pneg %p29
      $region26: #{conv_up_block.7} parent=23 // pred_check_branch
        %130 = sbr.rel (%p128) target = $region28
      $region27: #{conv_up_block.7} parent=23 // pred_region
        %p131 = scmp.lt.s32.totalorder %s9, 1
        %s132 = scalar_select %p131, %s9, 1
        %s133 = smul.addr %s132, 9
        %s134 = smul.addr %s133, 4
        %s135 = scalar_lea.vmem %s0, %s134
      $region28: #{conv_up_block.7} parent=23 // pred_fallthru
        _
    $region24: #{conv_up_block.7} parent=5 // pred_fallthru
      _
    %p136 = scmp.le.s32.totalorder 1, %s9
    %p137 = scmp.lt.s32.totalorder %s9, 3
    %p138 = pnand %p136, %p137
    %p139 = pneg %p138
    // Predicated region
    $region29: #{conv_up_block.7} parent=5 // pred_check
      _
    $region30: #{conv_up_block.7} parent=5 // pred_check_branch
      %141 = sbr.rel (%p138) target = $region32
    $region31: #{conv_up_block.7} parent=5 // pred_region
      %s142 = ssub.s32 %s9, 1
      %p143 = scmp.lt.s32.totalorder %s14, 1
      %s144 = scalar_select %p143, %s14, 1
      %s145 = smul.addr %s144, 9
      %s146 = smul.addr %s145, 4
      %s147 = scalar_lea.vmem %s0, %s146
      %p148 = pneg %p35
      %p149 = pneg %p32
      %p150 = pneg %p56
      %p151 = pneg %p53
      %p152 = pneg %p77
      %p153 = pneg %p74
      %p154 = pneg %p103
      %p155 = pneg %p100
      %p156 = scmp.lt.s32.totalorder %s14, 1
      %s157 = scalar_select %p156, %s14, 1
      %s158 = smul.addr %s157, 9
      %s159 = smul.addr %s158, 8
      %s160 = scalar_lea.vmem %s3, %s159
      %p161 = scmp.lt.s32.totalorder %s14, 1
      %s162 = scalar_select %p161, %s14, 1
      %s163 = smul.addr %s162, 9
      %s164 = smul.addr %s163, 4
      %s165 = scalar_lea.vmem %s0, %s164
      %p166 = scmp.lt.s32.totalorder %s14, 1
      %s167 = scalar_select %p166, %s14, 1
      %s168 = smul.addr %s167, 9
      %s169 = smul.addr %s168, 8
      %s170 = scalar_lea.vmem %s3, %s169
      %v171 = vld [vmem:[%s165] sm:$0xff]
      %v172 = vld [vmem:[%s165 + $0x8] sm:$0xff]
      %v173 = vld [vmem:[%s165 + $0x10] sm:$0xff]
      %v174 = vld [vmem:[%s165 + $0x18] sm:$0xff]
      %v175 = vld [vmem:[%s165 + $0x20] sm:$0xf]
      %v176 = vunpack.c.l.bf16 %v171
      %v177 = vunpack.c.h.bf16 %v171
      %v178 = vunpack.c.l.bf16 %v172
      %v179 = vunpack.c.h.bf16 %v172
      %v180 = vunpack.c.l.bf16 %v173
      %v181 = vunpack.c.h.bf16 %v173
      %v182 = vunpack.c.l.bf16 %v174
      %v183 = vunpack.c.h.bf16 %v174
      %v184 = vunpack.c.l.bf16 %v175
      %v185 = vld [vmem:[%s1] sm:$0xff]
      %187 = vset.pattern.permute.xlu0 0
      %188 = vperm.xlu0 %187, %v185
      %v189 = vpop.permute.xlu0 %188
      %v191 = vmul.f32 %v176, %v189
      %v192 = vmul.f32 %v177, %v189
      %v193 = vmul.f32 %v178, %v189
      %v194 = vmul.f32 %v179, %v189
      %v195 = vmul.f32 %v180, %v189
      %v196 = vmul.f32 %v181, %v189
      %v197 = vmul.f32 %v182, %v189
      %v198 = vmul.f32 %v183, %v189
      %v199 = vmul.f32 %v184, %v189
      %v200 = vld [vmem:[%s2] sm:$0xff]
      %202 = vset.pattern.permute.xlu0 0
      %203 = vperm.xlu0 %202, %v200
      %v204 = vpop.permute.xlu0 %203
      %v206 = vadd.f32 %v191, %v204
      %v207 = vadd.f32 %v192, %v204
      %v208 = vadd.f32 %v193, %v204
      %v209 = vadd.f32 %v194, %v204
      %v210 = vadd.f32 %v195, %v204
      %v211 = vadd.f32 %v196, %v204
      %v212 = vadd.f32 %v197, %v204
      %v213 = vadd.f32 %v198, %v204
      %v214 = vadd.f32 %v199, %v204
      %215 = vst [vmem:[%s170] sm:$0xff] %v206
      %216 = vst [vmem:[%s170 + $0x8] sm:$0xff] %v207
      %217 = vst [vmem:[%s170 + $0x10] sm:$0xff] %v208
      %218 = vst [vmem:[%s170 + $0x18] sm:$0xff] %v209
      %219 = vst [vmem:[%s170 + $0x20] sm:$0xff] %v210
      %220 = vst [vmem:[%s170 + $0x28] sm:$0xff] %v211
      %221 = vst [vmem:[%s170 + $0x30] sm:$0xff] %v212
      %222 = vst [vmem:[%s170 + $0x38] sm:$0xff] %v213
      %vm223 = vcmask 523264
      %224 = vst.msk [vmem:[%s170 + $0x40] sm:$0xff] %vm223, %v214
      %p225 = scmp.lt.s32.totalorder %s14, 1
      %s226 = scalar_select %p225, %s14, 1
      %s227 = smul.addr %s226, 9
      %s228 = smul.addr %s227, 8
      %s229 = scalar_lea.vmem %s3, %s228
      // Predicated region
      $region33: #{conv_up_block.7} parent=31 // pred_check
        %p230 = pneg %p100
      $region34: #{conv_up_block.7} parent=31 // pred_check_branch
        %232 = sbr.rel (%p230) target = $region36
      $region35: #{conv_up_block.7} parent=31 // pred_region
        _
      $region36: #{conv_up_block.7} parent=31 // pred_fallthru
        _
    $region32: #{conv_up_block.7} parent=5 // pred_fallthru
      _
    %p233 = scmp.le.s32.totalorder 2, %s9
    // Predicated region
    $region37: #{conv_up_block.7} parent=5 // pred_check
      %p234 = pneg %p233
    $region38: #{conv_up_block.7} parent=5 // pred_check_branch
      %236 = sbr.rel (%p234) target = $region40
    $region39: #{conv_up_block.7} parent=5 // pred_region
      %s237 = ssub.s32 %s9, 2
      // Predicated region
      $region41: #{conv_up_block.7} parent=39 // pred_check
        %p238 = pneg %p106
      $region42: #{conv_up_block.7} parent=39 // pred_check_branch
        %240 = sbr.rel (%p238) target = $region44
      $region43: #{conv_up_block.7} parent=39 // pred_region
        %p241 = scmp.lt.s32.totalorder %s15, 1
        %s242 = scalar_select %p241, %s15, 1
        %s243 = smul.addr %s242, 9
        %s244 = smul.addr %s243, 8
        %s245 = scalar_lea.vmem %s3, %s244
      $region44: #{conv_up_block.7} parent=39 // pred_fallthru
        _
    $region40: #{conv_up_block.7} parent=5 // pred_fallthru
      _
  $region6: #{conv_up_block.7} parent=0 // loop_footer
    %s13 = sadd.s32 1, %s9
  $region7: #{conv_up_block.7} parent=0 // loop_footer_branch
    %8 = sbr.rel target = $region3
  $region8: #{conv_up_block.7} parent=0 // loop_exit
    _

// kernel: conv_up_block.6
$region0: #{conv_up_block.6}
  #allocation0 [shape = 'u32[]', space=smem, size = 0x4, offset = 0x4, fixed_abs, tag = 'smem constant byte address 0x4 - core index']
  #allocation1 [shape = 'u32[72,128]{1,0:T(1,128)}', space=vmem, size = 0x9000, scoped, tag = 'internal scratch']
  #allocation2 [shape = 'bf16[8,1280]{1,0:T(8,128)(2,1)}', space=vmem, size = 0x5000, scoped, tag = 'scratch operand']
  #allocation3 [shape = 'bf16[72,1088]{1,0:T(8,128)(2,1)}', space=vmem, size = 0x28800, scoped, tag = 'scratch operand']
  %s0 = inlined_call_operand.vmem [shape: bf16[2,8,1088], index: 0, kind: input, shape index: {}]
  %s1 = inlined_call_operand.vmem [shape: f32[8,1], index: 1, kind: input, shape index: {}]
  %s2 = inlined_call_operand.vmem [shape: f32[8,1], index: 2, kind: input, shape index: {}]
  %s3 = inlined_call_operand.vmem [shape: bf16[8,72], index: 3, kind: input, shape index: {}]
  %s4 = inlined_call_operand.vmem [shape: f32[8,1], index: 4, kind: input, shape index: {}]
  %s5 = inlined_call_operand.vmem [shape: bf16[2,8,1088], index: 5, kind: output, shape index: {0}]
  %s6 = inlined_call_operand.vmem [shape: f32[2,8,2], index: 6, kind: output, shape index: {1}]
  %7 = xla_tuple %s5, %s6
  %s8 = sld [smem:[#allocation0]]
  $region61: #{conv_up_block.6} parent=0
    _
  %s10 = ssub.s32 1, %s8
  %s11 = scalar_select 0, %s10, %s8
  loop: start=0, step=1, limit=4
  $region2: #{conv_up_block.6} parent=0 // loop_pre_header
    _
  $region3: #{conv_up_block.6} parent=0 // loop_header
    %s13 = sphi 0, %s17
    %p14 = scmp.ge.s32.totalorder %s13, 4
    %s23 = sphi 0, %s25
    %s26 = sphi 0, %s23
    %s27 = sphi 0, %s26
    %s43 = sphi 0, %s27
    %s47 = sphi 0, %s47
    %s49 = sphi 0, %s47
    %s50 = sphi 0, %s49
    %s64 = sphi 0, %s50
    %s68 = sphi 0, %s68
    %s70 = sphi 0, %s68
    %s71 = sphi 0, %s70
    %s85 = sphi 0, %s71
    %s89 = sphi 0, %s89
    %s91 = sphi 0, %s89
    %s92 = sphi 0, %s91
    %s106 = sphi 0, %s92
    %s110 = sphi 0, %s110
    %s112 = sphi 0, %s110
    %s113 = sphi 0, %s112
    %s127 = sphi 0, %s113
    %s133 = sphi 0, %s135
    %s136 = sphi 0, %s133
    %s137 = sphi 0, %s136
    %s153 = sphi 0, %s137
    %s159 = sphi 0, %s161
    %s162 = sphi 0, %s159
    %s163 = sphi 0, %s162
    %s179 = sphi 0, %s163
  $region4: #{conv_up_block.6} parent=0 // loop_header_branch
    %16 = sbr.rel (%p14) target = $region8
  $region5: #{conv_up_block.6} parent=0 // loop_body
    %s18 = ssub.s32 %s13, 1
    %s19 = ssub.s32 %s13, 2
    %s20 = sadd.s32 %s13, 1
    %s21 = ssub.s32 %s13, %s20
    %p22 = scmp.eq.s32.totalorder %s21, 0
    %s24 = sadd.s32 %s23, 1
    %s25 = scalar_select %p22, %s23, %s24
    %p28 = pneg %p22
    %p29 = scmp.eq.s32.totalorder %s13, 1
    %p30 = por %p28, %p29
    %p31 = scmp.ne.s32.totalorder %s23, %s26
    %p32 = scmp.eq.s32.totalorder %s13, 0
    %p33 = por %p31, %p32
    %p34 = scmp.ne.s32.totalorder %s23, %s26
    %p35 = scmp.eq.s32.totalorder %s18, 1
    %p36 = por %p34, %p35
    %p37 = scmp.ne.s32.totalorder %s26, %s27
    %p38 = scmp.eq.s32.totalorder %s18, 0
    %p39 = por %p37, %p38
    %p40 = scmp.ne.s32.totalorder %s26, %s27
    %p41 = scmp.eq.s32.totalorder %s19, 1
    %p42 = por %p40, %p41
    %p44 = scmp.ne.s32.totalorder %s27, %s43
    %p45 = scmp.eq.s32.totalorder %s19, 0
    %p46 = por %p44, %p45
    %s48 = sadd.s32 %s47, 1
    %p51 = scmp.eq.s32.totalorder %s13, 1
    %p52 = scmp.ne.s32.totalorder %s47, %s49
    %p53 = scmp.eq.s32.totalorder %s13, 0
    %p54 = por %p52, %p53
    %p55 = scmp.ne.s32.totalorder %s47, %s49
    %p56 = scmp.eq.s32.totalorder %s18, 1
    %p57 = por %p55, %p56
    %p58 = scmp.ne.s32.totalorder %s49, %s50
    %p59 = scmp.eq.s32.totalorder %s18, 0
    %p60 = por %p58, %p59
    %p61 = scmp.ne.s32.totalorder %s49, %s50
    %p62 = scmp.eq.s32.totalorder %s19, 1
    %p63 = por %p61, %p62
    %p65 = scmp.ne.s32.totalorder %s50, %s64
    %p66 = scmp.eq.s32.totalorder %s19, 0
    %p67 = por %p65, %p66
    %s69 = sadd.s32 %s68, 1
    %p72 = scmp.eq.s32.totalorder %s13, 1
    %p73 = scmp.ne.s32.totalorder %s68, %s70
    %p74 = scmp.eq.s32.totalorder %s13, 0
    %p75 = por %p73, %p74
    %p76 = scmp.ne.s32.totalorder %s68, %s70
    %p77 = scmp.eq.s32.totalorder %s18, 1
    %p78 = por %p76, %p77
    %p79 = scmp.ne.s32.totalorder %s70, %s71
    %p80 = scmp.eq.s32.totalorder %s18, 0
    %p81 = por %p79, %p80
    %p82 = scmp.ne.s32.totalorder %s70, %s71
    %p83 = scmp.eq.s32.totalorder %s19, 1
    %p84 = por %p82, %p83
    %p86 = scmp.ne.s32.totalorder %s71, %s85
    %p87 = scmp.eq.s32.totalorder %s19, 0
    %p88 = por %p86, %p87
    %s90 = sadd.s32 %s89, 1
    %p93 = scmp.eq.s32.totalorder %s13, 1
    %p94 = scmp.ne.s32.totalorder %s89, %s91
    %p95 = scmp.eq.s32.totalorder %s13, 0
    %p96 = por %p94, %p95
    %p97 = scmp.ne.s32.totalorder %s89, %s91
    %p98 = scmp.eq.s32.totalorder %s18, 1
    %p99 = por %p97, %p98
    %p100 = scmp.ne.s32.totalorder %s91, %s92
    %p101 = scmp.eq.s32.totalorder %s18, 0
    %p102 = por %p100, %p101
    %p103 = scmp.ne.s32.totalorder %s91, %s92
    %p104 = scmp.eq.s32.totalorder %s19, 1
    %p105 = por %p103, %p104
    %p107 = scmp.ne.s32.totalorder %s92, %s106
    %p108 = scmp.eq.s32.totalorder %s19, 0
    %p109 = por %p107, %p108
    %s111 = sadd.s32 %s110, 1
    %p114 = scmp.eq.s32.totalorder %s13, 1
    %p115 = scmp.ne.s32.totalorder %s110, %s112
    %p116 = scmp.eq.s32.totalorder %s13, 0
    %p117 = por %p115, %p116
    %p118 = scmp.ne.s32.totalorder %s110, %s112
    %p119 = scmp.eq.s32.totalorder %s18, 1
    %p120 = por %p118, %p119
    %p121 = scmp.ne.s32.totalorder %s112, %s113
    %p122 = scmp.eq.s32.totalorder %s18, 0
    %p123 = por %p121, %p122
    %p124 = scmp.ne.s32.totalorder %s112, %s113
    %p125 = scmp.eq.s32.totalorder %s19, 1
    %p126 = por %p124, %p125
    %p128 = scmp.ne.s32.totalorder %s113, %s127
    %p129 = scmp.eq.s32.totalorder %s19, 0
    %p130 = por %p128, %p129
    %s131 = ssub.s32 %s13, %s20
    %p132 = scmp.eq.s32.totalorder %s131, 0
    %s134 = sadd.s32 %s133, 1
    %s135 = scalar_select %p132, %s133, %s134
    %p138 = pneg %p132
    %p139 = scmp.eq.s32.totalorder %s13, 1
    %p140 = por %p138, %p139
    %p141 = scmp.ne.s32.totalorder %s133, %s136
    %p142 = scmp.eq.s32.totalorder %s13, 0
    %p143 = por %p141, %p142
    %p144 = scmp.ne.s32.totalorder %s133, %s136
    %p145 = scmp.eq.s32.totalorder %s18, 1
    %p146 = por %p144, %p145
    %p147 = scmp.ne.s32.totalorder %s136, %s137
    %p148 = scmp.eq.s32.totalorder %s18, 0
    %p149 = por %p147, %p148
    %p150 = scmp.ne.s32.totalorder %s136, %s137
    %p151 = scmp.eq.s32.totalorder %s19, 1
    %p152 = por %p150, %p151
    %p154 = scmp.ne.s32.totalorder %s137, %s153
    %p155 = scmp.eq.s32.totalorder %s19, 0
    %p156 = por %p154, %p155
    %s157 = ssub.s32 %s13, %s20
    %p158 = scmp.eq.s32.totalorder %s157, 0
    %s160 = sadd.s32 %s159, 1
    %s161 = scalar_select %p158, %s159, %s160
    %p164 = pneg %p158
    %p165 = scmp.eq.s32.totalorder %s13, 1
    %p166 = por %p164, %p165
    %p167 = scmp.ne.s32.totalorder %s159, %s162
    %p168 = scmp.eq.s32.totalorder %s13, 0
    %p169 = por %p167, %p168
    %p170 = scmp.ne.s32.totalorder %s159, %s162
    %p171 = scmp.eq.s32.totalorder %s18, 1
    %p172 = por %p170, %p171
    %p173 = scmp.ne.s32.totalorder %s162, %s163
    %p174 = scmp.eq.s32.totalorder %s18, 0
    %p175 = por %p173, %p174
    %p176 = scmp.ne.s32.totalorder %s162, %s163
    %p177 = scmp.eq.s32.totalorder %s19, 1
    %p178 = por %p176, %p177
    %p180 = scmp.ne.s32.totalorder %s163, %s179
    %p181 = scmp.eq.s32.totalorder %s19, 0
    %p182 = por %p180, %p181
    %p183 = scmp.le.s32.totalorder 1, %s13
    %p184 = scmp.lt.s32.totalorder %s13, 3
    %p185 = pnand %p183, %p184
    %p186 = pneg %p185
    // Predicated region
    $region9: #{conv_up_block.6} parent=5 // pred_check
      _
    $region10: #{conv_up_block.6} parent=5 // pred_check_branch
      %188 = sbr.rel (%p185) target = $region12
    $region11: #{conv_up_block.6} parent=5 // pred_region
      %s189 = ssub.s32 %s13, 1
      // Predicated region
      $region13: #{conv_up_block.6} parent=11 // pred_check
        %p190 = pneg %p60
      $region14: #{conv_up_block.6} parent=11 // pred_check_branch
        %192 = sbr.rel (%p190) target = $region16
      $region15: #{conv_up_block.6} parent=11 // pred_region
        _
      $region16: #{conv_up_block.6} parent=11 // pred_fallthru
        _
      // Predicated region
      $region17: #{conv_up_block.6} parent=11 // pred_check
        %p193 = pneg %p81
      $region18: #{conv_up_block.6} parent=11 // pred_check_branch
        %195 = sbr.rel (%p193) target = $region20
      $region19: #{conv_up_block.6} parent=11 // pred_region
        _
      $region20: #{conv_up_block.6} parent=11 // pred_fallthru
        _
      // Predicated region
      $region21: #{conv_up_block.6} parent=11 // pred_check
        %p196 = pneg %p102
      $region22: #{conv_up_block.6} parent=11 // pred_check_branch
        %198 = sbr.rel (%p196) target = $region24
      $region23: #{conv_up_block.6} parent=11 // pred_region
        _
      $region24: #{conv_up_block.6} parent=11 // pred_fallthru
        _
      // Predicated region
      $region25: #{conv_up_block.6} parent=11 // pred_check
        %p199 = pneg %p123
      $region26: #{conv_up_block.6} parent=11 // pred_check_branch
        %201 = sbr.rel (%p199) target = $region28
      $region27: #{conv_up_block.6} parent=11 // pred_region
        _
      $region28: #{conv_up_block.6} parent=11 // pred_fallthru
        _
    $region12: #{conv_up_block.6} parent=5 // pred_fallthru
      _
    %p202 = scmp.lt.s32.totalorder %s13, 2
    // Predicated region
    $region29: #{conv_up_block.6} parent=5 // pred_check
      %p203 = pneg %p202
    $region30: #{conv_up_block.6} parent=5 // pred_check_branch
      %205 = sbr.rel (%p203) target = $region32
    $region31: #{conv_up_block.6} parent=5 // pred_region
      // Predicated region
      $region33: #{conv_up_block.6} parent=31 // pred_check
        %p206 = pneg %p33
      $region34: #{conv_up_block.6} parent=31 // pred_check_branch
        %208 = sbr.rel (%p206) target = $region36
      $region35: #{conv_up_block.6} parent=31 // pred_region
        %p209 = scmp.lt.s32.totalorder %s13, 1
        %s210 = scalar_select %p209, %s13, 1
        %s211 = smul.addr %s210, 9
        %s212 = smul.addr %s211, 4
        %s213 = scalar_lea.vmem %s0, %s212
      $region36: #{conv_up_block.6} parent=31 // pred_fallthru
        _
    $region32: #{conv_up_block.6} parent=5 // pred_fallthru
      _
    %p214 = scmp.le.s32.totalorder 1, %s13
    %p215 = scmp.lt.s32.totalorder %s13, 3
    %p216 = pnand %p214, %p215
    %p217 = pneg %p216
    // Predicated region
    $region37: #{conv_up_block.6} parent=5 // pred_check
      _
    $region38: #{conv_up_block.6} parent=5 // pred_check_branch
      %219 = sbr.rel (%p216) target = $region40
    $region39: #{conv_up_block.6} parent=5 // pred_region
      %s220 = ssub.s32 %s13, 1
      %p221 = scmp.lt.s32.totalorder %s18, 1
      %s222 = scalar_select %p221, %s18, 1
      %s223 = smul.addr %s222, 9
      %s224 = smul.addr %s223, 4
      %s225 = scalar_lea.vmem %s0, %s224
      %p226 = pneg %p39
      %p227 = pneg %p36
      %p228 = pneg %p60
      %p229 = pneg %p57
      %p230 = pneg %p81
      %p231 = pneg %p78
      %p232 = pneg %p102
      %p233 = pneg %p99
      %p234 = pneg %p123
      %p235 = pneg %p120
      %p236 = pneg %p149
      %p237 = pneg %p146
      %p238 = scmp.lt.s32.totalorder %s18, 1
      %s239 = scalar_select %p238, %s18, 1
      %s240 = smul.addr %s239, 9
      %s241 = smul.addr %s240, 4
      %s242 = scalar_lea.vmem %s5, %s241
      %p243 = pneg %p175
      %p244 = pneg %p172
      %p245 = scmp.lt.s32.totalorder %s18, 1
      %s246 = scalar_select %p245, %s18, 1
      %s247 = smul.addr %s246, 8
      %s248 = scalar_lea.vmem %s6, %s247
      %p249 = scmp.lt.s32.totalorder %s18, 1
      %s250 = scalar_select %p249, %s18, 1
      %s251 = smul.addr %s250, 9
      %s252 = smul.addr %s251, 4
      %s253 = scalar_lea.vmem %s0, %s252
      %p254 = scmp.lt.s32.totalorder %s18, 1
      %s255 = scalar_select %p254, %s18, 1
      %s256 = smul.addr %s255, 9
      %s257 = smul.addr %s256, 4
      %s258 = scalar_lea.vmem %s5, %s257
      %p259 = scmp.lt.s32.totalorder %s18, 1
      %s260 = scalar_select %p259, %s18, 1
      %s261 = smul.addr %s260, 8
      %s262 = scalar_lea.vmem %s6, %s261
      %v264 = vld [vmem:[%s253] sm:$0xff]
      %v265 = vld [vmem:[%s253 + $0x8] sm:$0xff]
      %v266 = vld [vmem:[%s253 + $0x10] sm:$0xff]
      %v267 = vld [vmem:[%s253 + $0x18] sm:$0xff]
      %v268 = vld [vmem:[%s253 + $0x20] sm:$0xf]
      %v269 = vunpack.c.l.bf16 %v264
      %v270 = vunpack.c.h.bf16 %v264
      %v271 = vunpack.c.l.bf16 %v265
      %v272 = vunpack.c.h.bf16 %v265
      %v273 = vunpack.c.l.bf16 %v266
      %v274 = vunpack.c.h.bf16 %v266
      %v275 = vunpack.c.l.bf16 %v267
      %v276 = vunpack.c.h.bf16 %v267
      %v277 = vunpack.c.l.bf16 %v268
      %v278 = vld [vmem:[%s1] sm:$0xff]
      %280 = vset.pattern.permute.xlu0 0
      %281 = vperm.xlu0 %280, %v278
      %v282 = vpop.permute.xlu0 %281
      %v284 = vmul.f32 %v269, %v282
      %v285 = vmul.f32 %v270, %v282
      %v286 = vmul.f32 %v271, %v282
      %v287 = vmul.f32 %v272, %v282
      %v288 = vmul.f32 %v273, %v282
      %v289 = vmul.f32 %v274, %v282
      %v290 = vmul.f32 %v275, %v282
      %v291 = vmul.f32 %v276, %v282
      %v292 = vmul.f32 %v277, %v282
      %v293 = vld [vmem:[%s2] sm:$0xff]
      %295 = vset.pattern.permute.xlu0 0
      %296 = vperm.xlu0 %295, %v293
      %v297 = vpop.permute.xlu0 %296
      %v299 = vadd.f32 %v284, %v297
      %v300 = vadd.f32 %v285, %v297
      %v301 = vadd.f32 %v286, %v297
      %v302 = vadd.f32 %v287, %v297
      %v303 = vadd.f32 %v288, %v297
      %v304 = vadd.f32 %v289, %v297
      %v305 = vadd.f32 %v290, %v297
      %v306 = vadd.f32 %v291, %v297
      %v307 = vadd.f32 %v292, %v297
      %v308 = vlaneseq
      %v309 = vand.u32 %v308, 127
      %v310 = vadd.s32 %v309, 128
      %v311 = vadd.s32 %v309, 256
      %v312 = vadd.s32 %v309, 384
      %v313 = vadd.s32 %v309, 512
      %v314 = vadd.s32 %v309, 640
      %v315 = vadd.s32 %v309, 768
      %v316 = vadd.s32 %v309, 896
      %v317 = vadd.s32 %v309, 1024
      %vm318 = vcmp.lt.s32.totalorder %v309, 0
      %v319 = vsub.s32 0, %v309
      %v320 = vsel %vm318, %v319, %v309
      %v321 = vand.u32 %v320, 65535
      %v322 = vshrl.u32 %v320, 16
      %v324 = vmul.u32 %v321, 61681
      %v325 = vmul.u32 %v321, 61680
      %v326 = vmul.u32 %v322, 61681
      %v327 = vmul.u32 %v322, 61680
      %v328 = vshll.u32 %v325, 16
      %v329 = vshrl.u32 %v325, 16
      %v330 = vshll.u32 %v326, 16
      %v331 = vshrl.u32 %v326, 16
      %vm332 = vc.u32 %v324, %v328
      %v333 = vsel %vm332, 1, 0
      %v334 = vadd.s32 %v324, %v328
      %v335 = vadd.s32 %v327, %v333
      %vm336 = vc.u32 %v334, %v330
      %v337 = vsel %vm336, 1, 0
      %v338 = vadd.s32 %v334, %v330
      %v339 = vadd.s32 %v335, %v337
      %v340 = vadd.s32 %v339, %v329
      %v341 = vadd.s32 %v340, %v331
      %v342 = vshrl.u32 %v341, 5
      %v343 = vmul.u32 %v342, 34
      %v344 = vsub.s32 %v320, %v343
      %v345 = vsub.s32 0, %v344
      %v346 = vsel %vm318, %v345, %v344
      %vm347 = vcmp.lt.s32.totalorder %v310, 0
      %v348 = vsub.s32 0, %v310
      %v349 = vsel %vm347, %v348, %v310
      %v350 = vand.u32 %v349, 65535
      %v351 = vshrl.u32 %v349, 16
      %v353 = vmul.u32 %v350, 61681
      %v354 = vmul.u32 %v350, 61680
      %v355 = vmul.u32 %v351, 61681
      %v356 = vmul.u32 %v351, 61680
      %v357 = vshll.u32 %v354, 16
      %v358 = vshrl.u32 %v354, 16
      %v359 = vshll.u32 %v355, 16
      %v360 = vshrl.u32 %v355, 16
      %vm361 = vc.u32 %v353, %v357
      %v362 = vsel %vm361, 1, 0
      %v363 = vadd.s32 %v353, %v357
      %v364 = vadd.s32 %v356, %v362
      %vm365 = vc.u32 %v363, %v359
      %v366 = vsel %vm365, 1, 0
      %v367 = vadd.s32 %v363, %v359
      %v368 = vadd.s32 %v364, %v366
      %v369 = vadd.s32 %v368, %v358
      %v370 = vadd.s32 %v369, %v360
      %v371 = vshrl.u32 %v370, 5
      %v372 = vmul.u32 %v371, 34
      %v373 = vsub.s32 %v349, %v372
      %v374 = vsub.s32 0, %v373
      %v375 = vsel %vm347, %v374, %v373
      %vm376 = vcmp.lt.s32.totalorder %v311, 0
      %v377 = vsub.s32 0, %v311
      %v378 = vsel %vm376, %v377, %v311
      %v379 = vand.u32 %v378, 65535
      %v380 = vshrl.u32 %v378, 16
      %v382 = vmul.u32 %v379, 61681
      %v383 = vmul.u32 %v379, 61680
      %v384 = vmul.u32 %v380, 61681
      %v385 = vmul.u32 %v380, 61680
      %v386 = vshll.u32 %v383, 16
      %v387 = vshrl.u32 %v383, 16
      %v388 = vshll.u32 %v384, 16
      %v389 = vshrl.u32 %v384, 16
      %vm390 = vc.u32 %v382, %v386
      %v391 = vsel %vm390, 1, 0
      %v392 = vadd.s32 %v382, %v386
      %v393 = vadd.s32 %v385, %v391
      %vm394 = vc.u32 %v392, %v388
      %v395 = vsel %vm394, 1, 0
      %v396 = vadd.s32 %v392, %v388
      %v397 = vadd.s32 %v393, %v395
      %v398 = vadd.s32 %v397, %v387
      %v399 = vadd.s32 %v398, %v389
      %v400 = vshrl.u32 %v399, 5
      %v401 = vmul.u32 %v400, 34
      %v402 = vsub.s32 %v378, %v401
      %v403 = vsub.s32 0, %v402
      %v404 = vsel %vm376, %v403, %v402
      %vm405 = vcmp.lt.s32.totalorder %v312, 0
      %v406 = vsub.s32 0, %v312
      %v407 = vsel %vm405, %v406, %v312
      %v408 = vand.u32 %v407, 65535
      %v409 = vshrl.u32 %v407, 16
      %v411 = vmul.u32 %v408, 61681
      %v412 = vmul.u32 %v408, 61680
      %v413 = vmul.u32 %v409, 61681
      %v414 = vmul.u32 %v409, 61680
      %v415 = vshll.u32 %v412, 16
      %v416 = vshrl.u32 %v412, 16
      %v417 = vshll.u32 %v413, 16
      %v418 = vshrl.u32 %v413, 16
      %vm419 = vc.u32 %v411, %v415
      %v420 = vsel %vm419, 1, 0
      %v421 = vadd.s32 %v411, %v415
      %v422 = vadd.s32 %v414, %v420
      %vm423 = vc.u32 %v421, %v417
      %v424 = vsel %vm423, 1, 0
      %v425 = vadd.s32 %v421, %v417
      %v426 = vadd.s32 %v422, %v424
      %v427 = vadd.s32 %v426, %v416
      %v428 = vadd.s32 %v427, %v418
      %v429 = vshrl.u32 %v428, 5
      %v430 = vmul.u32 %v429, 34
      %v431 = vsub.s32 %v407, %v430
      %v432 = vsub.s32 0, %v431
      %v433 = vsel %vm405, %v432, %v431
      %vm434 = vcmp.lt.s32.totalorder %v313, 0
      %v435 = vsub.s32 0, %v313
      %v436 = vsel %vm434, %v435, %v313
      %v437 = vand.u32 %v436, 65535
      %v438 = vshrl.u32 %v436, 16
      %v440 = vmul.u32 %v437, 61681
      %v441 = vmul.u32 %v437, 61680
      %v442 = vmul.u32 %v438, 61681
      %v443 = vmul.u32 %v438, 61680
      %v444 = vshll.u32 %v441, 16
      %v445 = vshrl.u32 %v441, 16
      %v446 = vshll.u32 %v442, 16
      %v447 = vshrl.u32 %v442, 16
      %vm448 = vc.u32 %v440, %v444
      %v449 = vsel %vm448, 1, 0
      %v450 = vadd.s32 %v440, %v444
      %v451 = vadd.s32 %v443, %v449
      %vm452 = vc.u32 %v450, %v446
      %v453 = vsel %vm452, 1, 0
      %v454 = vadd.s32 %v450, %v446
      %v455 = vadd.s32 %v451, %v453
      %v456 = vadd.s32 %v455, %v445
      %v457 = vadd.s32 %v456, %v447
      %v458 = vshrl.u32 %v457, 5
      %v459 = vmul.u32 %v458, 34
      %v460 = vsub.s32 %v436, %v459
      %v461 = vsub.s32 0, %v460
      %v462 = vsel %vm434, %v461, %v460
      %vm463 = vcmp.lt.s32.totalorder %v314, 0
      %v464 = vsub.s32 0, %v314
      %v465 = vsel %vm463, %v464, %v314
      %v466 = vand.u32 %v465, 65535
      %v467 = vshrl.u32 %v465, 16
      %v469 = vmul.u32 %v466, 61681
      %v470 = vmul.u32 %v466, 61680
      %v471 = vmul.u32 %v467, 61681
      %v472 = vmul.u32 %v467, 61680
      %v473 = vshll.u32 %v470, 16
      %v474 = vshrl.u32 %v470, 16
      %v475 = vshll.u32 %v471, 16
      %v476 = vshrl.u32 %v471, 16
      %vm477 = vc.u32 %v469, %v473
      %v478 = vsel %vm477, 1, 0
      %v479 = vadd.s32 %v469, %v473
      %v480 = vadd.s32 %v472, %v478
      %vm481 = vc.u32 %v479, %v475
      %v482 = vsel %vm481, 1, 0
      %v483 = vadd.s32 %v479, %v475
      %v484 = vadd.s32 %v480, %v482
      %v485 = vadd.s32 %v484, %v474
      %v486 = vadd.s32 %v485, %v476
      %v487 = vshrl.u32 %v486, 5
      %v488 = vmul.u32 %v487, 34
      %v489 = vsub.s32 %v465, %v488
      %v490 = vsub.s32 0, %v489
      %v491 = vsel %vm463, %v490, %v489
      %vm492 = vcmp.lt.s32.totalorder %v315, 0
      %v493 = vsub.s32 0, %v315
      %v494 = vsel %vm492, %v493, %v315
      %v495 = vand.u32 %v494, 65535
      %v496 = vshrl.u32 %v494, 16
      %v498 = vmul.u32 %v495, 61681
      %v499 = vmul.u32 %v495, 61680
      %v500 = vmul.u32 %v496, 61681
      %v501 = vmul.u32 %v496, 61680
      %v502 = vshll.u32 %v499, 16
      %v503 = vshrl.u32 %v499, 16
      %v504 = vshll.u32 %v500, 16
      %v505 = vshrl.u32 %v500, 16
      %vm506 = vc.u32 %v498, %v502
      %v507 = vsel %vm506, 1, 0
      %v508 = vadd.s32 %v498, %v502
      %v509 = vadd.s32 %v501, %v507
      %vm510 = vc.u32 %v508, %v504
      %v511 = vsel %vm510, 1, 0
      %v512 = vadd.s32 %v508, %v504
      %v513 = vadd.s32 %v509, %v511
      %v514 = vadd.s32 %v513, %v503
      %v515 = vadd.s32 %v514, %v505
      %v516 = vshrl.u32 %v515, 5
      %v517 = vmul.u32 %v516, 34
      %v518 = vsub.s32 %v494, %v517
      %v519 = vsub.s32 0, %v518
      %v520 = vsel %vm492, %v519, %v518
      %vm521 = vcmp.lt.s32.totalorder %v316, 0
      %v522 = vsub.s32 0, %v316
      %v523 = vsel %vm521, %v522, %v316
      %v524 = vand.u32 %v523, 65535
      %v525 = vshrl.u32 %v523, 16
      %v527 = vmul.u32 %v524, 61681
      %v528 = vmul.u32 %v524, 61680
      %v529 = vmul.u32 %v525, 61681
      %v530 = vmul.u32 %v525, 61680
      %v531 = vshll.u32 %v528, 16
      %v532 = vshrl.u32 %v528, 16
      %v533 = vshll.u32 %v529, 16
      %v534 = vshrl.u32 %v529, 16
      %vm535 = vc.u32 %v527, %v531
      %v536 = vsel %vm535, 1, 0
      %v537 = vadd.s32 %v527, %v531
      %v538 = vadd.s32 %v530, %v536
      %vm539 = vc.u32 %v537, %v533
      %v540 = vsel %vm539, 1, 0
      %v541 = vadd.s32 %v537, %v533
      %v542 = vadd.s32 %v538, %v540
      %v543 = vadd.s32 %v542, %v532
      %v544 = vadd.s32 %v543, %v534
      %v545 = vshrl.u32 %v544, 5
      %v546 = vmul.u32 %v545, 34
      %v547 = vsub.s32 %v523, %v546
      %v548 = vsub.s32 0, %v547
      %v549 = vsel %vm521, %v548, %v547
      %vm550 = vcmp.lt.s32.totalorder %v317, 0
      %v551 = vsub.s32 0, %v317
      %v552 = vsel %vm550, %v551, %v317
      %v553 = vand.u32 %v552, 65535
      %v554 = vshrl.u32 %v552, 16
      %v556 = vmul.u32 %v553, 61681
      %v557 = vmul.u32 %v553, 61680
      %v558 = vmul.u32 %v554, 61681
      %v559 = vmul.u32 %v554, 61680
      %v560 = vshll.u32 %v557, 16
      %v561 = vshrl.u32 %v557, 16
      %v562 = vshll.u32 %v558, 16
      %v563 = vshrl.u32 %v558, 16
      %vm564 = vc.u32 %v556, %v560
      %v565 = vsel %vm564, 1, 0
      %v566 = vadd.s32 %v556, %v560
      %v567 = vadd.s32 %v559, %v565
      %vm568 = vc.u32 %v566, %v562
      %v569 = vsel %vm568, 1, 0
      %v570 = vadd.s32 %v566, %v562
      %v571 = vadd.s32 %v567, %v569
      %v572 = vadd.s32 %v571, %v561
      %v573 = vadd.s32 %v572, %v563
      %v574 = vshrl.u32 %v573, 5
      %v575 = vmul.u32 %v574, 34
      %v576 = vsub.s32 %v552, %v575
      %v577 = vsub.s32 0, %v576
      %v578 = vsel %vm550, %v577, %v576
      %vm579 = vcmp.ne.s32.totalorder %v346, 0
      %vm580 = vcmp.ne.s32.totalorder %v375, 0
      %vm581 = vcmp.ne.s32.totalorder %v404, 0
      %vm582 = vcmp.ne.s32.totalorder %v433, 0
      %vm583 = vcmp.ne.s32.totalorder %v462, 0
      %vm584 = vcmp.ne.s32.totalorder %v491, 0
      %vm585 = vcmp.ne.s32.totalorder %v520, 0
      %vm586 = vcmp.ne.s32.totalorder %v549, 0
      %vm587 = vcmp.ne.s32.totalorder %v578, 0
      %vm588 = vcmp.lt.s32.totalorder %v346, 0
      %vm589 = vcmp.lt.s32.totalorder %v375, 0
      %vm590 = vcmp.lt.s32.totalorder %v404, 0
      %vm591 = vcmp.lt.s32.totalorder %v433, 0
      %vm592 = vcmp.lt.s32.totalorder %v462, 0
      %vm593 = vcmp.lt.s32.totalorder %v491, 0
      %vm594 = vcmp.lt.s32.totalorder %v520, 0
      %vm595 = vcmp.lt.s32.totalorder %v549, 0
      %vm596 = vcmp.lt.s32.totalorder %v578, 0
      %vm597 = vmand %vm588, %vm579
      %vm598 = vmand %vm589, %vm580
      %vm599 = vmand %vm590, %vm581
      %vm600 = vmand %vm591, %vm582
      %vm601 = vmand %vm592, %vm583
      %vm602 = vmand %vm593, %vm584
      %vm603 = vmand %vm594, %vm585
      %vm604 = vmand %vm595, %vm586
      %vm605 = vmand %vm596, %vm587
      %v606 = vadd.s32 %v346, 34
      %v607 = vadd.s32 %v375, 34
      %v608 = vadd.s32 %v404, 34
      %v609 = vadd.s32 %v433, 34
      %v610 = vadd.s32 %v462, 34
      %v611 = vadd.s32 %v491, 34
      %v612 = vadd.s32 %v520, 34
      %v613 = vadd.s32 %v549, 34
      %v614 = vadd.s32 %v578, 34
      %v615 = vsel %vm597, %v606, %v346
      %v616 = vsel %vm598, %v607, %v375
      %v617 = vsel %vm599, %v608, %v404
      %v618 = vsel %vm600, %v609, %v433
      %v619 = vsel %vm601, %v610, %v462
      %v620 = vsel %vm602, %v611, %v491
      %v621 = vsel %vm603, %v612, %v520
      %v622 = vsel %vm604, %v613, %v549
      %v623 = vsel %vm605, %v614, %v578
      %vm624 = vcmp.lt.s32.totalorder %v615, 32
      %vm625 = vcmp.lt.s32.totalorder %v616, 32
      %vm626 = vcmp.lt.s32.totalorder %v617, 32
      %vm627 = vcmp.lt.s32.totalorder %v618, 32
      %vm628 = vcmp.lt.s32.totalorder %v619, 32
      %vm629 = vcmp.lt.s32.totalorder %v620, 32
      %vm630 = vcmp.lt.s32.totalorder %v621, 32
      %vm631 = vcmp.lt.s32.totalorder %v622, 32
      %vm632 = vcmp.lt.s32.totalorder %v623, 32
      %v633 = vsel %vm624, 1, 0
      %v634 = vsel %vm625, 1, 0
      %v635 = vsel %vm626, 1, 0
      %v636 = vsel %vm627, 1, 0
      %v637 = vsel %vm628, 1, 0
      %v638 = vsel %vm629, 1, 0
      %v639 = vsel %vm630, 1, 0
      %v640 = vsel %vm631, 1, 0
      %v641 = vsel %vm632, 1, 0
      %vm642 = vcmp.eq.s32.totalorder %v633, 1
      %vm643 = vcmp.eq.s32.totalorder %v634, 1
      %vm644 = vcmp.eq.s32.totalorder %v635, 1
      %vm645 = vcmp.eq.s32.totalorder %v636, 1
      %vm646 = vcmp.eq.s32.totalorder %v637, 1
      %vm647 = vcmp.eq.s32.totalorder %v638, 1
      %vm648 = vcmp.eq.s32.totalorder %v639, 1
      %vm649 = vcmp.eq.s32.totalorder %v640, 1
      %vm650 = vcmp.eq.s32.totalorder %v641, 1
      %v651 = vsel %vm642, %v299, 0.0
      %v652 = vsel %vm643, %v300, 0.0
      %v653 = vsel %vm644, %v301, 0.0
      %v654 = vsel %vm645, %v302, 0.0
      %v655 = vsel %vm646, %v303, 0.0
      %v656 = vsel %vm647, %v304, 0.0
      %v657 = vsel %vm648, %v305, 0.0
      %v658 = vsel %vm649, %v306, 0.0
      %v659 = vsel %vm650, %v307, 0.0
      %vm660 = vcmask 281600
      %661 = vst.msk [vmem:[#allocation2] sm:$0xf] %vm660, 0
      %v662 = vpack.c.bf16 %v652, %v651
      %v663 = vpack.c.bf16 %v654, %v653
      %v664 = vpack.c.bf16 %v656, %v655
      %v665 = vpack.c.bf16 %v658, %v657
      %v666 = vpack.c.bf16 %v659, %v659
      %672 = vrot.lane.b32.xlu0 %v662, 35
      %v673 = vpop.permute.xlu0 %672
      %674 = vrot.lane.b32.xlu0 %v663, 35
      %v675 = vpop.permute.xlu0 %674
      %676 = vrot.lane.b32.xlu0 %v664, 35
      %v677 = vpop.permute.xlu0 %676
      %678 = vrot.lane.b32.xlu0 %v665, 35
      %v679 = vpop.permute.xlu0 %678
      %680 = vrot.lane.b32.xlu0 %v666, 35
      %v681 = vpop.permute.xlu0 %680
      %v682 = vrot.slane %v673, 4
      %v683 = vrot.slane %v675, 4
      %v684 = vrot.slane %v677, 4
      %v685 = vrot.slane %v679, 4
      %vm686 = vcmask 285696
      %v687 = vsel %vm686, %v682, %v673
      %vm688 = vcmask 1043456
      %v689 = vsel %vm688, %v682, %v683
      %v690 = vsel %vm686, %v689, %v675
      %v691 = vsel %vm688, %v683, %v684
      %v692 = vsel %vm686, %v691, %v677
      %v693 = vsel %vm688, %v684, %v685
      %v694 = vsel %vm686, %v693, %v679
      %v695 = vsel %vm686, %v685, %v681
      %vm701 = vcmask 1043736
      %vm702 = vcmask 1047556
      %vm703 = vmor %vm702, %vm701
      %704 = vst.msk [vmem:[#allocation2] sm:$0xff] %vm703, %v687
      %705 = vst [vmem:[#allocation2 + $0x8] sm:$0xff] %v690
      %706 = vst [vmem:[#allocation2 + $0x10] sm:$0xff] %v692
      %707 = vst [vmem:[#allocation2 + $0x18] sm:$0xff] %v694
      %vm708 = vcmask 805888
      %709 = vst.msk [vmem:[#allocation2 + $0x20] sm:$0xf] %vm708, %v695
      %vm710 = vcmask 1044248
      %vm711 = vmor %vm702, %vm710
      %712 = vst.msk [vmem:[#allocation2 + $0x20] sm:$0xff] %vm711, 0
      %v713 = vld [vmem:[#allocation2] sm:$0xff]
      %v714 = vld [vmem:[#allocation2 + $0x8] sm:$0xff]
      %v715 = vld [vmem:[#allocation2 + $0x10] sm:$0xff]
      %v716 = vld [vmem:[#allocation2 + $0x18] sm:$0xff]
      %v717 = vld [vmem:[#allocation2 + $0x20] sm:$0xf]
      %718 = vst [vmem:[#allocation3] sm:$0xff] %v713
      %719 = vst [vmem:[#allocation3 + $0x8] sm:$0xff] %v714
      %720 = vst [vmem:[#allocation3 + $0x10] sm:$0xff] %v715
      %721 = vst [vmem:[#allocation3 + $0x18] sm:$0xff] %v716
      %vm722 = vcmask 519168
      %723 = vst.msk [vmem:[#allocation3 + $0x20] sm:$0xf] %vm722, %v717
      %v724 = vld [vmem:[#allocation2] sm:$0xff]
      %v725 = vld [vmem:[#allocation2 + $0x8] sm:$0xff]
      %v726 = vld [vmem:[#allocation2 + $0x10] sm:$0xff]
      %v727 = vld [vmem:[#allocation2 + $0x18] sm:$0xff]
      %v728 = vld [vmem:[#allocation2 + $0x20] sm:$0xf]
      %734 = vrot.lane.b32.xlu0 %v724, 127
      %v735 = vpop.permute.xlu0 %734
      %736 = vrot.lane.b32.xlu0 %v725, 127
      %v737 = vpop.permute.xlu0 %736
      %738 = vrot.lane.b32.xlu0 %v726, 127
      %v739 = vpop.permute.xlu0 %738
      %740 = vrot.lane.b32.xlu0 %v727, 127
      %v741 = vpop.permute.xlu0 %740
      %742 = vrot.lane.b32.xlu0 %v728, 127
      %v743 = vpop.permute.xlu0 %742
      %v744 = vrot.slane %v735, 4
      %v745 = vrot.slane %v737, 4
      %v746 = vrot.slane %v739, 4
      %v747 = vrot.slane %v741, 4
      %v748 = vrot.slane %v743, 4
      %v749 = vsel %vm688, %v744, %v745
      %vm750 = vcmask 1039360
      %v751 = vsel %vm750, %v735, %v749
      %v752 = vsel %vm688, %v745, %v746
      %v753 = vsel %vm750, %v737, %v752
      %v754 = vsel %vm688, %v746, %v747
      %v755 = vsel %vm750, %v739, %v754
      %v756 = vsel %vm688, %v747, %v748
      %v757 = vsel %vm750, %v741, %v756
      %763 = vst [vmem:[#allocation3 + $0x24] sm:$0xff] %v751
      %764 = vst [vmem:[#allocation3 + $0x2c] sm:$0xff] %v753
      %765 = vst [vmem:[#allocation3 + $0x34] sm:$0xff] %v755
      %766 = vst [vmem:[#allocation3 + $0x3c] sm:$0xff] %v757
      %767 = vst.msk [vmem:[#allocation3 + $0x44] sm:$0xf] %vm722, %v743
      %v768 = vld [vmem:[#allocation2] sm:$0xff]
      %v769 = vld [vmem:[#allocation2 + $0x8] sm:$0xff]
      %v770 = vld [vmem:[#allocation2 + $0x10] sm:$0xff]
      %v771 = vld [vmem:[#allocation2 + $0x18] sm:$0xff]
      %v772 = vld [vmem:[#allocation2 + $0x20] sm:$0xf]
      %778 = vrot.lane.b32.xlu0 %v768, 126
      %v779 = vpop.permute.xlu0 %778
      %780 = vrot.lane.b32.xlu0 %v769, 126
      %v781 = vpop.permute.xlu0 %780
      %782 = vrot.lane.b32.xlu0 %v770, 126
      %v783 = vpop.permute.xlu0 %782
      %784 = vrot.lane.b32.xlu0 %v771, 126
      %v785 = vpop.permute.xlu0 %784
      %786 = vrot.lane.b32.xlu0 %v772, 126
      %v787 = vpop.permute.xlu0 %786
      %v788 = vrot.slane %v779, 4
      %v789 = vrot.slane %v781, 4
      %v790 = vrot.slane %v783, 4
      %v791 = vrot.slane %v785, 4
      %v792 = vrot.slane %v787, 4
      %v793 = vsel %vm688, %v788, %v789
      %vm794 = vcmask 1031168
      %v795 = vsel %vm794, %v779, %v793
      %v796 = vsel %vm688, %v789, %v790
      %v797 = vsel %vm794, %v781, %v796
      %v798 = vsel %vm688, %v790, %v791
      %v799 = vsel %vm794, %v783, %v798
      %v800 = vsel %vm688, %v791, %v792
      %v801 = vsel %vm794, %v785, %v800
      %807 = vst [vmem:[#allocation3 + $0x48] sm:$0xff] %v795
      %808 = vst [vmem:[#allocation3 + $0x50] sm:$0xff] %v797
      %809 = vst [vmem:[#allocation3 + $0x58] sm:$0xff] %v799
      %810 = vst [vmem:[#allocation3 + $0x60] sm:$0xff] %v801
      %811 = vst.msk [vmem:[#allocation3 + $0x68] sm:$0xf] %vm722, %v787
      %v812 = vld [vmem:[#allocation2] sm:$0xff]
      %v813 = vld [vmem:[#allocation2 + $0x8] sm:$0xff]
      %v814 = vld [vmem:[#allocation2 + $0x10] sm:$0xff]
      %v815 = vld [vmem:[#allocation2 + $0x18] sm:$0xff]
      %v816 = vld [vmem:[#allocation2 + $0x20] sm:$0xf]
      %822 = vrot.lane.b32.xlu0 %v812, 94
      %v823 = vpop.permute.xlu0 %822
      %824 = vrot.lane.b32.xlu0 %v813, 94
      %v825 = vpop.permute.xlu0 %824
      %826 = vrot.lane.b32.xlu0 %v814, 94
      %v827 = vpop.permute.xlu0 %826
      %828 = vrot.lane.b32.xlu0 %v815, 94
      %v829 = vpop.permute.xlu0 %828
      %830 = vrot.lane.b32.xlu0 %v816, 94
      %v831 = vpop.permute.xlu0 %830
      %v832 = vrot.slane %v823, 4
      %v833 = vrot.slane %v825, 4
      %v834 = vrot.slane %v827, 4
      %v835 = vrot.slane %v829, 4
      %v836 = vrot.slane %v831, 4
      %v837 = vsel %vm688, %v832, %v833
      %vm838 = vcmask 769024
      %v839 = vsel %vm838, %v823, %v837
      %v840 = vsel %vm688, %v833, %v834
      %v841 = vsel %vm838, %v825, %v840
      %v842 = vsel %vm688, %v834, %v835
      %v843 = vsel %vm838, %v827, %v842
      %v844 = vsel %vm688, %v835, %v836
      %v845 = vsel %vm838, %v829, %v844
      %851 = vst [vmem:[#allocation3 + $0x6c] sm:$0xff] %v839
      %852 = vst [vmem:[#allocation3 + $0x74] sm:$0xff] %v841
      %853 = vst [vmem:[#allocation3 + $0x7c] sm:$0xff] %v843
      %854 = vst [vmem:[#allocation3 + $0x84] sm:$0xff] %v845
      %855 = vst.msk [vmem:[#allocation3 + $0x8c] sm:$0xf] %vm722, %v831
      %v856 = vld [vmem:[#allocation2] sm:$0xff]
      %v857 = vld [vmem:[#allocation2 + $0x8] sm:$0xff]
      %v858 = vld [vmem:[#allocation2 + $0x10] sm:$0xff]
      %v859 = vld [vmem:[#allocation2 + $0x18] sm:$0xff]
      %v860 = vld [vmem:[#allocation2 + $0x20] sm:$0xf]
      %866 = vrot.lane.b32.xlu0 %v856, 93
      %v867 = vpop.permute.xlu0 %866
      %868 = vrot.lane.b32.xlu0 %v857, 93
      %v869 = vpop.permute.xlu0 %868
      %870 = vrot.lane.b32.xlu0 %v858, 93
      %v871 = vpop.permute.xlu0 %870
      %872 = vrot.lane.b32.xlu0 %v859, 93
      %v873 = vpop.permute.xlu0 %872
      %874 = vrot.lane.b32.xlu0 %v860, 93
      %v875 = vpop.permute.xlu0 %874
      %v876 = vrot.slane %v867, 4
      %v877 = vrot.slane %v869, 4
      %v878 = vrot.slane %v871, 4
      %v879 = vrot.slane %v873, 4
      %v880 = vrot.slane %v875, 4
      %v881 = vsel %vm688, %v876, %v877
      %vm882 = vcmask 760832
      %v883 = vsel %vm882, %v867, %v881
      %v884 = vsel %vm688, %v877, %v878
      %v885 = vsel %vm882, %v869, %v884
      %v886 = vsel %vm688, %v878, %v879
      %v887 = vsel %vm882, %v871, %v886
      %v888 = vsel %vm688, %v879, %v880
      %v889 = vsel %vm882, %v873, %v888
      %895 = vst [vmem:[#allocation3 + $0x90] sm:$0xff] %v883
      %896 = vst [vmem:[#allocation3 + $0x98] sm:$0xff] %v885
      %897 = vst [vmem:[#allocation3 + $0xa0] sm:$0xff] %v887
      %898 = vst [vmem:[#allocation3 + $0xa8] sm:$0xff] %v889
      %899 = vst.msk [vmem:[#allocation3 + $0xb0] sm:$0xf] %vm722, %v875
      %v900 = vld [vmem:[#allocation2] sm:$0xff]
      %v901 = vld [vmem:[#allocation2 + $0x8] sm:$0xff]
      %v902 = vld [vmem:[#allocation2 + $0x10] sm:$0xff]
      %v903 = vld [vmem:[#allocation2 + $0x18] sm:$0xff]
      %v904 = vld [vmem:[#allocation2 + $0x20] sm:$0xf]
      %910 = vrot.lane.b32.xlu0 %v900, 92
      %v911 = vpop.permute.xlu0 %910
      %912 = vrot.lane.b32.xlu0 %v901, 92
      %v913 = vpop.permute.xlu0 %912
      %914 = vrot.lane.b32.xlu0 %v902, 92
      %v915 = vpop.permute.xlu0 %914
      %916 = vrot.lane.b32.xlu0 %v903, 92
      %v917 = vpop.permute.xlu0 %916
      %918 = vrot.lane.b32.xlu0 %v904, 92
      %v919 = vpop.permute.xlu0 %918
      %v920 = vrot.slane %v911, 4
      %v921 = vrot.slane %v913, 4
      %v922 = vrot.slane %v915, 4
      %v923 = vrot.slane %v917, 4
      %v924 = vrot.slane %v919, 4
      %v925 = vsel %vm688, %v920, %v921
      %vm926 = vcmask 752640
      %v927 = vsel %vm926, %v911, %v925
      %v928 = vsel %vm688, %v921, %v922
      %v929 = vsel %vm926, %v913, %v928
      %v930 = vsel %vm688, %v922, %v923
      %v931 = vsel %vm926, %v915, %v930
      %v932 = vsel %vm688, %v923, %v924
      %v933 = vsel %vm926, %v917, %v932
      %939 = vst [vmem:[#allocation3 + $0xb4] sm:$0xff] %v927
      %940 = vst [vmem:[#allocation3 + $0xbc] sm:$0xff] %v929
      %941 = vst [vmem:[#allocation3 + $0xc4] sm:$0xff] %v931
      %942 = vst [vmem:[#allocation3 + $0xcc] sm:$0xff] %v933
      %943 = vst.msk [vmem:[#allocation3 + $0xd4] sm:$0xf] %vm722, %v919
      %v944 = vld [vmem:[#allocation2] sm:$0xff]
      %v945 = vld [vmem:[#allocation2 + $0x8] sm:$0xff]
      %v946 = vld [vmem:[#allocation2 + $0x10] sm:$0xff]
      %v947 = vld [vmem:[#allocation2 + $0x18] sm:$0xff]
      %v948 = vld [vmem:[#allocation2 + $0x20] sm:$0xff]
      %954 = vrot.lane.b32.xlu0 %v944, 60
      %v955 = vpop.permute.xlu0 %954
      %956 = vrot.lane.b32.xlu0 %v945, 60
      %v957 = vpop.permute.xlu0 %956
      %958 = vrot.lane.b32.xlu0 %v946, 60
      %v959 = vpop.permute.xlu0 %958
      %960 = vrot.lane.b32.xlu0 %v947, 60
      %v961 = vpop.permute.xlu0 %960
      %962 = vrot.lane.b32.xlu0 %v948, 60
      %v963 = vpop.permute.xlu0 %962
      %v964 = vrot.slane %v955, 4
      %v965 = vrot.slane %v957, 4
      %v966 = vrot.slane %v959, 4
      %v967 = vrot.slane %v961, 4
      %v968 = vrot.slane %v963, 4
      %v969 = vsel %vm688, %v964, %v965
      %vm970 = vcmask 490496
      %v971 = vsel %vm970, %v955, %v969
      %v972 = vsel %vm688, %v965, %v966
      %v973 = vsel %vm970, %v957, %v972
      %v974 = vsel %vm688, %v966, %v967
      %v975 = vsel %vm970, %v959, %v974
      %v976 = vsel %vm688, %v967, %v968
      %v977 = vsel %vm970, %v961, %v976
      %v978 = vsel %vm970, %v963, %v968
      %984 = vst [vmem:[#allocation3 + $0xd8] sm:$0xff] %v971
      %985 = vst [vmem:[#allocation3 + $0xe0] sm:$0xff] %v973
      %986 = vst [vmem:[#allocation3 + $0xe8] sm:$0xff] %v975
      %987 = vst [vmem:[#allocation3 + $0xf0] sm:$0xff] %v977
      %988 = vst.msk [vmem:[#allocation3 + $0xf8] sm:$0xf] %vm722, %v978
      %v989 = vld [vmem:[#allocation2] sm:$0xff]
      %v990 = vld [vmem:[#allocation2 + $0x8] sm:$0xff]
      %v991 = vld [vmem:[#allocation2 + $0x10] sm:$0xff]
      %v992 = vld [vmem:[#allocation2 + $0x18] sm:$0xff]
      %v993 = vld [vmem:[#allocation2 + $0x20] sm:$0xff]
      %999 = vrot.lane.b32.xlu0 %v989, 59
      %v1000 = vpop.permute.xlu0 %999
      %1001 = vrot.lane.b32.xlu0 %v990, 59
      %v1002 = vpop.permute.xlu0 %1001
      %1003 = vrot.lane.b32.xlu0 %v991, 59
      %v1004 = vpop.permute.xlu0 %1003
      %1005 = vrot.lane.b32.xlu0 %v992, 59
      %v1006 = vpop.permute.xlu0 %1005
      %1007 = vrot.lane.b32.xlu0 %v993, 59
      %v1008 = vpop.permute.xlu0 %1007
      %v1009 = vrot.slane %v1000, 4
      %v1010 = vrot.slane %v1002, 4
      %v1011 = vrot.slane %v1004, 4
      %v1012 = vrot.slane %v1006, 4
      %v1013 = vrot.slane %v1008, 4
      %v1014 = vsel %vm688, %v1009, %v1010
      %vm1015 = vcmask 482304
      %v1016 = vsel %vm1015, %v1000, %v1014
      %v1017 = vsel %vm688, %v1010, %v1011
      %v1018 = vsel %vm1015, %v1002, %v1017
      %v1019 = vsel %vm688, %v1011, %v1012
      %v1020 = vsel %vm1015, %v1004, %v1019
      %v1021 = vsel %vm688, %v1012, %v1013
      %v1022 = vsel %vm1015, %v1006, %v1021
      %v1023 = vsel %vm1015, %v1008, %v1013
      %1029 = vst [vmem:[#allocation3 + $0xfc] sm:$0xff] %v1016
      %1030 = vst [vmem:[#allocation3 + $0x104] sm:$0xff] %v1018
      %1031 = vst [vmem:[#allocation3 + $0x10c] sm:$0xff] %v1020
      %1032 = vst [vmem:[#allocation3 + $0x114] sm:$0xff] %v1022
      %1033 = vst.msk [vmem:[#allocation3 + $0x11c] sm:$0xf] %vm722, %v1023
      %v1034 = vld [vmem:[#allocation2] sm:$0xff]
      %v1035 = vld [vmem:[#allocation2 + $0x8] sm:$0xff]
      %v1036 = vld [vmem:[#allocation2 + $0x10] sm:$0xff]
      %v1037 = vld [vmem:[#allocation2 + $0x18] sm:$0xff]
      %v1038 = vld [vmem:[#allocation2 + $0x20] sm:$0xff]
      %1044 = vrot.lane.b32.xlu0 %v1034, 58
      %v1045 = vpop.permute.xlu0 %1044
      %1046 = vrot.lane.b32.xlu0 %v1035, 58
      %v1047 = vpop.permute.xlu0 %1046
      %1048 = vrot.lane.b32.xlu0 %v1036, 58
      %v1049 = vpop.permute.xlu0 %1048
      %1050 = vrot.lane.b32.xlu0 %v1037, 58
      %v1051 = vpop.permute.xlu0 %1050
      %1052 = vrot.lane.b32.xlu0 %v1038, 58
      %v1053 = vpop.permute.xlu0 %1052
      %v1054 = vrot.slane %v1045, 4
      %v1055 = vrot.slane %v1047, 4
      %v1056 = vrot.slane %v1049, 4
      %v1057 = vrot.slane %v1051, 4
      %v1058 = vrot.slane %v1053, 4
      %v1059 = vsel %vm688, %v1054, %v1055
      %vm1060 = vcmask 474112
      %v1061 = vsel %vm1060, %v1045, %v1059
      %v1062 = vsel %vm688, %v1055, %v1056
      %v1063 = vsel %vm1060, %v1047, %v1062
      %v1064 = vsel %vm688, %v1056, %v1057
      %v1065 = vsel %vm1060, %v1049, %v1064
      %v1066 = vsel %vm688, %v1057, %v1058
      %v1067 = vsel %vm1060, %v1051, %v1066
      %v1068 = vsel %vm1060, %v1053, %v1058
      %1074 = vst [vmem:[#allocation3 + $0x120] sm:$0xff] %v1061
      %1075 = vst [vmem:[#allocation3 + $0x128] sm:$0xff] %v1063
      %1076 = vst [vmem:[#allocation3 + $0x130] sm:$0xff] %v1065
      %1077 = vst [vmem:[#allocation3 + $0x138] sm:$0xff] %v1067
      %1078 = vst.msk [vmem:[#allocation3 + $0x140] sm:$0xf] %vm722, %v1068
      %v1079 = vld [vmem:[%s3] sm:$0xf]
      %v1080 = vld [vmem:[#allocation3] sm:$0xff]
      %v1081 = vld [vmem:[#allocation3 + $0x8] sm:$0xff]
      %v1082 = vld [vmem:[#allocation3 + $0x10] sm:$0xff]
      %v1083 = vld [vmem:[#allocation3 + $0x18] sm:$0xff]
      %v1084 = vld [vmem:[#allocation3 + $0x20] sm:$0xf]
      %v1085 = vld [vmem:[#allocation3 + $0x24] sm:$0xff]
      %v1086 = vld [vmem:[#allocation3 + $0x2c] sm:$0xff]
      %v1087 = vld [vmem:[#allocation3 + $0x34] sm:$0xff]
      %v1088 = vld [vmem:[#allocation3 + $0x3c] sm:$0xff]
      %v1089 = vld [vmem:[#allocation3 + $0x44] sm:$0xf]
      %v1090 = vld [vmem:[#allocation3 + $0x48] sm:$0xff]
      %v1091 = vld [vmem:[#allocation3 + $0x50] sm:$0xff]
      %v1092 = vld [vmem:[#allocation3 + $0x58] sm:$0xff]
      %v1093 = vld [vmem:[#allocation3 + $0x60] sm:$0xff]
      %v1094 = vld [vmem:[#allocation3 + $0x68] sm:$0xf]
      %v1095 = vld [vmem:[#allocation3 + $0x6c] sm:$0xff]
      %v1096 = vld [vmem:[#allocation3 + $0x74] sm:$0xff]
      %v1097 = vld [vmem:[#allocation3 + $0x7c] sm:$0xff]
      %v1098 = vld [vmem:[#allocation3 + $0x84] sm:$0xff]
      %v1099 = vld [vmem:[#allocation3 + $0x8c] sm:$0xf]
      %v1100 = vld [vmem:[#allocation3 + $0x90] sm:$0xff]
      %v1101 = vld [vmem:[#allocation3 + $0x98] sm:$0xff]
      %v1102 = vld [vmem:[#allocation3 + $0xa0] sm:$0xff]
      %v1103 = vld [vmem:[#allocation3 + $0xa8] sm:$0xff]
      %v1104 = vld [vmem:[#allocation3 + $0xb0] sm:$0xf]
      %v1105 = vld [vmem:[#allocation3 + $0xb4] sm:$0xff]
      %v1106 = vld [vmem:[#allocation3 + $0xbc] sm:$0xff]
      %v1107 = vld [vmem:[#allocation3 + $0xc4] sm:$0xff]
      %v1108 = vld [vmem:[#allocation3 + $0xcc] sm:$0xff]
      %v1109 = vld [vmem:[#allocation3 + $0xd4] sm:$0xf]
      %v1110 = vld [vmem:[#allocation3 + $0xd8] sm:$0xff]
      %v1111 = vld [vmem:[#allocation3 + $0xe0] sm:$0xff]
      %v1112 = vld [vmem:[#allocation3 + $0xe8] sm:$0xff]
      %v1113 = vld [vmem:[#allocation3 + $0xf0] sm:$0xff]
      %v1114 = vld [vmem:[#allocation3 + $0xf8] sm:$0xf]
      %v1115 = vld [vmem:[#allocation3 + $0xfc] sm:$0xff]
      %v1116 = vld [vmem:[#allocation3 + $0x104] sm:$0xff]
      %v1117 = vld [vmem:[#allocation3 + $0x10c] sm:$0xff]
      %v1118 = vld [vmem:[#allocation3 + $0x114] sm:$0xff]
      %v1119 = vld [vmem:[#allocation3 + $0x11c] sm:$0xf]
      %v1120 = vld [vmem:[#allocation3 + $0x120] sm:$0xff]
      %v1121 = vld [vmem:[#allocation3 + $0x128] sm:$0xff]
      %v1122 = vld [vmem:[#allocation3 + $0x130] sm:$0xff]
      %v1123 = vld [vmem:[#allocation3 + $0x138] sm:$0xff]
      %v1124 = vld [vmem:[#allocation3 + $0x140] sm:$0xf]
      %v1125 = vld [vmem:[%s4] sm:$0xff]
      %1127 = vset.pattern.permute.xlu0 0
      %1128 = vperm.xlu0 %1127, %v1125
      %v1129 = vpop.permute.xlu0 %1128
      %v1176 = vunpack.c.l.b16 %v1080
      %v1177 = vunpack.c.h.b16 %v1080
      %v1178 = vunpack.c.l.b16 %v1081
      %v1179 = vunpack.c.h.b16 %v1081
      %v1180 = vunpack.c.l.b16 %v1082
      %v1181 = vunpack.c.h.b16 %v1082
      %v1182 = vunpack.c.l.b16 %v1083
      %v1183 = vunpack.c.h.b16 %v1083
      %v1184 = vunpack.c.l.b16 %v1084
      %v1185 = vunpack.c.l.b16 %v1085
      %v1186 = vunpack.c.h.b16 %v1085
      %v1187 = vunpack.c.l.b16 %v1086
      %v1188 = vunpack.c.h.b16 %v1086
      %v1189 = vunpack.c.l.b16 %v1087
      %v1190 = vunpack.c.h.b16 %v1087
      %v1191 = vunpack.c.l.b16 %v1088
      %v1192 = vunpack.c.h.b16 %v1088
      %v1193 = vunpack.c.l.b16 %v1089
      %v1194 = vunpack.c.l.b16 %v1090
      %v1195 = vunpack.c.h.b16 %v1090
      %v1196 = vunpack.c.l.b16 %v1091
      %v1197 = vunpack.c.h.b16 %v1091
      %v1198 = vunpack.c.l.b16 %v1092
      %v1199 = vunpack.c.h.b16 %v1092
      %v1200 = vunpack.c.l.b16 %v1093
      %v1201 = vunpack.c.h.b16 %v1093
      %v1202 = vunpack.c.l.b16 %v1094
      %v1203 = vunpack.c.l.b16 %v1095
      %v1204 = vunpack.c.h.b16 %v1095
      %v1205 = vunpack.c.l.b16 %v1096
      %v1206 = vunpack.c.h.b16 %v1096
      %v1207 = vunpack.c.l.b16 %v1097
      %v1208 = vunpack.c.h.b16 %v1097
      %v1209 = vunpack.c.l.b16 %v1098
      %v1210 = vunpack.c.h.b16 %v1098
      %v1211 = vunpack.c.l.b16 %v1099
      %v1212 = vunpack.c.l.b16 %v1100
      %v1213 = vunpack.c.h.b16 %v1100
      %v1214 = vunpack.c.l.b16 %v1101
      %v1215 = vunpack.c.h.b16 %v1101
      %v1216 = vunpack.c.l.b16 %v1102
      %v1217 = vunpack.c.h.b16 %v1102
      %v1218 = vunpack.c.l.b16 %v1103
      %v1219 = vunpack.c.h.b16 %v1103
      %v1220 = vunpack.c.l.b16 %v1104
      %v1221 = vunpack.c.l.b16 %v1105
      %v1222 = vunpack.c.h.b16 %v1105
      %v1223 = vunpack.c.l.b16 %v1106
      %v1224 = vunpack.c.h.b16 %v1106
      %v1225 = vunpack.c.l.b16 %v1107
      %v1226 = vunpack.c.h.b16 %v1107
      %v1227 = vunpack.c.l.b16 %v1108
      %v1228 = vunpack.c.h.b16 %v1108
      %v1229 = vunpack.c.l.b16 %v1109
      %v1230 = vunpack.c.l.b16 %v1110
      %v1231 = vunpack.c.h.b16 %v1110
      %v1232 = vunpack.c.l.b16 %v1111
      %v1233 = vunpack.c.h.b16 %v1111
      %v1234 = vunpack.c.l.b16 %v1112
      %v1235 = vunpack.c.h.b16 %v1112
      %v1236 = vunpack.c.l.b16 %v1113
      %v1237 = vunpack.c.h.b16 %v1113
      %v1238 = vunpack.c.l.b16 %v1114
      %v1239 = vunpack.c.l.b16 %v1115
      %v1240 = vunpack.c.h.b16 %v1115
      %v1241 = vunpack.c.l.b16 %v1116
      %v1242 = vunpack.c.h.b16 %v1116
      %v1243 = vunpack.c.l.b16 %v1117
      %v1244 = vunpack.c.h.b16 %v1117
      %v1245 = vunpack.c.l.b16 %v1118
      %v1246 = vunpack.c.h.b16 %v1118
      %v1247 = vunpack.c.l.b16 %v1119
      %v1248 = vunpack.c.l.b16 %v1120
      %v1249 = vunpack.c.h.b16 %v1120
      %v1250 = vunpack.c.l.b16 %v1121
      %v1251 = vunpack.c.h.b16 %v1121
      %v1252 = vunpack.c.l.b16 %v1122
      %v1253 = vunpack.c.h.b16 %v1122
      %v1254 = vunpack.c.l.b16 %v1123
      %v1255 = vunpack.c.h.b16 %v1123
      %v1256 = vunpack.c.l.b16 %v1124
      %v1257 = vpack.c.b16 %v1185, %v1176
      %v1258 = vpack.c.b16 %v1186, %v1177
      %v1259 = vpack.c.b16 %v1187, %v1178
      %v1260 = vpack.c.b16 %v1188, %v1179
      %v1261 = vpack.c.b16 %v1189, %v1180
      %v1262 = vpack.c.b16 %v1190, %v1181
      %v1263 = vpack.c.b16 %v1191, %v1182
      %v1264 = vpack.c.b16 %v1192, %v1183
      %v1265 = vpack.c.b16 %v1193, %v1184
      %v1266 = vpack.c.b16 %v1203, %v1194
      %v1267 = vpack.c.b16 %v1204, %v1195
      %v1268 = vpack.c.b16 %v1205, %v1196
      %v1269 = vpack.c.b16 %v1206, %v1197
      %v1270 = vpack.c.b16 %v1207, %v1198
      %v1271 = vpack.c.b16 %v1208, %v1199
      %v1272 = vpack.c.b16 %v1209, %v1200
      %v1273 = vpack.c.b16 %v1210, %v1201
      %v1274 = vpack.c.b16 %v1211, %v1202
      %v1275 = vpack.c.b16 %v1221, %v1212
      %v1276 = vpack.c.b16 %v1222, %v1213
      %v1277 = vpack.c.b16 %v1223, %v1214
      %v1278 = vpack.c.b16 %v1224, %v1215
      %v1279 = vpack.c.b16 %v1225, %v1216
      %v1280 = vpack.c.b16 %v1226, %v1217
      %v1281 = vpack.c.b16 %v1227, %v1218
      %v1282 = vpack.c.b16 %v1228, %v1219
      %v1283 = vpack.c.b16 %v1229, %v1220
      %v1284 = vpack.c.b16 %v1239, %v1230
      %v1285 = vpack.c.b16 %v1240, %v1231
      %v1286 = vpack.c.b16 %v1241, %v1232
      %v1287 = vpack.c.b16 %v1242, %v1233
      %v1288 = vpack.c.b16 %v1243, %v1234
      %v1289 = vpack.c.b16 %v1244, %v1235
      %v1290 = vpack.c.b16 %v1245, %v1236
      %v1291 = vpack.c.b16 %v1246, %v1237
      %v1292 = vpack.c.b16 %v1247, %v1238
      %v1293 = vpack.c.b16 %v1248, %v1248
      %v1294 = vpack.c.b16 %v1249, %v1249
      %v1295 = vpack.c.b16 %v1250, %v1250
      %v1296 = vpack.c.b16 %v1251, %v1251
      %v1297 = vpack.c.b16 %v1252, %v1252
      %v1298 = vpack.c.b16 %v1253, %v1253
      %v1299 = vpack.c.b16 %v1254, %v1254
      %v1300 = vpack.c.b16 %v1255, %v1255
      %v1301 = vpack.c.b16 %v1256, %v1256
      %vm1338 = vcmask 588800
      %v1340 = vsel %vm1338, %v1079, 0
      %vm1342 = vcmask 1043456
      %v1344 = vsel %vm1342, %v1293, 0
      %v1347 = vsel %vm1342, %v1294, 0
      %v1350 = vsel %vm1342, %v1295, 0
      %v1353 = vsel %vm1342, %v1296, 0
      %v1356 = vsel %vm1342, %v1297, 0
      %v1359 = vsel %vm1342, %v1298, 0
      %v1362 = vsel %vm1342, %v1299, 0
      %v1365 = vsel %vm1342, %v1300, 0
      %v1368 = vsel %vm1342, %v1301, 0
      %1370 = vmatpush.bf16.msra.mxu0 0
      %1371 = vmatpush.bf16.msra.mxu0 0
      %1372 = vmatpush.bf16.msra.mxu0 0
      %1373 = vmatpush.bf16.msra.mxu0 %v1344
      %1374 = vmatpush.bf16.msra.mxu0 %v1284
      %1375 = vmatpush.bf16.msra.mxu0 %v1275
      %1376 = vmatpush.bf16.msra.mxu0 %v1266
      %1377 = vmatpush.bf16.msra.mxu0 %v1257
      %1378 = vmatmul.bf16.gmra.mxu0 %v1340
      %v1379 = vpop.f32.mrf.mxu0
      %v1380 = vadd.f32 %v1129, %v1379
      %v1381 = vpop.f32.mrf.mxu0
      %1382 = vdwg.mxu0
      %1383 = vmatpush.bf16.msra.mxu0 0
      %1384 = vmatpush.bf16.msra.mxu0 0
      %1385 = vmatpush.bf16.msra.mxu0 0
      %1386 = vmatpush.bf16.msra.mxu0 %v1347
      %1387 = vmatpush.bf16.msra.mxu0 %v1285
      %1388 = vmatpush.bf16.msra.mxu0 %v1276
      %1389 = vmatpush.bf16.msra.mxu0 %v1267
      %1390 = vmatpush.bf16.msra.mxu0 %v1258
      %1391 = vmatmul.bf16.gmra.mxu0 %v1340
      %v1392 = vpop.f32.mrf.mxu0
      %v1393 = vadd.f32 %v1129, %v1392
      %v1394 = vpop.f32.mrf.mxu0
      %1395 = vdwg.mxu0
      %1396 = vmatpush.bf16.msra.mxu0 0
      %1397 = vmatpush.bf16.msra.mxu0 0
      %1398 = vmatpush.bf16.msra.mxu0 0
      %1399 = vmatpush.bf16.msra.mxu0 %v1350
      %1400 = vmatpush.bf16.msra.mxu0 %v1286
      %1401 = vmatpush.bf16.msra.mxu0 %v1277
      %1402 = vmatpush.bf16.msra.mxu0 %v1268
      %1403 = vmatpush.bf16.msra.mxu0 %v1259
      %1404 = vmatmul.bf16.gmra.mxu0 %v1340
      %v1405 = vpop.f32.mrf.mxu0
      %v1406 = vadd.f32 %v1129, %v1405
      %v1407 = vpop.f32.mrf.mxu0
      %1408 = vdwg.mxu0
      %1409 = vmatpush.bf16.msra.mxu0 0
      %1410 = vmatpush.bf16.msra.mxu0 0
      %1411 = vmatpush.bf16.msra.mxu0 0
      %1412 = vmatpush.bf16.msra.mxu0 %v1353
      %1413 = vmatpush.bf16.msra.mxu0 %v1287
      %1414 = vmatpush.bf16.msra.mxu0 %v1278
      %1415 = vmatpush.bf16.msra.mxu0 %v1269
      %1416 = vmatpush.bf16.msra.mxu0 %v1260
      %1417 = vmatmul.bf16.gmra.mxu0 %v1340
      %v1418 = vpop.f32.mrf.mxu0
      %v1419 = vadd.f32 %v1129, %v1418
      %v1420 = vpop.f32.mrf.mxu0
      %1421 = vdwg.mxu0
      %1422 = vmatpush.bf16.msra.mxu0 0
      %1423 = vmatpush.bf16.msra.mxu0 0
      %1424 = vmatpush.bf16.msra.mxu0 0
      %1425 = vmatpush.bf16.msra.mxu0 %v1356
      %1426 = vmatpush.bf16.msra.mxu0 %v1288
      %1427 = vmatpush.bf16.msra.mxu0 %v1279
      %1428 = vmatpush.bf16.msra.mxu0 %v1270
      %1429 = vmatpush.bf16.msra.mxu0 %v1261
      %1430 = vmatmul.bf16.gmra.mxu0 %v1340
      %v1431 = vpop.f32.mrf.mxu0
      %v1432 = vadd.f32 %v1129, %v1431
      %v1433 = vpop.f32.mrf.mxu0
      %1434 = vdwg.mxu0
      %1435 = vmatpush.bf16.msra.mxu0 0
      %1436 = vmatpush.bf16.msra.mxu0 0
      %1437 = vmatpush.bf16.msra.mxu0 0
      %1438 = vmatpush.bf16.msra.mxu0 %v1359
      %1439 = vmatpush.bf16.msra.mxu0 %v1289
      %1440 = vmatpush.bf16.msra.mxu0 %v1280
      %1441 = vmatpush.bf16.msra.mxu0 %v1271
      %1442 = vmatpush.bf16.msra.mxu0 %v1262
      %1443 = vmatmul.bf16.gmra.mxu0 %v1340
      %v1444 = vpop.f32.mrf.mxu0
      %v1445 = vadd.f32 %v1129, %v1444
      %v1446 = vpop.f32.mrf.mxu0
      %1447 = vdwg.mxu0
      %1448 = vmatpush.bf16.msra.mxu0 0
      %1449 = vmatpush.bf16.msra.mxu0 0
      %1450 = vmatpush.bf16.msra.mxu0 0
      %1451 = vmatpush.bf16.msra.mxu0 %v1362
      %1452 = vmatpush.bf16.msra.mxu0 %v1290
      %1453 = vmatpush.bf16.msra.mxu0 %v1281
      %1454 = vmatpush.bf16.msra.mxu0 %v1272
      %1455 = vmatpush.bf16.msra.mxu0 %v1263
      %1456 = vmatmul.bf16.gmra.mxu0 %v1340
      %v1457 = vpop.f32.mrf.mxu0
      %v1458 = vadd.f32 %v1129, %v1457
      %v1459 = vpop.f32.mrf.mxu0
      %1460 = vdwg.mxu0
      %1461 = vmatpush.bf16.msra.mxu0 0
      %1462 = vmatpush.bf16.msra.mxu0 0
      %1463 = vmatpush.bf16.msra.mxu0 0
      %1464 = vmatpush.bf16.msra.mxu0 %v1365
      %1465 = vmatpush.bf16.msra.mxu0 %v1291
      %1466 = vmatpush.bf16.msra.mxu0 %v1282
      %1467 = vmatpush.bf16.msra.mxu0 %v1273
      %1468 = vmatpush.bf16.msra.mxu0 %v1264
      %1469 = vmatmul.bf16.gmra.mxu0 %v1340
      %v1470 = vpop.f32.mrf.mxu0
      %v1471 = vadd.f32 %v1129, %v1470
      %v1472 = vpop.f32.mrf.mxu0
      %1473 = vdwg.mxu0
      %1474 = vmatpush.bf16.msra.mxu0 0
      %1475 = vmatpush.bf16.msra.mxu0 0
      %1476 = vmatpush.bf16.msra.mxu0 0
      %1477 = vmatpush.bf16.msra.mxu0 %v1368
      %1478 = vmatpush.bf16.msra.mxu0 %v1292
      %1479 = vmatpush.bf16.msra.mxu0 %v1283
      %1480 = vmatpush.bf16.msra.mxu0 %v1274
      %1481 = vmatpush.bf16.msra.mxu0 %v1265
      %1482 = vmatmul.bf16.gmra.mxu0 %v1340
      %v1483 = vpop.f32.mrf.mxu0
      %v1484 = vadd.f32 %v1129, %v1483
      %v1485 = vpop.f32.mrf.mxu0
      %1486 = vdwg.mxu0
      %v1487 = vmax.f32 %v1380, 0.0
      %v1488 = vmax.f32 %v1393, 0.0
      %v1489 = vmax.f32 %v1406, 0.0
      %v1490 = vmax.f32 %v1419, 0.0
      %v1491 = vmax.f32 %v1432, 0.0
      %v1492 = vmax.f32 %v1445, 0.0
      %v1493 = vmax.f32 %v1458, 0.0
      %v1494 = vmax.f32 %v1471, 0.0
      %v1495 = vmax.f32 %v1484, 0.0
      %v1496 = vpack.c.bf16 %v1488, %v1487
      %v1497 = vpack.c.bf16 %v1490, %v1489
      %v1498 = vpack.c.bf16 %v1492, %v1491
      %v1499 = vpack.c.bf16 %v1494, %v1493
      %v1500 = vpack.c.bf16 %v1495, %v1495
      %1501 = vst [vmem:[%s258] sm:$0xff] %v1496
      %1502 = vst [vmem:[%s258 + $0x8] sm:$0xff] %v1497
      %1503 = vst [vmem:[%s258 + $0x10] sm:$0xff] %v1498
      %1504 = vst [vmem:[%s258 + $0x18] sm:$0xff] %v1499
      %1505 = vst.msk [vmem:[%s258 + $0x20] sm:$0xf] %vm722, %v1500
      %v1506 = vsel %vm642, %v1487, 0.0
      %v1507 = vsel %vm643, %v1488, 0.0
      %v1508 = vsel %vm644, %v1489, 0.0
      %v1509 = vsel %vm645, %v1490, 0.0
      %v1510 = vsel %vm646, %v1491, 0.0
      %v1511 = vsel %vm647, %v1492, 0.0
      %v1512 = vsel %vm648, %v1493, 0.0
      %v1513 = vsel %vm649, %v1494, 0.0
      %v1514 = vsel %vm650, %v1495, 0.0
      %v1515 = vadd.f32 %v1506, %v1507
      %v1516 = vadd.f32 %v1515, %v1508
      %v1517 = vadd.f32 %v1516, %v1509
      %v1518 = vadd.f32 %v1517, %v1510
      %v1519 = vadd.f32 %v1518, %v1511
      %v1520 = vadd.f32 %v1519, %v1512
      %v1521 = vadd.f32 %v1520, %v1513
      %vm1522 = vcmask 523264
      %v1523 = vsel %vm1522, %v1514, 0.0
      %v1524 = vadd.f32 %v1521, %v1523
      %1525 = vadd.xlane.f32.xlu0 %v1524
      %v1526 = vpop.xlane.xlu0 %1525
      %vm1527 = vcmask 7168
      %1528 = vst.msk [vmem:[%s262] sm:$0xff] %vm1527, %v1526
      %v1529 = vmul.f32 %v1506, %v1506
      %v1530 = vmul.f32 %v1507, %v1507
      %v1531 = vmul.f32 %v1508, %v1508
      %v1532 = vmul.f32 %v1509, %v1509
      %v1533 = vmul.f32 %v1510, %v1510
      %v1534 = vmul.f32 %v1511, %v1511
      %v1535 = vmul.f32 %v1512, %v1512
      %v1536 = vmul.f32 %v1513, %v1513
      %v1537 = vmul.f32 %v1514, %v1514
      %v1538 = vadd.f32 %v1529, %v1530
      %v1539 = vadd.f32 %v1538, %v1531
      %v1540 = vadd.f32 %v1539, %v1532
      %v1541 = vadd.f32 %v1540, %v1533
      %v1542 = vadd.f32 %v1541, %v1534
      %v1543 = vadd.f32 %v1542, %v1535
      %v1544 = vadd.f32 %v1543, %v1536
      %v1545 = vsel %vm1522, %v1537, 0.0
      %v1546 = vadd.f32 %v1544, %v1545
      %1547 = vadd.xlane.f32.xlu0 %v1546
      %v1548 = vpop.xlane.xlu0 %1547
      %vm1549 = vcmask 15368
      %1550 = vst.msk [vmem:[%s262] sm:$0xff] %vm1549, %v1548
      %p1551 = scmp.lt.s32.totalorder %s18, 1
      %s1552 = scalar_select %p1551, %s18, 1
      %s1553 = smul.addr %s1552, 9
      %s1554 = smul.addr %s1553, 4
      %s1555 = scalar_lea.vmem %s5, %s1554
      %p1556 = scmp.lt.s32.totalorder %s18, 1
      %s1557 = scalar_select %p1556, %s18, 1
      %s1558 = smul.addr %s1557, 8
      %s1559 = scalar_lea.vmem %s6, %s1558
      // Predicated region
      $region41: #{conv_up_block.6} parent=39 // pred_check
        %p1560 = pneg %p146
      $region42: #{conv_up_block.6} parent=39 // pred_check_branch
        %1562 = sbr.rel (%p1560) target = $region44
      $region43: #{conv_up_block.6} parent=39 // pred_region
        _
      $region44: #{conv_up_block.6} parent=39 // pred_fallthru
        _
      // Predicated region
      $region45: #{conv_up_block.6} parent=39 // pred_check
        %p1563 = pneg %p172
      $region46: #{conv_up_block.6} parent=39 // pred_check_branch
        %1565 = sbr.rel (%p1563) target = $region48
      $region47: #{conv_up_block.6} parent=39 // pred_region
        _
      $region48: #{conv_up_block.6} parent=39 // pred_fallthru
        _
    $region40: #{conv_up_block.6} parent=5 // pred_fallthru
      _
    %p1566 = scmp.le.s32.totalorder 2, %s13
    // Predicated region
    $region49: #{conv_up_block.6} parent=5 // pred_check
      %p1567 = pneg %p1566
    $region50: #{conv_up_block.6} parent=5 // pred_check_branch
      %1569 = sbr.rel (%p1567) target = $region52
    $region51: #{conv_up_block.6} parent=5 // pred_region
      %s1570 = ssub.s32 %s13, 2
      // Predicated region
      $region53: #{conv_up_block.6} parent=51 // pred_check
        %p1571 = pneg %p152
      $region54: #{conv_up_block.6} parent=51 // pred_check_branch
        %1573 = sbr.rel (%p1571) target = $region56
      $region55: #{conv_up_block.6} parent=51 // pred_region
        %p1574 = scmp.lt.s32.totalorder %s19, 1
        %s1575 = scalar_select %p1574, %s19, 1
        %s1576 = smul.addr %s1575, 9
        %s1577 = smul.addr %s1576, 4
        %s1578 = scalar_lea.vmem %s5, %s1577
      $region56: #{conv_up_block.6} parent=51 // pred_fallthru
        _
      // Predicated region
      $region57: #{conv_up_block.6} parent=51 // pred_check
        %p1579 = pneg %p178
      $region58: #{conv_up_block.6} parent=51 // pred_check_branch
        %1581 = sbr.rel (%p1579) target = $region60
      $region59: #{conv_up_block.6} parent=51 // pred_region
        %p1582 = scmp.lt.s32.totalorder %s19, 1
        %s1583 = scalar_select %p1582, %s19, 1
        %s1584 = smul.addr %s1583, 8
        %s1585 = scalar_lea.vmem %s6, %s1584
      $region60: #{conv_up_block.6} parent=51 // pred_fallthru
        _
    $region52: #{conv_up_block.6} parent=5 // pred_fallthru
      _
  $region6: #{conv_up_block.6} parent=0 // loop_footer
    %s17 = sadd.s32 1, %s13
  $region7: #{conv_up_block.6} parent=0 // loop_footer_branch
    %12 = sbr.rel target = $region3
  $region8: #{conv_up_block.6} parent=0 // loop_exit
    _

// kernel: conv_up_block.5
$region0: #{conv_up_block.5}
  #allocation0 [shape = 'u32[]', space=smem, size = 0x4, offset = 0x4, fixed_abs, tag = 'smem constant byte address 0x4 - core index']
  #allocation1 [shape = 'u32[72,128]{1,0:T(1,128)}', space=vmem, size = 0x9000, scoped, tag = 'internal scratch']
  #allocation2 [shape = 'bf16[144,1088]{1,0:T(8,128)(2,1)}', space=vmem, size = 0x51000, scoped, tag = 'scratch operand']
  %s0 = inlined_call_operand.vmem [shape: bf16[2,8,1280], index: 0, kind: input, shape index: {}]
  %s1 = inlined_call_operand.vmem [shape: bf16[2,8,1280], index: 1, kind: input, shape index: {}]
  %s2 = inlined_call_operand.vmem [shape: bf16[8,144], index: 2, kind: input, shape index: {}]
  %s3 = inlined_call_operand.vmem [shape: f32[8,1], index: 3, kind: input, shape index: {}]
  %s4 = inlined_call_operand.vmem [shape: bf16[2,8,1088], index: 4, kind: output, shape index: {0}]
  %s5 = inlined_call_operand.vmem [shape: f32[2,8,2], index: 5, kind: output, shape index: {1}]
  %6 = xla_tuple %s4, %s5
  %s7 = sld [smem:[#allocation0]]
  $region57: #{conv_up_block.5} parent=0
    _
  %s9 = ssub.s32 1, %s7
  %s10 = scalar_select 0, %s9, %s7
  loop: start=0, step=1, limit=4
  $region2: #{conv_up_block.5} parent=0 // loop_pre_header
    _
  $region3: #{conv_up_block.5} parent=0 // loop_header
    %s12 = sphi 0, %s16
    %p13 = scmp.ge.s32.totalorder %s12, 4
    %s22 = sphi 0, %s24
    %s25 = sphi 0, %s22
    %s26 = sphi 0, %s25
    %s42 = sphi 0, %s26
    %s48 = sphi 0, %s50
    %s51 = sphi 0, %s48
    %s52 = sphi 0, %s51
    %s68 = sphi 0, %s52
    %s72 = sphi 0, %s72
    %s74 = sphi 0, %s72
    %s75 = sphi 0, %s74
    %s89 = sphi 0, %s75
    %s93 = sphi 0, %s93
    %s95 = sphi 0, %s93
    %s96 = sphi 0, %s95
    %s110 = sphi 0, %s96
    %s116 = sphi 0, %s118
    %s119 = sphi 0, %s116
    %s120 = sphi 0, %s119
    %s136 = sphi 0, %s120
    %s142 = sphi 0, %s144
    %s145 = sphi 0, %s142
    %s146 = sphi 0, %s145
    %s162 = sphi 0, %s146
  $region4: #{conv_up_block.5} parent=0 // loop_header_branch
    %15 = sbr.rel (%p13) target = $region8
  $region5: #{conv_up_block.5} parent=0 // loop_body
    %s17 = ssub.s32 %s12, 1
    %s18 = ssub.s32 %s12, 2
    %s19 = sadd.s32 %s12, 1
    %s20 = ssub.s32 %s12, %s19
    %p21 = scmp.eq.s32.totalorder %s20, 0
    %s23 = sadd.s32 %s22, 1
    %s24 = scalar_select %p21, %s22, %s23
    %p27 = pneg %p21
    %p28 = scmp.eq.s32.totalorder %s12, 1
    %p29 = por %p27, %p28
    %p30 = scmp.ne.s32.totalorder %s22, %s25
    %p31 = scmp.eq.s32.totalorder %s12, 0
    %p32 = por %p30, %p31
    %p33 = scmp.ne.s32.totalorder %s22, %s25
    %p34 = scmp.eq.s32.totalorder %s17, 1
    %p35 = por %p33, %p34
    %p36 = scmp.ne.s32.totalorder %s25, %s26
    %p37 = scmp.eq.s32.totalorder %s17, 0
    %p38 = por %p36, %p37
    %p39 = scmp.ne.s32.totalorder %s25, %s26
    %p40 = scmp.eq.s32.totalorder %s18, 1
    %p41 = por %p39, %p40
    %p43 = scmp.ne.s32.totalorder %s26, %s42
    %p44 = scmp.eq.s32.totalorder %s18, 0
    %p45 = por %p43, %p44
    %s46 = ssub.s32 %s12, %s19
    %p47 = scmp.eq.s32.totalorder %s46, 0
    %s49 = sadd.s32 %s48, 1
    %s50 = scalar_select %p47, %s48, %s49
    %p53 = pneg %p47
    %p54 = scmp.eq.s32.totalorder %s12, 1
    %p55 = por %p53, %p54
    %p56 = scmp.ne.s32.totalorder %s48, %s51
    %p57 = scmp.eq.s32.totalorder %s12, 0
    %p58 = por %p56, %p57
    %p59 = scmp.ne.s32.totalorder %s48, %s51
    %p60 = scmp.eq.s32.totalorder %s17, 1
    %p61 = por %p59, %p60
    %p62 = scmp.ne.s32.totalorder %s51, %s52
    %p63 = scmp.eq.s32.totalorder %s17, 0
    %p64 = por %p62, %p63
    %p65 = scmp.ne.s32.totalorder %s51, %s52
    %p66 = scmp.eq.s32.totalorder %s18, 1
    %p67 = por %p65, %p66
    %p69 = scmp.ne.s32.totalorder %s52, %s68
    %p70 = scmp.eq.s32.totalorder %s18, 0
    %p71 = por %p69, %p70
    %s73 = sadd.s32 %s72, 1
    %p76 = scmp.eq.s32.totalorder %s12, 1
    %p77 = scmp.ne.s32.totalorder %s72, %s74
    %p78 = scmp.eq.s32.totalorder %s12, 0
    %p79 = por %p77, %p78
    %p80 = scmp.ne.s32.totalorder %s72, %s74
    %p81 = scmp.eq.s32.totalorder %s17, 1
    %p82 = por %p80, %p81
    %p83 = scmp.ne.s32.totalorder %s74, %s75
    %p84 = scmp.eq.s32.totalorder %s17, 0
    %p85 = por %p83, %p84
    %p86 = scmp.ne.s32.totalorder %s74, %s75
    %p87 = scmp.eq.s32.totalorder %s18, 1
    %p88 = por %p86, %p87
    %p90 = scmp.ne.s32.totalorder %s75, %s89
    %p91 = scmp.eq.s32.totalorder %s18, 0
    %p92 = por %p90, %p91
    %s94 = sadd.s32 %s93, 1
    %p97 = scmp.eq.s32.totalorder %s12, 1
    %p98 = scmp.ne.s32.totalorder %s93, %s95
    %p99 = scmp.eq.s32.totalorder %s12, 0
    %p100 = por %p98, %p99
    %p101 = scmp.ne.s32.totalorder %s93, %s95
    %p102 = scmp.eq.s32.totalorder %s17, 1
    %p103 = por %p101, %p102
    %p104 = scmp.ne.s32.totalorder %s95, %s96
    %p105 = scmp.eq.s32.totalorder %s17, 0
    %p106 = por %p104, %p105
    %p107 = scmp.ne.s32.totalorder %s95, %s96
    %p108 = scmp.eq.s32.totalorder %s18, 1
    %p109 = por %p107, %p108
    %p111 = scmp.ne.s32.totalorder %s96, %s110
    %p112 = scmp.eq.s32.totalorder %s18, 0
    %p113 = por %p111, %p112
    %s114 = ssub.s32 %s12, %s19
    %p115 = scmp.eq.s32.totalorder %s114, 0
    %s117 = sadd.s32 %s116, 1
    %s118 = scalar_select %p115, %s116, %s117
    %p121 = pneg %p115
    %p122 = scmp.eq.s32.totalorder %s12, 1
    %p123 = por %p121, %p122
    %p124 = scmp.ne.s32.totalorder %s116, %s119
    %p125 = scmp.eq.s32.totalorder %s12, 0
    %p126 = por %p124, %p125
    %p127 = scmp.ne.s32.totalorder %s116, %s119
    %p128 = scmp.eq.s32.totalorder %s17, 1
    %p129 = por %p127, %p128
    %p130 = scmp.ne.s32.totalorder %s119, %s120
    %p131 = scmp.eq.s32.totalorder %s17, 0
    %p132 = por %p130, %p131
    %p133 = scmp.ne.s32.totalorder %s119, %s120
    %p134 = scmp.eq.s32.totalorder %s18, 1
    %p135 = por %p133, %p134
    %p137 = scmp.ne.s32.totalorder %s120, %s136
    %p138 = scmp.eq.s32.totalorder %s18, 0
    %p139 = por %p137, %p138
    %s140 = ssub.s32 %s12, %s19
    %p141 = scmp.eq.s32.totalorder %s140, 0
    %s143 = sadd.s32 %s142, 1
    %s144 = scalar_select %p141, %s142, %s143
    %p147 = pneg %p141
    %p148 = scmp.eq.s32.totalorder %s12, 1
    %p149 = por %p147, %p148
    %p150 = scmp.ne.s32.totalorder %s142, %s145
    %p151 = scmp.eq.s32.totalorder %s12, 0
    %p152 = por %p150, %p151
    %p153 = scmp.ne.s32.totalorder %s142, %s145
    %p154 = scmp.eq.s32.totalorder %s17, 1
    %p155 = por %p153, %p154
    %p156 = scmp.ne.s32.totalorder %s145, %s146
    %p157 = scmp.eq.s32.totalorder %s17, 0
    %p158 = por %p156, %p157
    %p159 = scmp.ne.s32.totalorder %s145, %s146
    %p160 = scmp.eq.s32.totalorder %s18, 1
    %p161 = por %p159, %p160
    %p163 = scmp.ne.s32.totalorder %s146, %s162
    %p164 = scmp.eq.s32.totalorder %s18, 0
    %p165 = por %p163, %p164
    %p166 = scmp.le.s32.totalorder 1, %s12
    %p167 = scmp.lt.s32.totalorder %s12, 3
    %p168 = pnand %p166, %p167
    %p169 = pneg %p168
    // Predicated region
    $region9: #{conv_up_block.5} parent=5 // pred_check
      _
    $region10: #{conv_up_block.5} parent=5 // pred_check_branch
      %171 = sbr.rel (%p168) target = $region12
    $region11: #{conv_up_block.5} parent=5 // pred_region
      %s172 = ssub.s32 %s12, 1
      // Predicated region
      $region13: #{conv_up_block.5} parent=11 // pred_check
        %p173 = pneg %p85
      $region14: #{conv_up_block.5} parent=11 // pred_check_branch
        %175 = sbr.rel (%p173) target = $region16
      $region15: #{conv_up_block.5} parent=11 // pred_region
        _
      $region16: #{conv_up_block.5} parent=11 // pred_fallthru
        _
      // Predicated region
      $region17: #{conv_up_block.5} parent=11 // pred_check
        %p176 = pneg %p106
      $region18: #{conv_up_block.5} parent=11 // pred_check_branch
        %178 = sbr.rel (%p176) target = $region20
      $region19: #{conv_up_block.5} parent=11 // pred_region
        _
      $region20: #{conv_up_block.5} parent=11 // pred_fallthru
        _
    $region12: #{conv_up_block.5} parent=5 // pred_fallthru
      _
    %p179 = scmp.lt.s32.totalorder %s12, 2
    // Predicated region
    $region21: #{conv_up_block.5} parent=5 // pred_check
      %p180 = pneg %p179
    $region22: #{conv_up_block.5} parent=5 // pred_check_branch
      %182 = sbr.rel (%p180) target = $region24
    $region23: #{conv_up_block.5} parent=5 // pred_region
      // Predicated region
      $region25: #{conv_up_block.5} parent=23 // pred_check
        %p183 = pneg %p32
      $region26: #{conv_up_block.5} parent=23 // pred_check_branch
        %185 = sbr.rel (%p183) target = $region28
      $region27: #{conv_up_block.5} parent=23 // pred_region
        %p186 = scmp.lt.s32.totalorder %s12, 1
        %s187 = scalar_select %p186, %s12, 1
        %s188 = smul.addr %s187, 10
        %s189 = smul.addr %s188, 4
        %s190 = scalar_lea.vmem %s0, %s189
      $region28: #{conv_up_block.5} parent=23 // pred_fallthru
        _
      // Predicated region
      $region29: #{conv_up_block.5} parent=23 // pred_check
        %p191 = pneg %p58
      $region30: #{conv_up_block.5} parent=23 // pred_check_branch
        %193 = sbr.rel (%p191) target = $region32
      $region31: #{conv_up_block.5} parent=23 // pred_region
        %p194 = scmp.lt.s32.totalorder %s12, 1
        %s195 = scalar_select %p194, %s12, 1
        %s196 = smul.addr %s195, 10
        %s197 = smul.addr %s196, 4
        %s198 = scalar_lea.vmem %s1, %s197
      $region32: #{conv_up_block.5} parent=23 // pred_fallthru
        _
    $region24: #{conv_up_block.5} parent=5 // pred_fallthru
      _
    %p199 = scmp.le.s32.totalorder 1, %s12
    %p200 = scmp.lt.s32.totalorder %s12, 3
    %p201 = pnand %p199, %p200
    %p202 = pneg %p201
    // Predicated region
    $region33: #{conv_up_block.5} parent=5 // pred_check
      _
    $region34: #{conv_up_block.5} parent=5 // pred_check_branch
      %204 = sbr.rel (%p201) target = $region36
    $region35: #{conv_up_block.5} parent=5 // pred_region
      %s205 = ssub.s32 %s12, 1
      %p206 = scmp.lt.s32.totalorder %s17, 1
      %s207 = scalar_select %p206, %s17, 1
      %s208 = smul.addr %s207, 10
      %s209 = smul.addr %s208, 4
      %s210 = scalar_lea.vmem %s0, %s209
      %p211 = pneg %p38
      %p212 = pneg %p35
      %p213 = scmp.lt.s32.totalorder %s17, 1
      %s214 = scalar_select %p213, %s17, 1
      %s215 = smul.addr %s214, 10
      %s216 = smul.addr %s215, 4
      %s217 = scalar_lea.vmem %s1, %s216
      %p218 = pneg %p64
      %p219 = pneg %p61
      %p220 = pneg %p85
      %p221 = pneg %p82
      %p222 = pneg %p106
      %p223 = pneg %p103
      %p224 = pneg %p132
      %p225 = pneg %p129
      %p226 = scmp.lt.s32.totalorder %s17, 1
      %s227 = scalar_select %p226, %s17, 1
      %s228 = smul.addr %s227, 9
      %s229 = smul.addr %s228, 4
      %s230 = scalar_lea.vmem %s4, %s229
      %p231 = pneg %p158
      %p232 = pneg %p155
      %p233 = scmp.lt.s32.totalorder %s17, 1
      %s234 = scalar_select %p233, %s17, 1
      %s235 = smul.addr %s234, 8
      %s236 = scalar_lea.vmem %s5, %s235
      %p237 = scmp.lt.s32.totalorder %s17, 1
      %s238 = scalar_select %p237, %s17, 1
      %s239 = smul.addr %s238, 10
      %s240 = smul.addr %s239, 4
      %s241 = scalar_lea.vmem %s0, %s240
      %p242 = scmp.lt.s32.totalorder %s17, 1
      %s243 = scalar_select %p242, %s17, 1
      %s244 = smul.addr %s243, 10
      %s245 = smul.addr %s244, 4
      %s246 = scalar_lea.vmem %s1, %s245
      %p247 = scmp.lt.s32.totalorder %s17, 1
      %s248 = scalar_select %p247, %s17, 1
      %s249 = smul.addr %s248, 9
      %s250 = smul.addr %s249, 4
      %s251 = scalar_lea.vmem %s4, %s250
      %p252 = scmp.lt.s32.totalorder %s17, 1
      %s253 = scalar_select %p252, %s17, 1
      %s254 = smul.addr %s253, 8
      %s255 = scalar_lea.vmem %s5, %s254
      %v257 = vld [vmem:[%s241] sm:$0xff]
      %v258 = vld [vmem:[%s241 + $0x8] sm:$0xff]
      %v259 = vld [vmem:[%s241 + $0x10] sm:$0xff]
      %v260 = vld [vmem:[%s241 + $0x18] sm:$0xff]
      %v261 = vld [vmem:[%s241 + $0x20] sm:$0xf]
      %262 = vst [vmem:[#allocation2] sm:$0xff] %v257
      %263 = vst [vmem:[#allocation2 + $0x8] sm:$0xff] %v258
      %264 = vst [vmem:[#allocation2 + $0x10] sm:$0xff] %v259
      %265 = vst [vmem:[#allocation2 + $0x18] sm:$0xff] %v260
      %vm266 = vcmask 519168
      %267 = vst.msk [vmem:[#allocation2 + $0x20] sm:$0xf] %vm266, %v261
      %v268 = vld [vmem:[%s246] sm:$0xff]
      %v269 = vld [vmem:[%s246 + $0x8] sm:$0xff]
      %v270 = vld [vmem:[%s246 + $0x10] sm:$0xff]
      %v271 = vld [vmem:[%s246 + $0x18] sm:$0xff]
      %v272 = vld [vmem:[%s246 + $0x20] sm:$0xf]
      %273 = vst [vmem:[#allocation2 + $0x24] sm:$0xff] %v268
      %274 = vst [vmem:[#allocation2 + $0x2c] sm:$0xff] %v269
      %275 = vst [vmem:[#allocation2 + $0x34] sm:$0xff] %v270
      %276 = vst [vmem:[#allocation2 + $0x3c] sm:$0xff] %v271
      %277 = vst.msk [vmem:[#allocation2 + $0x44] sm:$0xf] %vm266, %v272
      %v278 = vld [vmem:[%s241] sm:$0xff]
      %v279 = vld [vmem:[%s241 + $0x8] sm:$0xff]
      %v280 = vld [vmem:[%s241 + $0x10] sm:$0xff]
      %v281 = vld [vmem:[%s241 + $0x18] sm:$0xff]
      %v282 = vld [vmem:[%s241 + $0x20] sm:$0xf]
      %288 = vrot.lane.b32.xlu0 %v278, 127
      %v289 = vpop.permute.xlu0 %288
      %290 = vrot.lane.b32.xlu0 %v279, 127
      %v291 = vpop.permute.xlu0 %290
      %292 = vrot.lane.b32.xlu0 %v280, 127
      %v293 = vpop.permute.xlu0 %292
      %294 = vrot.lane.b32.xlu0 %v281, 127
      %v295 = vpop.permute.xlu0 %294
      %296 = vrot.lane.b32.xlu0 %v282, 127
      %v297 = vpop.permute.xlu0 %296
      %v298 = vrot.slane %v289, 4
      %v299 = vrot.slane %v291, 4
      %v300 = vrot.slane %v293, 4
      %v301 = vrot.slane %v295, 4
      %v302 = vrot.slane %v297, 4
      %vm303 = vcmask 1043456
      %v304 = vsel %vm303, %v298, %v299
      %vm305 = vcmask 1039360
      %v306 = vsel %vm305, %v289, %v304
      %v307 = vsel %vm303, %v299, %v300
      %v308 = vsel %vm305, %v291, %v307
      %v309 = vsel %vm303, %v300, %v301
      %v310 = vsel %vm305, %v293, %v309
      %v311 = vsel %vm303, %v301, %v302
      %v312 = vsel %vm305, %v295, %v311
      %318 = vst [vmem:[#allocation2 + $0x48] sm:$0xff] %v306
      %319 = vst [vmem:[#allocation2 + $0x50] sm:$0xff] %v308
      %320 = vst [vmem:[#allocation2 + $0x58] sm:$0xff] %v310
      %321 = vst [vmem:[#allocation2 + $0x60] sm:$0xff] %v312
      %322 = vst.msk [vmem:[#allocation2 + $0x68] sm:$0xf] %vm266, %v297
      %v323 = vld [vmem:[%s246] sm:$0xff]
      %v324 = vld [vmem:[%s246 + $0x8] sm:$0xff]
      %v325 = vld [vmem:[%s246 + $0x10] sm:$0xff]
      %v326 = vld [vmem:[%s246 + $0x18] sm:$0xff]
      %v327 = vld [vmem:[%s246 + $0x20] sm:$0xf]
      %333 = vrot.lane.b32.xlu0 %v323, 127
      %v334 = vpop.permute.xlu0 %333
      %335 = vrot.lane.b32.xlu0 %v324, 127
      %v336 = vpop.permute.xlu0 %335
      %337 = vrot.lane.b32.xlu0 %v325, 127
      %v338 = vpop.permute.xlu0 %337
      %339 = vrot.lane.b32.xlu0 %v326, 127
      %v340 = vpop.permute.xlu0 %339
      %341 = vrot.lane.b32.xlu0 %v327, 127
      %v342 = vpop.permute.xlu0 %341
      %v343 = vrot.slane %v334, 4
      %v344 = vrot.slane %v336, 4
      %v345 = vrot.slane %v338, 4
      %v346 = vrot.slane %v340, 4
      %v347 = vrot.slane %v342, 4
      %v348 = vsel %vm303, %v343, %v344
      %v349 = vsel %vm305, %v334, %v348
      %v350 = vsel %vm303, %v344, %v345
      %v351 = vsel %vm305, %v336, %v350
      %v352 = vsel %vm303, %v345, %v346
      %v353 = vsel %vm305, %v338, %v352
      %v354 = vsel %vm303, %v346, %v347
      %v355 = vsel %vm305, %v340, %v354
      %361 = vst [vmem:[#allocation2 + $0x6c] sm:$0xff] %v349
      %362 = vst [vmem:[#allocation2 + $0x74] sm:$0xff] %v351
      %363 = vst [vmem:[#allocation2 + $0x7c] sm:$0xff] %v353
      %364 = vst [vmem:[#allocation2 + $0x84] sm:$0xff] %v355
      %365 = vst.msk [vmem:[#allocation2 + $0x8c] sm:$0xf] %vm266, %v342
      %v366 = vld [vmem:[%s241] sm:$0xff]
      %v367 = vld [vmem:[%s241 + $0x8] sm:$0xff]
      %v368 = vld [vmem:[%s241 + $0x10] sm:$0xff]
      %v369 = vld [vmem:[%s241 + $0x18] sm:$0xff]
      %v370 = vld [vmem:[%s241 + $0x20] sm:$0xf]
      %376 = vrot.lane.b32.xlu0 %v366, 126
      %v377 = vpop.permute.xlu0 %376
      %378 = vrot.lane.b32.xlu0 %v367, 126
      %v379 = vpop.permute.xlu0 %378
      %380 = vrot.lane.b32.xlu0 %v368, 126
      %v381 = vpop.permute.xlu0 %380
      %382 = vrot.lane.b32.xlu0 %v369, 126
      %v383 = vpop.permute.xlu0 %382
      %384 = vrot.lane.b32.xlu0 %v370, 126
      %v385 = vpop.permute.xlu0 %384
      %v386 = vrot.slane %v377, 4
      %v387 = vrot.slane %v379, 4
      %v388 = vrot.slane %v381, 4
      %v389 = vrot.slane %v383, 4
      %v390 = vrot.slane %v385, 4
      %v391 = vsel %vm303, %v386, %v387
      %vm392 = vcmask 1031168
      %v393 = vsel %vm392, %v377, %v391
      %v394 = vsel %vm303, %v387, %v388
      %v395 = vsel %vm392, %v379, %v394
      %v396 = vsel %vm303, %v388, %v389
      %v397 = vsel %vm392, %v381, %v396
      %v398 = vsel %vm303, %v389, %v390
      %v399 = vsel %vm392, %v383, %v398
      %405 = vst [vmem:[#allocation2 + $0x90] sm:$0xff] %v393
      %406 = vst [vmem:[#allocation2 + $0x98] sm:$0xff] %v395
      %407 = vst [vmem:[#allocation2 + $0xa0] sm:$0xff] %v397
      %408 = vst [vmem:[#allocation2 + $0xa8] sm:$0xff] %v399
      %409 = vst.msk [vmem:[#allocation2 + $0xb0] sm:$0xf] %vm266, %v385
      %v410 = vld [vmem:[%s246] sm:$0xff]
      %v411 = vld [vmem:[%s246 + $0x8] sm:$0xff]
      %v412 = vld [vmem:[%s246 + $0x10] sm:$0xff]
      %v413 = vld [vmem:[%s246 + $0x18] sm:$0xff]
      %v414 = vld [vmem:[%s246 + $0x20] sm:$0xf]
      %420 = vrot.lane.b32.xlu0 %v410, 126
      %v421 = vpop.permute.xlu0 %420
      %422 = vrot.lane.b32.xlu0 %v411, 126
      %v423 = vpop.permute.xlu0 %422
      %424 = vrot.lane.b32.xlu0 %v412, 126
      %v425 = vpop.permute.xlu0 %424
      %426 = vrot.lane.b32.xlu0 %v413, 126
      %v427 = vpop.permute.xlu0 %426
      %428 = vrot.lane.b32.xlu0 %v414, 126
      %v429 = vpop.permute.xlu0 %428
      %v430 = vrot.slane %v421, 4
      %v431 = vrot.slane %v423, 4
      %v432 = vrot.slane %v425, 4
      %v433 = vrot.slane %v427, 4
      %v434 = vrot.slane %v429, 4
      %v435 = vsel %vm303, %v430, %v431
      %v436 = vsel %vm392, %v421, %v435
      %v437 = vsel %vm303, %v431, %v432
      %v438 = vsel %vm392, %v423, %v437
      %v439 = vsel %vm303, %v432, %v433
      %v440 = vsel %vm392, %v425, %v439
      %v441 = vsel %vm303, %v433, %v434
      %v442 = vsel %vm392, %v427, %v441
      %448 = vst [vmem:[#allocation2 + $0xb4] sm:$0xff] %v436
      %449 = vst [vmem:[#allocation2 + $0xbc] sm:$0xff] %v438
      %450 = vst [vmem:[#allocation2 + $0xc4] sm:$0xff] %v440
      %451 = vst [vmem:[#allocation2 + $0xcc] sm:$0xff] %v442
      %452 = vst.msk [vmem:[#allocation2 + $0xd4] sm:$0xf] %vm266, %v429
      %v453 = vld [vmem:[%s241] sm:$0xff]
      %v454 = vld [vmem:[%s241 + $0x8] sm:$0xff]
      %v455 = vld [vmem:[%s241 + $0x10] sm:$0xff]
      %v456 = vld [vmem:[%s241 + $0x18] sm:$0xff]
      %v457 = vld [vmem:[%s241 + $0x20] sm:$0xf]
      %463 = vrot.lane.b32.xlu0 %v453, 94
      %v464 = vpop.permute.xlu0 %463
      %465 = vrot.lane.b32.xlu0 %v454, 94
      %v466 = vpop.permute.xlu0 %465
      %467 = vrot.lane.b32.xlu0 %v455, 94
      %v468 = vpop.permute.xlu0 %467
      %469 = vrot.lane.b32.xlu0 %v456, 94
      %v470 = vpop.permute.xlu0 %469
      %471 = vrot.lane.b32.xlu0 %v457, 94
      %v472 = vpop.permute.xlu0 %471
      %v473 = vrot.slane %v464, 4
      %v474 = vrot.slane %v466, 4
      %v475 = vrot.slane %v468, 4
      %v476 = vrot.slane %v470, 4
      %v477 = vrot.slane %v472, 4
      %v478 = vsel %vm303, %v473, %v474
      %vm479 = vcmask 769024
      %v480 = vsel %vm479, %v464, %v478
      %v481 = vsel %vm303, %v474, %v475
      %v482 = vsel %vm479, %v466, %v481
      %v483 = vsel %vm303, %v475, %v476
      %v484 = vsel %vm479, %v468, %v483
      %v485 = vsel %vm303, %v476, %v477
      %v486 = vsel %vm479, %v470, %v485
      %492 = vst [vmem:[#allocation2 + $0xd8] sm:$0xff] %v480
      %493 = vst [vmem:[#allocation2 + $0xe0] sm:$0xff] %v482
      %494 = vst [vmem:[#allocation2 + $0xe8] sm:$0xff] %v484
      %495 = vst [vmem:[#allocation2 + $0xf0] sm:$0xff] %v486
      %496 = vst.msk [vmem:[#allocation2 + $0xf8] sm:$0xf] %vm266, %v472
      %v497 = vld [vmem:[%s246] sm:$0xff]
      %v498 = vld [vmem:[%s246 + $0x8] sm:$0xff]
      %v499 = vld [vmem:[%s246 + $0x10] sm:$0xff]
      %v500 = vld [vmem:[%s246 + $0x18] sm:$0xff]
      %v501 = vld [vmem:[%s246 + $0x20] sm:$0xf]
      %507 = vrot.lane.b32.xlu0 %v497, 94
      %v508 = vpop.permute.xlu0 %507
      %509 = vrot.lane.b32.xlu0 %v498, 94
      %v510 = vpop.permute.xlu0 %509
      %511 = vrot.lane.b32.xlu0 %v499, 94
      %v512 = vpop.permute.xlu0 %511
      %513 = vrot.lane.b32.xlu0 %v500, 94
      %v514 = vpop.permute.xlu0 %513
      %515 = vrot.lane.b32.xlu0 %v501, 94
      %v516 = vpop.permute.xlu0 %515
      %v517 = vrot.slane %v508, 4
      %v518 = vrot.slane %v510, 4
      %v519 = vrot.slane %v512, 4
      %v520 = vrot.slane %v514, 4
      %v521 = vrot.slane %v516, 4
      %v522 = vsel %vm303, %v517, %v518
      %v523 = vsel %vm479, %v508, %v522
      %v524 = vsel %vm303, %v518, %v519
      %v525 = vsel %vm479, %v510, %v524
      %v526 = vsel %vm303, %v519, %v520
      %v527 = vsel %vm479, %v512, %v526
      %v528 = vsel %vm303, %v520, %v521
      %v529 = vsel %vm479, %v514, %v528
      %535 = vst [vmem:[#allocation2 + $0xfc] sm:$0xff] %v523
      %536 = vst [vmem:[#allocation2 + $0x104] sm:$0xff] %v525
      %537 = vst [vmem:[#allocation2 + $0x10c] sm:$0xff] %v527
      %538 = vst [vmem:[#allocation2 + $0x114] sm:$0xff] %v529
      %539 = vst.msk [vmem:[#allocation2 + $0x11c] sm:$0xf] %vm266, %v516
      %v540 = vld [vmem:[%s241] sm:$0xff]
      %v541 = vld [vmem:[%s241 + $0x8] sm:$0xff]
      %v542 = vld [vmem:[%s241 + $0x10] sm:$0xff]
      %v543 = vld [vmem:[%s241 + $0x18] sm:$0xff]
      %v544 = vld [vmem:[%s241 + $0x20] sm:$0xf]
      %550 = vrot.lane.b32.xlu0 %v540, 93
      %v551 = vpop.permute.xlu0 %550
      %552 = vrot.lane.b32.xlu0 %v541, 93
      %v553 = vpop.permute.xlu0 %552
      %554 = vrot.lane.b32.xlu0 %v542, 93
      %v555 = vpop.permute.xlu0 %554
      %556 = vrot.lane.b32.xlu0 %v543, 93
      %v557 = vpop.permute.xlu0 %556
      %558 = vrot.lane.b32.xlu0 %v544, 93
      %v559 = vpop.permute.xlu0 %558
      %v560 = vrot.slane %v551, 4
      %v561 = vrot.slane %v553, 4
      %v562 = vrot.slane %v555, 4
      %v563 = vrot.slane %v557, 4
      %v564 = vrot.slane %v559, 4
      %v565 = vsel %vm303, %v560, %v561
      %vm566 = vcmask 760832
      %v567 = vsel %vm566, %v551, %v565
      %v568 = vsel %vm303, %v561, %v562
      %v569 = vsel %vm566, %v553, %v568
      %v570 = vsel %vm303, %v562, %v563
      %v571 = vsel %vm566, %v555, %v570
      %v572 = vsel %vm303, %v563, %v564
      %v573 = vsel %vm566, %v557, %v572
      %579 = vst [vmem:[#allocation2 + $0x120] sm:$0xff] %v567
      %580 = vst [vmem:[#allocation2 + $0x128] sm:$0xff] %v569
      %581 = vst [vmem:[#allocation2 + $0x130] sm:$0xff] %v571
      %582 = vst [vmem:[#allocation2 + $0x138] sm:$0xff] %v573
      %583 = vst.msk [vmem:[#allocation2 + $0x140] sm:$0xf] %vm266, %v559
      %v584 = vld [vmem:[%s246] sm:$0xff]
      %v585 = vld [vmem:[%s246 + $0x8] sm:$0xff]
      %v586 = vld [vmem:[%s246 + $0x10] sm:$0xff]
      %v587 = vld [vmem:[%s246 + $0x18] sm:$0xff]
      %v588 = vld [vmem:[%s246 + $0x20] sm:$0xf]
      %594 = vrot.lane.b32.xlu0 %v584, 93
      %v595 = vpop.permute.xlu0 %594
      %596 = vrot.lane.b32.xlu0 %v585, 93
      %v597 = vpop.permute.xlu0 %596
      %598 = vrot.lane.b32.xlu0 %v586, 93
      %v599 = vpop.permute.xlu0 %598
      %600 = vrot.lane.b32.xlu0 %v587, 93
      %v601 = vpop.permute.xlu0 %600
      %602 = vrot.lane.b32.xlu0 %v588, 93
      %v603 = vpop.permute.xlu0 %602
      %v604 = vrot.slane %v595, 4
      %v605 = vrot.slane %v597, 4
      %v606 = vrot.slane %v599, 4
      %v607 = vrot.slane %v601, 4
      %v608 = vrot.slane %v603, 4
      %v609 = vsel %vm303, %v604, %v605
      %v610 = vsel %vm566, %v595, %v609
      %v611 = vsel %vm303, %v605, %v606
      %v612 = vsel %vm566, %v597, %v611
      %v613 = vsel %vm303, %v606, %v607
      %v614 = vsel %vm566, %v599, %v613
      %v615 = vsel %vm303, %v607, %v608
      %v616 = vsel %vm566, %v601, %v615
      %622 = vst [vmem:[#allocation2 + $0x144] sm:$0xff] %v610
      %623 = vst [vmem:[#allocation2 + $0x14c] sm:$0xff] %v612
      %624 = vst [vmem:[#allocation2 + $0x154] sm:$0xff] %v614
      %625 = vst [vmem:[#allocation2 + $0x15c] sm:$0xff] %v616
      %626 = vst.msk [vmem:[#allocation2 + $0x164] sm:$0xf] %vm266, %v603
      %v627 = vld [vmem:[%s241] sm:$0xff]
      %v628 = vld [vmem:[%s241 + $0x8] sm:$0xff]
      %v629 = vld [vmem:[%s241 + $0x10] sm:$0xff]
      %v630 = vld [vmem:[%s241 + $0x18] sm:$0xff]
      %v631 = vld [vmem:[%s241 + $0x20] sm:$0xf]
      %637 = vrot.lane.b32.xlu0 %v627, 92
      %v638 = vpop.permute.xlu0 %637
      %639 = vrot.lane.b32.xlu0 %v628, 92
      %v640 = vpop.permute.xlu0 %639
      %641 = vrot.lane.b32.xlu0 %v629, 92
      %v642 = vpop.permute.xlu0 %641
      %643 = vrot.lane.b32.xlu0 %v630, 92
      %v644 = vpop.permute.xlu0 %643
      %645 = vrot.lane.b32.xlu0 %v631, 92
      %v646 = vpop.permute.xlu0 %645
      %v647 = vrot.slane %v638, 4
      %v648 = vrot.slane %v640, 4
      %v649 = vrot.slane %v642, 4
      %v650 = vrot.slane %v644, 4
      %v651 = vrot.slane %v646, 4
      %v652 = vsel %vm303, %v647, %v648
      %vm653 = vcmask 752640
      %v654 = vsel %vm653, %v638, %v652
      %v655 = vsel %vm303, %v648, %v649
      %v656 = vsel %vm653, %v640, %v655
      %v657 = vsel %vm303, %v649, %v650
      %v658 = vsel %vm653, %v642, %v657
      %v659 = vsel %vm303, %v650, %v651
      %v660 = vsel %vm653, %v644, %v659
      %666 = vst [vmem:[#allocation2 + $0x168] sm:$0xff] %v654
      %667 = vst [vmem:[#allocation2 + $0x170] sm:$0xff] %v656
      %668 = vst [vmem:[#allocation2 + $0x178] sm:$0xff] %v658
      %669 = vst [vmem:[#allocation2 + $0x180] sm:$0xff] %v660
      %670 = vst.msk [vmem:[#allocation2 + $0x188] sm:$0xf] %vm266, %v646
      %v671 = vld [vmem:[%s246] sm:$0xff]
      %v672 = vld [vmem:[%s246 + $0x8] sm:$0xff]
      %v673 = vld [vmem:[%s246 + $0x10] sm:$0xff]
      %v674 = vld [vmem:[%s246 + $0x18] sm:$0xff]
      %v675 = vld [vmem:[%s246 + $0x20] sm:$0xf]
      %681 = vrot.lane.b32.xlu0 %v671, 92
      %v682 = vpop.permute.xlu0 %681
      %683 = vrot.lane.b32.xlu0 %v672, 92
      %v684 = vpop.permute.xlu0 %683
      %685 = vrot.lane.b32.xlu0 %v673, 92
      %v686 = vpop.permute.xlu0 %685
      %687 = vrot.lane.b32.xlu0 %v674, 92
      %v688 = vpop.permute.xlu0 %687
      %689 = vrot.lane.b32.xlu0 %v675, 92
      %v690 = vpop.permute.xlu0 %689
      %v691 = vrot.slane %v682, 4
      %v692 = vrot.slane %v684, 4
      %v693 = vrot.slane %v686, 4
      %v694 = vrot.slane %v688, 4
      %v695 = vrot.slane %v690, 4
      %v696 = vsel %vm303, %v691, %v692
      %v697 = vsel %vm653, %v682, %v696
      %v698 = vsel %vm303, %v692, %v693
      %v699 = vsel %vm653, %v684, %v698
      %v700 = vsel %vm303, %v693, %v694
      %v701 = vsel %vm653, %v686, %v700
      %v702 = vsel %vm303, %v694, %v695
      %v703 = vsel %vm653, %v688, %v702
      %709 = vst [vmem:[#allocation2 + $0x18c] sm:$0xff] %v697
      %710 = vst [vmem:[#allocation2 + $0x194] sm:$0xff] %v699
      %711 = vst [vmem:[#allocation2 + $0x19c] sm:$0xff] %v701
      %712 = vst [vmem:[#allocation2 + $0x1a4] sm:$0xff] %v703
      %713 = vst.msk [vmem:[#allocation2 + $0x1ac] sm:$0xf] %vm266, %v690
      %v714 = vld [vmem:[%s241] sm:$0xff]
      %v715 = vld [vmem:[%s241 + $0x8] sm:$0xff]
      %v716 = vld [vmem:[%s241 + $0x10] sm:$0xff]
      %v717 = vld [vmem:[%s241 + $0x18] sm:$0xff]
      %v718 = vld [vmem:[%s241 + $0x20] sm:$0xff]
      %724 = vrot.lane.b32.xlu0 %v714, 60
      %v725 = vpop.permute.xlu0 %724
      %726 = vrot.lane.b32.xlu0 %v715, 60
      %v727 = vpop.permute.xlu0 %726
      %728 = vrot.lane.b32.xlu0 %v716, 60
      %v729 = vpop.permute.xlu0 %728
      %730 = vrot.lane.b32.xlu0 %v717, 60
      %v731 = vpop.permute.xlu0 %730
      %732 = vrot.lane.b32.xlu0 %v718, 60
      %v733 = vpop.permute.xlu0 %732
      %v734 = vrot.slane %v725, 4
      %v735 = vrot.slane %v727, 4
      %v736 = vrot.slane %v729, 4
      %v737 = vrot.slane %v731, 4
      %v738 = vrot.slane %v733, 4
      %v739 = vsel %vm303, %v734, %v735
      %vm740 = vcmask 490496
      %v741 = vsel %vm740, %v725, %v739
      %v742 = vsel %vm303, %v735, %v736
      %v743 = vsel %vm740, %v727, %v742
      %v744 = vsel %vm303, %v736, %v737
      %v745 = vsel %vm740, %v729, %v744
      %v746 = vsel %vm303, %v737, %v738
      %v747 = vsel %vm740, %v731, %v746
      %v748 = vsel %vm740, %v733, %v738
      %754 = vst [vmem:[#allocation2 + $0x1b0] sm:$0xff] %v741
      %755 = vst [vmem:[#allocation2 + $0x1b8] sm:$0xff] %v743
      %756 = vst [vmem:[#allocation2 + $0x1c0] sm:$0xff] %v745
      %757 = vst [vmem:[#allocation2 + $0x1c8] sm:$0xff] %v747
      %758 = vst.msk [vmem:[#allocation2 + $0x1d0] sm:$0xf] %vm266, %v748
      %v759 = vld [vmem:[%s246] sm:$0xff]
      %v760 = vld [vmem:[%s246 + $0x8] sm:$0xff]
      %v761 = vld [vmem:[%s246 + $0x10] sm:$0xff]
      %v762 = vld [vmem:[%s246 + $0x18] sm:$0xff]
      %v763 = vld [vmem:[%s246 + $0x20] sm:$0xff]
      %769 = vrot.lane.b32.xlu0 %v759, 60
      %v770 = vpop.permute.xlu0 %769
      %771 = vrot.lane.b32.xlu0 %v760, 60
      %v772 = vpop.permute.xlu0 %771
      %773 = vrot.lane.b32.xlu0 %v761, 60
      %v774 = vpop.permute.xlu0 %773
      %775 = vrot.lane.b32.xlu0 %v762, 60
      %v776 = vpop.permute.xlu0 %775
      %777 = vrot.lane.b32.xlu0 %v763, 60
      %v778 = vpop.permute.xlu0 %777
      %v779 = vrot.slane %v770, 4
      %v780 = vrot.slane %v772, 4
      %v781 = vrot.slane %v774, 4
      %v782 = vrot.slane %v776, 4
      %v783 = vrot.slane %v778, 4
      %v784 = vsel %vm303, %v779, %v780
      %v785 = vsel %vm740, %v770, %v784
      %v786 = vsel %vm303, %v780, %v781
      %v787 = vsel %vm740, %v772, %v786
      %v788 = vsel %vm303, %v781, %v782
      %v789 = vsel %vm740, %v774, %v788
      %v790 = vsel %vm303, %v782, %v783
      %v791 = vsel %vm740, %v776, %v790
      %v792 = vsel %vm740, %v778, %v783
      %798 = vst [vmem:[#allocation2 + $0x1d4] sm:$0xff] %v785
      %799 = vst [vmem:[#allocation2 + $0x1dc] sm:$0xff] %v787
      %800 = vst [vmem:[#allocation2 + $0x1e4] sm:$0xff] %v789
      %801 = vst [vmem:[#allocation2 + $0x1ec] sm:$0xff] %v791
      %802 = vst.msk [vmem:[#allocation2 + $0x1f4] sm:$0xf] %vm266, %v792
      %v803 = vld [vmem:[%s241] sm:$0xff]
      %v804 = vld [vmem:[%s241 + $0x8] sm:$0xff]
      %v805 = vld [vmem:[%s241 + $0x10] sm:$0xff]
      %v806 = vld [vmem:[%s241 + $0x18] sm:$0xff]
      %v807 = vld [vmem:[%s241 + $0x20] sm:$0xff]
      %813 = vrot.lane.b32.xlu0 %v803, 59
      %v814 = vpop.permute.xlu0 %813
      %815 = vrot.lane.b32.xlu0 %v804, 59
      %v816 = vpop.permute.xlu0 %815
      %817 = vrot.lane.b32.xlu0 %v805, 59
      %v818 = vpop.permute.xlu0 %817
      %819 = vrot.lane.b32.xlu0 %v806, 59
      %v820 = vpop.permute.xlu0 %819
      %821 = vrot.lane.b32.xlu0 %v807, 59
      %v822 = vpop.permute.xlu0 %821
      %v823 = vrot.slane %v814, 4
      %v824 = vrot.slane %v816, 4
      %v825 = vrot.slane %v818, 4
      %v826 = vrot.slane %v820, 4
      %v827 = vrot.slane %v822, 4
      %v828 = vsel %vm303, %v823, %v824
      %vm829 = vcmask 482304
      %v830 = vsel %vm829, %v814, %v828
      %v831 = vsel %vm303, %v824, %v825
      %v832 = vsel %vm829, %v816, %v831
      %v833 = vsel %vm303, %v825, %v826
      %v834 = vsel %vm829, %v818, %v833
      %v835 = vsel %vm303, %v826, %v827
      %v836 = vsel %vm829, %v820, %v835
      %v837 = vsel %vm829, %v822, %v827
      %843 = vst [vmem:[#allocation2 + $0x1f8] sm:$0xff] %v830
      %844 = vst [vmem:[#allocation2 + $0x200] sm:$0xff] %v832
      %845 = vst [vmem:[#allocation2 + $0x208] sm:$0xff] %v834
      %846 = vst [vmem:[#allocation2 + $0x210] sm:$0xff] %v836
      %847 = vst.msk [vmem:[#allocation2 + $0x218] sm:$0xf] %vm266, %v837
      %v848 = vld [vmem:[%s246] sm:$0xff]
      %v849 = vld [vmem:[%s246 + $0x8] sm:$0xff]
      %v850 = vld [vmem:[%s246 + $0x10] sm:$0xff]
      %v851 = vld [vmem:[%s246 + $0x18] sm:$0xff]
      %v852 = vld [vmem:[%s246 + $0x20] sm:$0xff]
      %858 = vrot.lane.b32.xlu0 %v848, 59
      %v859 = vpop.permute.xlu0 %858
      %860 = vrot.lane.b32.xlu0 %v849, 59
      %v861 = vpop.permute.xlu0 %860
      %862 = vrot.lane.b32.xlu0 %v850, 59
      %v863 = vpop.permute.xlu0 %862
      %864 = vrot.lane.b32.xlu0 %v851, 59
      %v865 = vpop.permute.xlu0 %864
      %866 = vrot.lane.b32.xlu0 %v852, 59
      %v867 = vpop.permute.xlu0 %866
      %v868 = vrot.slane %v859, 4
      %v869 = vrot.slane %v861, 4
      %v870 = vrot.slane %v863, 4
      %v871 = vrot.slane %v865, 4
      %v872 = vrot.slane %v867, 4
      %v873 = vsel %vm303, %v868, %v869
      %v874 = vsel %vm829, %v859, %v873
      %v875 = vsel %vm303, %v869, %v870
      %v876 = vsel %vm829, %v861, %v875
      %v877 = vsel %vm303, %v870, %v871
      %v878 = vsel %vm829, %v863, %v877
      %v879 = vsel %vm303, %v871, %v872
      %v880 = vsel %vm829, %v865, %v879
      %v881 = vsel %vm829, %v867, %v872
      %887 = vst [vmem:[#allocation2 + $0x21c] sm:$0xff] %v874
      %888 = vst [vmem:[#allocation2 + $0x224] sm:$0xff] %v876
      %889 = vst [vmem:[#allocation2 + $0x22c] sm:$0xff] %v878
      %890 = vst [vmem:[#allocation2 + $0x234] sm:$0xff] %v880
      %891 = vst.msk [vmem:[#allocation2 + $0x23c] sm:$0xf] %vm266, %v881
      %v892 = vld [vmem:[%s241] sm:$0xff]
      %v893 = vld [vmem:[%s241 + $0x8] sm:$0xff]
      %v894 = vld [vmem:[%s241 + $0x10] sm:$0xff]
      %v895 = vld [vmem:[%s241 + $0x18] sm:$0xff]
      %v896 = vld [vmem:[%s241 + $0x20] sm:$0xff]
      %902 = vrot.lane.b32.xlu0 %v892, 58
      %v903 = vpop.permute.xlu0 %902
      %904 = vrot.lane.b32.xlu0 %v893, 58
      %v905 = vpop.permute.xlu0 %904
      %906 = vrot.lane.b32.xlu0 %v894, 58
      %v907 = vpop.permute.xlu0 %906
      %908 = vrot.lane.b32.xlu0 %v895, 58
      %v909 = vpop.permute.xlu0 %908
      %910 = vrot.lane.b32.xlu0 %v896, 58
      %v911 = vpop.permute.xlu0 %910
      %v912 = vrot.slane %v903, 4
      %v913 = vrot.slane %v905, 4
      %v914 = vrot.slane %v907, 4
      %v915 = vrot.slane %v909, 4
      %v916 = vrot.slane %v911, 4
      %v917 = vsel %vm303, %v912, %v913
      %vm918 = vcmask 474112
      %v919 = vsel %vm918, %v903, %v917
      %v920 = vsel %vm303, %v913, %v914
      %v921 = vsel %vm918, %v905, %v920
      %v922 = vsel %vm303, %v914, %v915
      %v923 = vsel %vm918, %v907, %v922
      %v924 = vsel %vm303, %v915, %v916
      %v925 = vsel %vm918, %v909, %v924
      %v926 = vsel %vm918, %v911, %v916
      %932 = vst [vmem:[#allocation2 + $0x240] sm:$0xff] %v919
      %933 = vst [vmem:[#allocation2 + $0x248] sm:$0xff] %v921
      %934 = vst [vmem:[#allocation2 + $0x250] sm:$0xff] %v923
      %935 = vst [vmem:[#allocation2 + $0x258] sm:$0xff] %v925
      %936 = vst.msk [vmem:[#allocation2 + $0x260] sm:$0xf] %vm266, %v926
      %v937 = vld [vmem:[%s246] sm:$0xff]
      %v938 = vld [vmem:[%s246 + $0x8] sm:$0xff]
      %v939 = vld [vmem:[%s246 + $0x10] sm:$0xff]
      %v940 = vld [vmem:[%s246 + $0x18] sm:$0xff]
      %v941 = vld [vmem:[%s246 + $0x20] sm:$0xff]
      %947 = vrot.lane.b32.xlu0 %v937, 58
      %v948 = vpop.permute.xlu0 %947
      %949 = vrot.lane.b32.xlu0 %v938, 58
      %v950 = vpop.permute.xlu0 %949
      %951 = vrot.lane.b32.xlu0 %v939, 58
      %v952 = vpop.permute.xlu0 %951
      %953 = vrot.lane.b32.xlu0 %v940, 58
      %v954 = vpop.permute.xlu0 %953
      %955 = vrot.lane.b32.xlu0 %v941, 58
      %v956 = vpop.permute.xlu0 %955
      %v957 = vrot.slane %v948, 4
      %v958 = vrot.slane %v950, 4
      %v959 = vrot.slane %v952, 4
      %v960 = vrot.slane %v954, 4
      %v961 = vrot.slane %v956, 4
      %v962 = vsel %vm303, %v957, %v958
      %v963 = vsel %vm918, %v948, %v962
      %v964 = vsel %vm303, %v958, %v959
      %v965 = vsel %vm918, %v950, %v964
      %v966 = vsel %vm303, %v959, %v960
      %v967 = vsel %vm918, %v952, %v966
      %v968 = vsel %vm303, %v960, %v961
      %v969 = vsel %vm918, %v954, %v968
      %v970 = vsel %vm918, %v956, %v961
      %976 = vst [vmem:[#allocation2 + $0x264] sm:$0xff] %v963
      %977 = vst [vmem:[#allocation2 + $0x26c] sm:$0xff] %v965
      %978 = vst [vmem:[#allocation2 + $0x274] sm:$0xff] %v967
      %979 = vst [vmem:[#allocation2 + $0x27c] sm:$0xff] %v969
      %980 = vst.msk [vmem:[#allocation2 + $0x284] sm:$0xf] %vm266, %v970
      %v981 = vld [vmem:[%s2] sm:$0xff]
      %v982 = vld [vmem:[#allocation2] sm:$0xff]
      %v983 = vld [vmem:[#allocation2 + $0x8] sm:$0xff]
      %v984 = vld [vmem:[#allocation2 + $0x10] sm:$0xff]
      %v985 = vld [vmem:[#allocation2 + $0x18] sm:$0xff]
      %v986 = vld [vmem:[#allocation2 + $0x20] sm:$0xf]
      %v987 = vld [vmem:[#allocation2 + $0x24] sm:$0xff]
      %v988 = vld [vmem:[#allocation2 + $0x2c] sm:$0xff]
      %v989 = vld [vmem:[#allocation2 + $0x34] sm:$0xff]
      %v990 = vld [vmem:[#allocation2 + $0x3c] sm:$0xff]
      %v991 = vld [vmem:[#allocation2 + $0x44] sm:$0xf]
      %v992 = vld [vmem:[#allocation2 + $0x48] sm:$0xff]
      %v993 = vld [vmem:[#allocation2 + $0x50] sm:$0xff]
      %v994 = vld [vmem:[#allocation2 + $0x58] sm:$0xff]
      %v995 = vld [vmem:[#allocation2 + $0x60] sm:$0xff]
      %v996 = vld [vmem:[#allocation2 + $0x68] sm:$0xf]
      %v997 = vld [vmem:[#allocation2 + $0x6c] sm:$0xff]
      %v998 = vld [vmem:[#allocation2 + $0x74] sm:$0xff]
      %v999 = vld [vmem:[#allocation2 + $0x7c] sm:$0xff]
      %v1000 = vld [vmem:[#allocation2 + $0x84] sm:$0xff]
      %v1001 = vld [vmem:[#allocation2 + $0x8c] sm:$0xf]
      %v1002 = vld [vmem:[#allocation2 + $0x90] sm:$0xff]
      %v1003 = vld [vmem:[#allocation2 + $0x98] sm:$0xff]
      %v1004 = vld [vmem:[#allocation2 + $0xa0] sm:$0xff]
      %v1005 = vld [vmem:[#allocation2 + $0xa8] sm:$0xff]
      %v1006 = vld [vmem:[#allocation2 + $0xb0] sm:$0xf]
      %v1007 = vld [vmem:[#allocation2 + $0xb4] sm:$0xff]
      %v1008 = vld [vmem:[#allocation2 + $0xbc] sm:$0xff]
      %v1009 = vld [vmem:[#allocation2 + $0xc4] sm:$0xff]
      %v1010 = vld [vmem:[#allocation2 + $0xcc] sm:$0xff]
      %v1011 = vld [vmem:[#allocation2 + $0xd4] sm:$0xf]
      %v1012 = vld [vmem:[#allocation2 + $0xd8] sm:$0xff]
      %v1013 = vld [vmem:[#allocation2 + $0xe0] sm:$0xff]
      %v1014 = vld [vmem:[#allocation2 + $0xe8] sm:$0xff]
      %v1015 = vld [vmem:[#allocation2 + $0xf0] sm:$0xff]
      %v1016 = vld [vmem:[#allocation2 + $0xf8] sm:$0xf]
      %v1017 = vld [vmem:[#allocation2 + $0xfc] sm:$0xff]
      %v1018 = vld [vmem:[#allocation2 + $0x104] sm:$0xff]
      %v1019 = vld [vmem:[#allocation2 + $0x10c] sm:$0xff]
      %v1020 = vld [vmem:[#allocation2 + $0x114] sm:$0xff]
      %v1021 = vld [vmem:[#allocation2 + $0x11c] sm:$0xf]
      %v1022 = vld [vmem:[#allocation2 + $0x120] sm:$0xff]
      %v1023 = vld [vmem:[#allocation2 + $0x128] sm:$0xff]
      %v1024 = vld [vmem:[#allocation2 + $0x130] sm:$0xff]
      %v1025 = vld [vmem:[#allocation2 + $0x138] sm:$0xff]
      %v1026 = vld [vmem:[#allocation2 + $0x140] sm:$0xf]
      %v1027 = vld [vmem:[#allocation2 + $0x144] sm:$0xff]
      %v1028 = vld [vmem:[#allocation2 + $0x14c] sm:$0xff]
      %v1029 = vld [vmem:[#allocation2 + $0x154] sm:$0xff]
      %v1030 = vld [vmem:[#allocation2 + $0x15c] sm:$0xff]
      %v1031 = vld [vmem:[#allocation2 + $0x164] sm:$0xf]
      %v1032 = vld [vmem:[#allocation2 + $0x168] sm:$0xff]
      %v1033 = vld [vmem:[#allocation2 + $0x170] sm:$0xff]
      %v1034 = vld [vmem:[#allocation2 + $0x178] sm:$0xff]
      %v1035 = vld [vmem:[#allocation2 + $0x180] sm:$0xff]
      %v1036 = vld [vmem:[#allocation2 + $0x188] sm:$0xf]
      %v1037 = vld [vmem:[#allocation2 + $0x18c] sm:$0xff]
      %v1038 = vld [vmem:[#allocation2 + $0x194] sm:$0xff]
      %v1039 = vld [vmem:[#allocation2 + $0x19c] sm:$0xff]
      %v1040 = vld [vmem:[#allocation2 + $0x1a4] sm:$0xff]
      %v1041 = vld [vmem:[#allocation2 + $0x1ac] sm:$0xf]
      %v1042 = vld [vmem:[#allocation2 + $0x1b0] sm:$0xff]
      %v1043 = vld [vmem:[#allocation2 + $0x1b8] sm:$0xff]
      %v1044 = vld [vmem:[#allocation2 + $0x1c0] sm:$0xff]
      %v1045 = vld [vmem:[#allocation2 + $0x1c8] sm:$0xff]
      %v1046 = vld [vmem:[#allocation2 + $0x1d0] sm:$0xf]
      %v1047 = vld [vmem:[#allocation2 + $0x1d4] sm:$0xff]
      %v1048 = vld [vmem:[#allocation2 + $0x1dc] sm:$0xff]
      %v1049 = vld [vmem:[#allocation2 + $0x1e4] sm:$0xff]
      %v1050 = vld [vmem:[#allocation2 + $0x1ec] sm:$0xff]
      %v1051 = vld [vmem:[#allocation2 + $0x1f4] sm:$0xf]
      %v1052 = vld [vmem:[#allocation2 + $0x1f8] sm:$0xff]
      %v1053 = vld [vmem:[#allocation2 + $0x200] sm:$0xff]
      %v1054 = vld [vmem:[#allocation2 + $0x208] sm:$0xff]
      %v1055 = vld [vmem:[#allocation2 + $0x210] sm:$0xff]
      %v1056 = vld [vmem:[#allocation2 + $0x218] sm:$0xf]
      %v1057 = vld [vmem:[#allocation2 + $0x21c] sm:$0xff]
      %v1058 = vld [vmem:[#allocation2 + $0x224] sm:$0xff]
      %v1059 = vld [vmem:[#allocation2 + $0x22c] sm:$0xff]
      %v1060 = vld [vmem:[#allocation2 + $0x234] sm:$0xff]
      %v1061 = vld [vmem:[#allocation2 + $0x23c] sm:$0xf]
      %v1062 = vld [vmem:[#allocation2 + $0x240] sm:$0xff]
      %v1063 = vld [vmem:[#allocation2 + $0x248] sm:$0xff]
      %v1064 = vld [vmem:[#allocation2 + $0x250] sm:$0xff]
      %v1065 = vld [vmem:[#allocation2 + $0x258] sm:$0xff]
      %v1066 = vld [vmem:[#allocation2 + $0x260] sm:$0xf]
      %v1067 = vld [vmem:[#allocation2 + $0x264] sm:$0xff]
      %v1068 = vld [vmem:[#allocation2 + $0x26c] sm:$0xff]
      %v1069 = vld [vmem:[#allocation2 + $0x274] sm:$0xff]
      %v1070 = vld [vmem:[#allocation2 + $0x27c] sm:$0xff]
      %v1071 = vld [vmem:[#allocation2 + $0x284] sm:$0xf]
      %v1072 = vld [vmem:[%s3] sm:$0xff]
      %1074 = vset.pattern.permute.xlu0 0
      %1075 = vperm.xlu0 %1074, %v1072
      %v1076 = vpop.permute.xlu0 %1075
      %v1079 = vunpack.c.l.b16 %v981
      %v1080 = vunpack.c.h.b16 %v981
      %v1081 = vpack.c.b16 %v1079, %v1079
      %v1082 = vpack.c.b16 %v1080, %v1080
      %v1174 = vunpack.c.l.b16 %v982
      %v1175 = vunpack.c.h.b16 %v982
      %v1176 = vunpack.c.l.b16 %v983
      %v1177 = vunpack.c.h.b16 %v983
      %v1178 = vunpack.c.l.b16 %v984
      %v1179 = vunpack.c.h.b16 %v984
      %v1180 = vunpack.c.l.b16 %v985
      %v1181 = vunpack.c.h.b16 %v985
      %v1182 = vunpack.c.l.b16 %v986
      %v1183 = vunpack.c.l.b16 %v987
      %v1184 = vunpack.c.h.b16 %v987
      %v1185 = vunpack.c.l.b16 %v988
      %v1186 = vunpack.c.h.b16 %v988
      %v1187 = vunpack.c.l.b16 %v989
      %v1188 = vunpack.c.h.b16 %v989
      %v1189 = vunpack.c.l.b16 %v990
      %v1190 = vunpack.c.h.b16 %v990
      %v1191 = vunpack.c.l.b16 %v991
      %v1192 = vunpack.c.l.b16 %v992
      %v1193 = vunpack.c.h.b16 %v992
      %v1194 = vunpack.c.l.b16 %v993
      %v1195 = vunpack.c.h.b16 %v993
      %v1196 = vunpack.c.l.b16 %v994
      %v1197 = vunpack.c.h.b16 %v994
      %v1198 = vunpack.c.l.b16 %v995
      %v1199 = vunpack.c.h.b16 %v995
      %v1200 = vunpack.c.l.b16 %v996
      %v1201 = vunpack.c.l.b16 %v997
      %v1202 = vunpack.c.h.b16 %v997
      %v1203 = vunpack.c.l.b16 %v998
      %v1204 = vunpack.c.h.b16 %v998
      %v1205 = vunpack.c.l.b16 %v999
      %v1206 = vunpack.c.h.b16 %v999
      %v1207 = vunpack.c.l.b16 %v1000
      %v1208 = vunpack.c.h.b16 %v1000
      %v1209 = vunpack.c.l.b16 %v1001
      %v1210 = vunpack.c.l.b16 %v1002
      %v1211 = vunpack.c.h.b16 %v1002
      %v1212 = vunpack.c.l.b16 %v1003
      %v1213 = vunpack.c.h.b16 %v1003
      %v1214 = vunpack.c.l.b16 %v1004
      %v1215 = vunpack.c.h.b16 %v1004
      %v1216 = vunpack.c.l.b16 %v1005
      %v1217 = vunpack.c.h.b16 %v1005
      %v1218 = vunpack.c.l.b16 %v1006
      %v1219 = vunpack.c.l.b16 %v1007
      %v1220 = vunpack.c.h.b16 %v1007
      %v1221 = vunpack.c.l.b16 %v1008
      %v1222 = vunpack.c.h.b16 %v1008
      %v1223 = vunpack.c.l.b16 %v1009
      %v1224 = vunpack.c.h.b16 %v1009
      %v1225 = vunpack.c.l.b16 %v1010
      %v1226 = vunpack.c.h.b16 %v1010
      %v1227 = vunpack.c.l.b16 %v1011
      %v1228 = vunpack.c.l.b16 %v1012
      %v1229 = vunpack.c.h.b16 %v1012
      %v1230 = vunpack.c.l.b16 %v1013
      %v1231 = vunpack.c.h.b16 %v1013
      %v1232 = vunpack.c.l.b16 %v1014
      %v1233 = vunpack.c.h.b16 %v1014
      %v1234 = vunpack.c.l.b16 %v1015
      %v1235 = vunpack.c.h.b16 %v1015
      %v1236 = vunpack.c.l.b16 %v1016
      %v1237 = vunpack.c.l.b16 %v1017
      %v1238 = vunpack.c.h.b16 %v1017
      %v1239 = vunpack.c.l.b16 %v1018
      %v1240 = vunpack.c.h.b16 %v1018
      %v1241 = vunpack.c.l.b16 %v1019
      %v1242 = vunpack.c.h.b16 %v1019
      %v1243 = vunpack.c.l.b16 %v1020
      %v1244 = vunpack.c.h.b16 %v1020
      %v1245 = vunpack.c.l.b16 %v1021
      %v1246 = vunpack.c.l.b16 %v1022
      %v1247 = vunpack.c.h.b16 %v1022
      %v1248 = vunpack.c.l.b16 %v1023
      %v1249 = vunpack.c.h.b16 %v1023
      %v1250 = vunpack.c.l.b16 %v1024
      %v1251 = vunpack.c.h.b16 %v1024
      %v1252 = vunpack.c.l.b16 %v1025
      %v1253 = vunpack.c.h.b16 %v1025
      %v1254 = vunpack.c.l.b16 %v1026
      %v1255 = vunpack.c.l.b16 %v1027
      %v1256 = vunpack.c.h.b16 %v1027
      %v1257 = vunpack.c.l.b16 %v1028
      %v1258 = vunpack.c.h.b16 %v1028
      %v1259 = vunpack.c.l.b16 %v1029
      %v1260 = vunpack.c.h.b16 %v1029
      %v1261 = vunpack.c.l.b16 %v1030
      %v1262 = vunpack.c.h.b16 %v1030
      %v1263 = vunpack.c.l.b16 %v1031
      %v1264 = vunpack.c.l.b16 %v1032
      %v1265 = vunpack.c.h.b16 %v1032
      %v1266 = vunpack.c.l.b16 %v1033
      %v1267 = vunpack.c.h.b16 %v1033
      %v1268 = vunpack.c.l.b16 %v1034
      %v1269 = vunpack.c.h.b16 %v1034
      %v1270 = vunpack.c.l.b16 %v1035
      %v1271 = vunpack.c.h.b16 %v1035
      %v1272 = vunpack.c.l.b16 %v1036
      %v1273 = vunpack.c.l.b16 %v1037
      %v1274 = vunpack.c.h.b16 %v1037
      %v1275 = vunpack.c.l.b16 %v1038
      %v1276 = vunpack.c.h.b16 %v1038
      %v1277 = vunpack.c.l.b16 %v1039
      %v1278 = vunpack.c.h.b16 %v1039
      %v1279 = vunpack.c.l.b16 %v1040
      %v1280 = vunpack.c.h.b16 %v1040
      %v1281 = vunpack.c.l.b16 %v1041
      %v1282 = vunpack.c.l.b16 %v1042
      %v1283 = vunpack.c.h.b16 %v1042
      %v1284 = vunpack.c.l.b16 %v1043
      %v1285 = vunpack.c.h.b16 %v1043
      %v1286 = vunpack.c.l.b16 %v1044
      %v1287 = vunpack.c.h.b16 %v1044
      %v1288 = vunpack.c.l.b16 %v1045
      %v1289 = vunpack.c.h.b16 %v1045
      %v1290 = vunpack.c.l.b16 %v1046
      %v1291 = vunpack.c.l.b16 %v1047
      %v1292 = vunpack.c.h.b16 %v1047
      %v1293 = vunpack.c.l.b16 %v1048
      %v1294 = vunpack.c.h.b16 %v1048
      %v1295 = vunpack.c.l.b16 %v1049
      %v1296 = vunpack.c.h.b16 %v1049
      %v1297 = vunpack.c.l.b16 %v1050
      %v1298 = vunpack.c.h.b16 %v1050
      %v1299 = vunpack.c.l.b16 %v1051
      %v1300 = vunpack.c.l.b16 %v1052
      %v1301 = vunpack.c.h.b16 %v1052
      %v1302 = vunpack.c.l.b16 %v1053
      %v1303 = vunpack.c.h.b16 %v1053
      %v1304 = vunpack.c.l.b16 %v1054
      %v1305 = vunpack.c.h.b16 %v1054
      %v1306 = vunpack.c.l.b16 %v1055
      %v1307 = vunpack.c.h.b16 %v1055
      %v1308 = vunpack.c.l.b16 %v1056
      %v1309 = vunpack.c.l.b16 %v1057
      %v1310 = vunpack.c.h.b16 %v1057
      %v1311 = vunpack.c.l.b16 %v1058
      %v1312 = vunpack.c.h.b16 %v1058
      %v1313 = vunpack.c.l.b16 %v1059
      %v1314 = vunpack.c.h.b16 %v1059
      %v1315 = vunpack.c.l.b16 %v1060
      %v1316 = vunpack.c.h.b16 %v1060
      %v1317 = vunpack.c.l.b16 %v1061
      %v1318 = vunpack.c.l.b16 %v1062
      %v1319 = vunpack.c.h.b16 %v1062
      %v1320 = vunpack.c.l.b16 %v1063
      %v1321 = vunpack.c.h.b16 %v1063
      %v1322 = vunpack.c.l.b16 %v1064
      %v1323 = vunpack.c.h.b16 %v1064
      %v1324 = vunpack.c.l.b16 %v1065
      %v1325 = vunpack.c.h.b16 %v1065
      %v1326 = vunpack.c.l.b16 %v1066
      %v1327 = vunpack.c.l.b16 %v1067
      %v1328 = vunpack.c.h.b16 %v1067
      %v1329 = vunpack.c.l.b16 %v1068
      %v1330 = vunpack.c.h.b16 %v1068
      %v1331 = vunpack.c.l.b16 %v1069
      %v1332 = vunpack.c.h.b16 %v1069
      %v1333 = vunpack.c.l.b16 %v1070
      %v1334 = vunpack.c.h.b16 %v1070
      %v1335 = vunpack.c.l.b16 %v1071
      %v1336 = vpack.c.b16 %v1183, %v1174
      %v1337 = vpack.c.b16 %v1184, %v1175
      %v1338 = vpack.c.b16 %v1185, %v1176
      %v1339 = vpack.c.b16 %v1186, %v1177
      %v1340 = vpack.c.b16 %v1187, %v1178
      %v1341 = vpack.c.b16 %v1188, %v1179
      %v1342 = vpack.c.b16 %v1189, %v1180
      %v1343 = vpack.c.b16 %v1190, %v1181
      %v1344 = vpack.c.b16 %v1191, %v1182
      %v1345 = vpack.c.b16 %v1201, %v1192
      %v1346 = vpack.c.b16 %v1202, %v1193
      %v1347 = vpack.c.b16 %v1203, %v1194
      %v1348 = vpack.c.b16 %v1204, %v1195
      %v1349 = vpack.c.b16 %v1205, %v1196
      %v1350 = vpack.c.b16 %v1206, %v1197
      %v1351 = vpack.c.b16 %v1207, %v1198
      %v1352 = vpack.c.b16 %v1208, %v1199
      %v1353 = vpack.c.b16 %v1209, %v1200
      %v1354 = vpack.c.b16 %v1219, %v1210
      %v1355 = vpack.c.b16 %v1220, %v1211
      %v1356 = vpack.c.b16 %v1221, %v1212
      %v1357 = vpack.c.b16 %v1222, %v1213
      %v1358 = vpack.c.b16 %v1223, %v1214
      %v1359 = vpack.c.b16 %v1224, %v1215
      %v1360 = vpack.c.b16 %v1225, %v1216
      %v1361 = vpack.c.b16 %v1226, %v1217
      %v1362 = vpack.c.b16 %v1227, %v1218
      %v1363 = vpack.c.b16 %v1237, %v1228
      %v1364 = vpack.c.b16 %v1238, %v1229
      %v1365 = vpack.c.b16 %v1239, %v1230
      %v1366 = vpack.c.b16 %v1240, %v1231
      %v1367 = vpack.c.b16 %v1241, %v1232
      %v1368 = vpack.c.b16 %v1242, %v1233
      %v1369 = vpack.c.b16 %v1243, %v1234
      %v1370 = vpack.c.b16 %v1244, %v1235
      %v1371 = vpack.c.b16 %v1245, %v1236
      %v1372 = vpack.c.b16 %v1255, %v1246
      %v1373 = vpack.c.b16 %v1256, %v1247
      %v1374 = vpack.c.b16 %v1257, %v1248
      %v1375 = vpack.c.b16 %v1258, %v1249
      %v1376 = vpack.c.b16 %v1259, %v1250
      %v1377 = vpack.c.b16 %v1260, %v1251
      %v1378 = vpack.c.b16 %v1261, %v1252
      %v1379 = vpack.c.b16 %v1262, %v1253
      %v1380 = vpack.c.b16 %v1263, %v1254
      %v1381 = vpack.c.b16 %v1273, %v1264
      %v1382 = vpack.c.b16 %v1274, %v1265
      %v1383 = vpack.c.b16 %v1275, %v1266
      %v1384 = vpack.c.b16 %v1276, %v1267
      %v1385 = vpack.c.b16 %v1277, %v1268
      %v1386 = vpack.c.b16 %v1278, %v1269
      %v1387 = vpack.c.b16 %v1279, %v1270
      %v1388 = vpack.c.b16 %v1280, %v1271
      %v1389 = vpack.c.b16 %v1281, %v1272
      %v1390 = vpack.c.b16 %v1291, %v1282
      %v1391 = vpack.c.b16 %v1292, %v1283
      %v1392 = vpack.c.b16 %v1293, %v1284
      %v1393 = vpack.c.b16 %v1294, %v1285
      %v1394 = vpack.c.b16 %v1295, %v1286
      %v1395 = vpack.c.b16 %v1296, %v1287
      %v1396 = vpack.c.b16 %v1297, %v1288
      %v1397 = vpack.c.b16 %v1298, %v1289
      %v1398 = vpack.c.b16 %v1299, %v1290
      %v1399 = vpack.c.b16 %v1309, %v1300
      %v1400 = vpack.c.b16 %v1310, %v1301
      %v1401 = vpack.c.b16 %v1311, %v1302
      %v1402 = vpack.c.b16 %v1312, %v1303
      %v1403 = vpack.c.b16 %v1313, %v1304
      %v1404 = vpack.c.b16 %v1314, %v1305
      %v1405 = vpack.c.b16 %v1315, %v1306
      %v1406 = vpack.c.b16 %v1316, %v1307
      %v1407 = vpack.c.b16 %v1317, %v1308
      %v1408 = vpack.c.b16 %v1327, %v1318
      %v1409 = vpack.c.b16 %v1328, %v1319
      %v1410 = vpack.c.b16 %v1329, %v1320
      %v1411 = vpack.c.b16 %v1330, %v1321
      %v1412 = vpack.c.b16 %v1331, %v1322
      %v1413 = vpack.c.b16 %v1332, %v1323
      %v1414 = vpack.c.b16 %v1333, %v1324
      %v1415 = vpack.c.b16 %v1334, %v1325
      %v1416 = vpack.c.b16 %v1335, %v1326
      %vm1498 = vcmask 130048
      %v1500 = vsel %vm1498, %v1082, 0
      %1502 = vmatpush.bf16.msra.mxu0 %v1399
      %1503 = vmatpush.bf16.msra.mxu0 %v1390
      %1504 = vmatpush.bf16.msra.mxu0 %v1381
      %1505 = vmatpush.bf16.msra.mxu0 %v1372
      %1506 = vmatpush.bf16.msra.mxu0 %v1363
      %1507 = vmatpush.bf16.msra.mxu0 %v1354
      %1508 = vmatpush.bf16.msra.mxu0 %v1345
      %1509 = vmatpush.bf16.msra.mxu0 %v1336
      %1510 = vmatmul.bf16.gmra.mxu0 %v1081
      %v1511 = vpop.f32.mrf.mxu0
      %v1512 = vadd.f32 %v1076, %v1511
      %v1513 = vpop.f32.mrf.mxu0
      %1514 = vdwg.mxu0
      %1515 = vmatpush.bf16.msra.mxu0 0
      %1516 = vmatpush.bf16.msra.mxu0 0
      %1517 = vmatpush.bf16.msra.mxu0 0
      %1518 = vmatpush.bf16.msra.mxu0 0
      %1519 = vmatpush.bf16.msra.mxu0 0
      %1520 = vmatpush.bf16.msra.mxu0 0
      %1521 = vmatpush.bf16.msra.mxu0 0
      %1522 = vmatpush.bf16.msra.mxu0 %v1408
      %1523 = vmatmul.bf16.gmra.mxu0 %v1500
      %v1524 = vpop.f32.mrf.mxu0
      %v1525 = vadd.f32 %v1512, %v1524
      %v1526 = vpop.f32.mrf.mxu0
      %1527 = vdwg.mxu0
      %1528 = vmatpush.bf16.msra.mxu0 %v1400
      %1529 = vmatpush.bf16.msra.mxu0 %v1391
      %1530 = vmatpush.bf16.msra.mxu0 %v1382
      %1531 = vmatpush.bf16.msra.mxu0 %v1373
      %1532 = vmatpush.bf16.msra.mxu0 %v1364
      %1533 = vmatpush.bf16.msra.mxu0 %v1355
      %1534 = vmatpush.bf16.msra.mxu0 %v1346
      %1535 = vmatpush.bf16.msra.mxu0 %v1337
      %1536 = vmatmul.bf16.gmra.mxu0 %v1081
      %v1537 = vpop.f32.mrf.mxu0
      %v1538 = vadd.f32 %v1076, %v1537
      %v1539 = vpop.f32.mrf.mxu0
      %1540 = vdwg.mxu0
      %1541 = vmatpush.bf16.msra.mxu0 0
      %1542 = vmatpush.bf16.msra.mxu0 0
      %1543 = vmatpush.bf16.msra.mxu0 0
      %1544 = vmatpush.bf16.msra.mxu0 0
      %1545 = vmatpush.bf16.msra.mxu0 0
      %1546 = vmatpush.bf16.msra.mxu0 0
      %1547 = vmatpush.bf16.msra.mxu0 0
      %1548 = vmatpush.bf16.msra.mxu0 %v1409
      %1549 = vmatmul.bf16.gmra.mxu0 %v1500
      %v1550 = vpop.f32.mrf.mxu0
      %v1551 = vadd.f32 %v1538, %v1550
      %v1552 = vpop.f32.mrf.mxu0
      %1553 = vdwg.mxu0
      %1554 = vmatpush.bf16.msra.mxu0 %v1401
      %1555 = vmatpush.bf16.msra.mxu0 %v1392
      %1556 = vmatpush.bf16.msra.mxu0 %v1383
      %1557 = vmatpush.bf16.msra.mxu0 %v1374
      %1558 = vmatpush.bf16.msra.mxu0 %v1365
      %1559 = vmatpush.bf16.msra.mxu0 %v1356
      %1560 = vmatpush.bf16.msra.mxu0 %v1347
      %1561 = vmatpush.bf16.msra.mxu0 %v1338
      %1562 = vmatmul.bf16.gmra.mxu0 %v1081
      %v1563 = vpop.f32.mrf.mxu0
      %v1564 = vadd.f32 %v1076, %v1563
      %v1565 = vpop.f32.mrf.mxu0
      %1566 = vdwg.mxu0
      %1567 = vmatpush.bf16.msra.mxu0 0
      %1568 = vmatpush.bf16.msra.mxu0 0
      %1569 = vmatpush.bf16.msra.mxu0 0
      %1570 = vmatpush.bf16.msra.mxu0 0
      %1571 = vmatpush.bf16.msra.mxu0 0
      %1572 = vmatpush.bf16.msra.mxu0 0
      %1573 = vmatpush.bf16.msra.mxu0 0
      %1574 = vmatpush.bf16.msra.mxu0 %v1410
      %1575 = vmatmul.bf16.gmra.mxu0 %v1500
      %v1576 = vpop.f32.mrf.mxu0
      %v1577 = vadd.f32 %v1564, %v1576
      %v1578 = vpop.f32.mrf.mxu0
      %1579 = vdwg.mxu0
      %1580 = vmatpush.bf16.msra.mxu0 %v1402
      %1581 = vmatpush.bf16.msra.mxu0 %v1393
      %1582 = vmatpush.bf16.msra.mxu0 %v1384
      %1583 = vmatpush.bf16.msra.mxu0 %v1375
      %1584 = vmatpush.bf16.msra.mxu0 %v1366
      %1585 = vmatpush.bf16.msra.mxu0 %v1357
      %1586 = vmatpush.bf16.msra.mxu0 %v1348
      %1587 = vmatpush.bf16.msra.mxu0 %v1339
      %1588 = vmatmul.bf16.gmra.mxu0 %v1081
      %v1589 = vpop.f32.mrf.mxu0
      %v1590 = vadd.f32 %v1076, %v1589
      %v1591 = vpop.f32.mrf.mxu0
      %1592 = vdwg.mxu0
      %1593 = vmatpush.bf16.msra.mxu0 0
      %1594 = vmatpush.bf16.msra.mxu0 0
      %1595 = vmatpush.bf16.msra.mxu0 0
      %1596 = vmatpush.bf16.msra.mxu0 0
      %1597 = vmatpush.bf16.msra.mxu0 0
      %1598 = vmatpush.bf16.msra.mxu0 0
      %1599 = vmatpush.bf16.msra.mxu0 0
      %1600 = vmatpush.bf16.msra.mxu0 %v1411
      %1601 = vmatmul.bf16.gmra.mxu0 %v1500
      %v1602 = vpop.f32.mrf.mxu0
      %v1603 = vadd.f32 %v1590, %v1602
      %v1604 = vpop.f32.mrf.mxu0
      %1605 = vdwg.mxu0
      %1606 = vmatpush.bf16.msra.mxu0 %v1403
      %1607 = vmatpush.bf16.msra.mxu0 %v1394
      %1608 = vmatpush.bf16.msra.mxu0 %v1385
      %1609 = vmatpush.bf16.msra.mxu0 %v1376
      %1610 = vmatpush.bf16.msra.mxu0 %v1367
      %1611 = vmatpush.bf16.msra.mxu0 %v1358
      %1612 = vmatpush.bf16.msra.mxu0 %v1349
      %1613 = vmatpush.bf16.msra.mxu0 %v1340
      %1614 = vmatmul.bf16.gmra.mxu0 %v1081
      %v1615 = vpop.f32.mrf.mxu0
      %v1616 = vadd.f32 %v1076, %v1615
      %v1617 = vpop.f32.mrf.mxu0
      %1618 = vdwg.mxu0
      %1619 = vmatpush.bf16.msra.mxu0 0
      %1620 = vmatpush.bf16.msra.mxu0 0
      %1621 = vmatpush.bf16.msra.mxu0 0
      %1622 = vmatpush.bf16.msra.mxu0 0
      %1623 = vmatpush.bf16.msra.mxu0 0
      %1624 = vmatpush.bf16.msra.mxu0 0
      %1625 = vmatpush.bf16.msra.mxu0 0
      %1626 = vmatpush.bf16.msra.mxu0 %v1412
      %1627 = vmatmul.bf16.gmra.mxu0 %v1500
      %v1628 = vpop.f32.mrf.mxu0
      %v1629 = vadd.f32 %v1616, %v1628
      %v1630 = vpop.f32.mrf.mxu0
      %1631 = vdwg.mxu0
      %1632 = vmatpush.bf16.msra.mxu0 %v1404
      %1633 = vmatpush.bf16.msra.mxu0 %v1395
      %1634 = vmatpush.bf16.msra.mxu0 %v1386
      %1635 = vmatpush.bf16.msra.mxu0 %v1377
      %1636 = vmatpush.bf16.msra.mxu0 %v1368
      %1637 = vmatpush.bf16.msra.mxu0 %v1359
      %1638 = vmatpush.bf16.msra.mxu0 %v1350
      %1639 = vmatpush.bf16.msra.mxu0 %v1341
      %1640 = vmatmul.bf16.gmra.mxu0 %v1081
      %v1641 = vpop.f32.mrf.mxu0
      %v1642 = vadd.f32 %v1076, %v1641
      %v1643 = vpop.f32.mrf.mxu0
      %1644 = vdwg.mxu0
      %1645 = vmatpush.bf16.msra.mxu0 0
      %1646 = vmatpush.bf16.msra.mxu0 0
      %1647 = vmatpush.bf16.msra.mxu0 0
      %1648 = vmatpush.bf16.msra.mxu0 0
      %1649 = vmatpush.bf16.msra.mxu0 0
      %1650 = vmatpush.bf16.msra.mxu0 0
      %1651 = vmatpush.bf16.msra.mxu0 0
      %1652 = vmatpush.bf16.msra.mxu0 %v1413
      %1653 = vmatmul.bf16.gmra.mxu0 %v1500
      %v1654 = vpop.f32.mrf.mxu0
      %v1655 = vadd.f32 %v1642, %v1654
      %v1656 = vpop.f32.mrf.mxu0
      %1657 = vdwg.mxu0
      %1658 = vmatpush.bf16.msra.mxu0 %v1405
      %1659 = vmatpush.bf16.msra.mxu0 %v1396
      %1660 = vmatpush.bf16.msra.mxu0 %v1387
      %1661 = vmatpush.bf16.msra.mxu0 %v1378
      %1662 = vmatpush.bf16.msra.mxu0 %v1369
      %1663 = vmatpush.bf16.msra.mxu0 %v1360
      %1664 = vmatpush.bf16.msra.mxu0 %v1351
      %1665 = vmatpush.bf16.msra.mxu0 %v1342
      %1666 = vmatmul.bf16.gmra.mxu0 %v1081
      %v1667 = vpop.f32.mrf.mxu0
      %v1668 = vadd.f32 %v1076, %v1667
      %v1669 = vpop.f32.mrf.mxu0
      %1670 = vdwg.mxu0
      %1671 = vmatpush.bf16.msra.mxu0 0
      %1672 = vmatpush.bf16.msra.mxu0 0
      %1673 = vmatpush.bf16.msra.mxu0 0
      %1674 = vmatpush.bf16.msra.mxu0 0
      %1675 = vmatpush.bf16.msra.mxu0 0
      %1676 = vmatpush.bf16.msra.mxu0 0
      %1677 = vmatpush.bf16.msra.mxu0 0
      %1678 = vmatpush.bf16.msra.mxu0 %v1414
      %1679 = vmatmul.bf16.gmra.mxu0 %v1500
      %v1680 = vpop.f32.mrf.mxu0
      %v1681 = vadd.f32 %v1668, %v1680
      %v1682 = vpop.f32.mrf.mxu0
      %1683 = vdwg.mxu0
      %1684 = vmatpush.bf16.msra.mxu0 %v1406
      %1685 = vmatpush.bf16.msra.mxu0 %v1397
      %1686 = vmatpush.bf16.msra.mxu0 %v1388
      %1687 = vmatpush.bf16.msra.mxu0 %v1379
      %1688 = vmatpush.bf16.msra.mxu0 %v1370
      %1689 = vmatpush.bf16.msra.mxu0 %v1361
      %1690 = vmatpush.bf16.msra.mxu0 %v1352
      %1691 = vmatpush.bf16.msra.mxu0 %v1343
      %1692 = vmatmul.bf16.gmra.mxu0 %v1081
      %v1693 = vpop.f32.mrf.mxu0
      %v1694 = vadd.f32 %v1076, %v1693
      %v1695 = vpop.f32.mrf.mxu0
      %1696 = vdwg.mxu0
      %1697 = vmatpush.bf16.msra.mxu0 0
      %1698 = vmatpush.bf16.msra.mxu0 0
      %1699 = vmatpush.bf16.msra.mxu0 0
      %1700 = vmatpush.bf16.msra.mxu0 0
      %1701 = vmatpush.bf16.msra.mxu0 0
      %1702 = vmatpush.bf16.msra.mxu0 0
      %1703 = vmatpush.bf16.msra.mxu0 0
      %1704 = vmatpush.bf16.msra.mxu0 %v1415
      %1705 = vmatmul.bf16.gmra.mxu0 %v1500
      %v1706 = vpop.f32.mrf.mxu0
      %v1707 = vadd.f32 %v1694, %v1706
      %v1708 = vpop.f32.mrf.mxu0
      %1709 = vdwg.mxu0
      %1710 = vmatpush.bf16.msra.mxu0 %v1407
      %1711 = vmatpush.bf16.msra.mxu0 %v1398
      %1712 = vmatpush.bf16.msra.mxu0 %v1389
      %1713 = vmatpush.bf16.msra.mxu0 %v1380
      %1714 = vmatpush.bf16.msra.mxu0 %v1371
      %1715 = vmatpush.bf16.msra.mxu0 %v1362
      %1716 = vmatpush.bf16.msra.mxu0 %v1353
      %1717 = vmatpush.bf16.msra.mxu0 %v1344
      %1718 = vmatmul.bf16.gmra.mxu0 %v1081
      %v1719 = vpop.f32.mrf.mxu0
      %v1720 = vadd.f32 %v1076, %v1719
      %v1721 = vpop.f32.mrf.mxu0
      %1722 = vdwg.mxu0
      %1723 = vmatpush.bf16.msra.mxu0 0
      %1724 = vmatpush.bf16.msra.mxu0 0
      %1725 = vmatpush.bf16.msra.mxu0 0
      %1726 = vmatpush.bf16.msra.mxu0 0
      %1727 = vmatpush.bf16.msra.mxu0 0
      %1728 = vmatpush.bf16.msra.mxu0 0
      %1729 = vmatpush.bf16.msra.mxu0 0
      %1730 = vmatpush.bf16.msra.mxu0 %v1416
      %1731 = vmatmul.bf16.gmra.mxu0 %v1500
      %v1732 = vpop.f32.mrf.mxu0
      %v1733 = vadd.f32 %v1720, %v1732
      %v1734 = vpop.f32.mrf.mxu0
      %1735 = vdwg.mxu0
      %v1736 = vmax.f32 %v1525, 0.0
      %v1737 = vmax.f32 %v1551, 0.0
      %v1738 = vmax.f32 %v1577, 0.0
      %v1739 = vmax.f32 %v1603, 0.0
      %v1740 = vmax.f32 %v1629, 0.0
      %v1741 = vmax.f32 %v1655, 0.0
      %v1742 = vmax.f32 %v1681, 0.0
      %v1743 = vmax.f32 %v1707, 0.0
      %v1744 = vmax.f32 %v1733, 0.0
      %v1745 = vpack.c.bf16 %v1737, %v1736
      %v1746 = vpack.c.bf16 %v1739, %v1738
      %v1747 = vpack.c.bf16 %v1741, %v1740
      %v1748 = vpack.c.bf16 %v1743, %v1742
      %v1749 = vpack.c.bf16 %v1744, %v1744
      %1750 = vst [vmem:[%s251] sm:$0xff] %v1745
      %1751 = vst [vmem:[%s251 + $0x8] sm:$0xff] %v1746
      %1752 = vst [vmem:[%s251 + $0x10] sm:$0xff] %v1747
      %1753 = vst [vmem:[%s251 + $0x18] sm:$0xff] %v1748
      %1754 = vst.msk [vmem:[%s251 + $0x20] sm:$0xf] %vm266, %v1749
      %v1755 = vlaneseq
      %v1756 = vand.u32 %v1755, 127
      %v1757 = vadd.s32 %v1756, 128
      %v1758 = vadd.s32 %v1756, 256
      %v1759 = vadd.s32 %v1756, 384
      %v1760 = vadd.s32 %v1756, 512
      %v1761 = vadd.s32 %v1756, 640
      %v1762 = vadd.s32 %v1756, 768
      %v1763 = vadd.s32 %v1756, 896
      %v1764 = vadd.s32 %v1756, 1024
      %vm1765 = vcmp.lt.s32.totalorder %v1756, 0
      %v1766 = vsub.s32 0, %v1756
      %v1767 = vsel %vm1765, %v1766, %v1756
      %v1768 = vand.u32 %v1767, 65535
      %v1769 = vshrl.u32 %v1767, 16
      %v1771 = vmul.u32 %v1768, 61681
      %v1772 = vmul.u32 %v1768, 61680
      %v1773 = vmul.u32 %v1769, 61681
      %v1774 = vmul.u32 %v1769, 61680
      %v1775 = vshll.u32 %v1772, 16
      %v1776 = vshrl.u32 %v1772, 16
      %v1777 = vshll.u32 %v1773, 16
      %v1778 = vshrl.u32 %v1773, 16
      %vm1779 = vc.u32 %v1771, %v1775
      %v1780 = vsel %vm1779, 1, 0
      %v1781 = vadd.s32 %v1771, %v1775
      %v1782 = vadd.s32 %v1774, %v1780
      %vm1783 = vc.u32 %v1781, %v1777
      %v1784 = vsel %vm1783, 1, 0
      %v1785 = vadd.s32 %v1781, %v1777
      %v1786 = vadd.s32 %v1782, %v1784
      %v1787 = vadd.s32 %v1786, %v1776
      %v1788 = vadd.s32 %v1787, %v1778
      %v1789 = vshrl.u32 %v1788, 5
      %v1790 = vmul.u32 %v1789, 34
      %v1791 = vsub.s32 %v1767, %v1790
      %v1792 = vsub.s32 0, %v1791
      %v1793 = vsel %vm1765, %v1792, %v1791
      %vm1794 = vcmp.lt.s32.totalorder %v1757, 0
      %v1795 = vsub.s32 0, %v1757
      %v1796 = vsel %vm1794, %v1795, %v1757
      %v1797 = vand.u32 %v1796, 65535
      %v1798 = vshrl.u32 %v1796, 16
      %v1800 = vmul.u32 %v1797, 61681
      %v1801 = vmul.u32 %v1797, 61680
      %v1802 = vmul.u32 %v1798, 61681
      %v1803 = vmul.u32 %v1798, 61680
      %v1804 = vshll.u32 %v1801, 16
      %v1805 = vshrl.u32 %v1801, 16
      %v1806 = vshll.u32 %v1802, 16
      %v1807 = vshrl.u32 %v1802, 16
      %vm1808 = vc.u32 %v1800, %v1804
      %v1809 = vsel %vm1808, 1, 0
      %v1810 = vadd.s32 %v1800, %v1804
      %v1811 = vadd.s32 %v1803, %v1809
      %vm1812 = vc.u32 %v1810, %v1806
      %v1813 = vsel %vm1812, 1, 0
      %v1814 = vadd.s32 %v1810, %v1806
      %v1815 = vadd.s32 %v1811, %v1813
      %v1816 = vadd.s32 %v1815, %v1805
      %v1817 = vadd.s32 %v1816, %v1807
      %v1818 = vshrl.u32 %v1817, 5
      %v1819 = vmul.u32 %v1818, 34
      %v1820 = vsub.s32 %v1796, %v1819
      %v1821 = vsub.s32 0, %v1820
      %v1822 = vsel %vm1794, %v1821, %v1820
      %vm1823 = vcmp.lt.s32.totalorder %v1758, 0
      %v1824 = vsub.s32 0, %v1758
      %v1825 = vsel %vm1823, %v1824, %v1758
      %v1826 = vand.u32 %v1825, 65535
      %v1827 = vshrl.u32 %v1825, 16
      %v1829 = vmul.u32 %v1826, 61681
      %v1830 = vmul.u32 %v1826, 61680
      %v1831 = vmul.u32 %v1827, 61681
      %v1832 = vmul.u32 %v1827, 61680
      %v1833 = vshll.u32 %v1830, 16
      %v1834 = vshrl.u32 %v1830, 16
      %v1835 = vshll.u32 %v1831, 16
      %v1836 = vshrl.u32 %v1831, 16
      %vm1837 = vc.u32 %v1829, %v1833
      %v1838 = vsel %vm1837, 1, 0
      %v1839 = vadd.s32 %v1829, %v1833
      %v1840 = vadd.s32 %v1832, %v1838
      %vm1841 = vc.u32 %v1839, %v1835
      %v1842 = vsel %vm1841, 1, 0
      %v1843 = vadd.s32 %v1839, %v1835
      %v1844 = vadd.s32 %v1840, %v1842
      %v1845 = vadd.s32 %v1844, %v1834
      %v1846 = vadd.s32 %v1845, %v1836
      %v1847 = vshrl.u32 %v1846, 5
      %v1848 = vmul.u32 %v1847, 34
      %v1849 = vsub.s32 %v1825, %v1848
      %v1850 = vsub.s32 0, %v1849
      %v1851 = vsel %vm1823, %v1850, %v1849
      %vm1852 = vcmp.lt.s32.totalorder %v1759, 0
      %v1853 = vsub.s32 0, %v1759
      %v1854 = vsel %vm1852, %v1853, %v1759
      %v1855 = vand.u32 %v1854, 65535
      %v1856 = vshrl.u32 %v1854, 16
      %v1858 = vmul.u32 %v1855, 61681
      %v1859 = vmul.u32 %v1855, 61680
      %v1860 = vmul.u32 %v1856, 61681
      %v1861 = vmul.u32 %v1856, 61680
      %v1862 = vshll.u32 %v1859, 16
      %v1863 = vshrl.u32 %v1859, 16
      %v1864 = vshll.u32 %v1860, 16
      %v1865 = vshrl.u32 %v1860, 16
      %vm1866 = vc.u32 %v1858, %v1862
      %v1867 = vsel %vm1866, 1, 0
      %v1868 = vadd.s32 %v1858, %v1862
      %v1869 = vadd.s32 %v1861, %v1867
      %vm1870 = vc.u32 %v1868, %v1864
      %v1871 = vsel %vm1870, 1, 0
      %v1872 = vadd.s32 %v1868, %v1864
      %v1873 = vadd.s32 %v1869, %v1871
      %v1874 = vadd.s32 %v1873, %v1863
      %v1875 = vadd.s32 %v1874, %v1865
      %v1876 = vshrl.u32 %v1875, 5
      %v1877 = vmul.u32 %v1876, 34
      %v1878 = vsub.s32 %v1854, %v1877
      %v1879 = vsub.s32 0, %v1878
      %v1880 = vsel %vm1852, %v1879, %v1878
      %vm1881 = vcmp.lt.s32.totalorder %v1760, 0
      %v1882 = vsub.s32 0, %v1760
      %v1883 = vsel %vm1881, %v1882, %v1760
      %v1884 = vand.u32 %v1883, 65535
      %v1885 = vshrl.u32 %v1883, 16
      %v1887 = vmul.u32 %v1884, 61681
      %v1888 = vmul.u32 %v1884, 61680
      %v1889 = vmul.u32 %v1885, 61681
      %v1890 = vmul.u32 %v1885, 61680
      %v1891 = vshll.u32 %v1888, 16
      %v1892 = vshrl.u32 %v1888, 16
      %v1893 = vshll.u32 %v1889, 16
      %v1894 = vshrl.u32 %v1889, 16
      %vm1895 = vc.u32 %v1887, %v1891
      %v1896 = vsel %vm1895, 1, 0
      %v1897 = vadd.s32 %v1887, %v1891
      %v1898 = vadd.s32 %v1890, %v1896
      %vm1899 = vc.u32 %v1897, %v1893
      %v1900 = vsel %vm1899, 1, 0
      %v1901 = vadd.s32 %v1897, %v1893
      %v1902 = vadd.s32 %v1898, %v1900
      %v1903 = vadd.s32 %v1902, %v1892
      %v1904 = vadd.s32 %v1903, %v1894
      %v1905 = vshrl.u32 %v1904, 5
      %v1906 = vmul.u32 %v1905, 34
      %v1907 = vsub.s32 %v1883, %v1906
      %v1908 = vsub.s32 0, %v1907
      %v1909 = vsel %vm1881, %v1908, %v1907
      %vm1910 = vcmp.lt.s32.totalorder %v1761, 0
      %v1911 = vsub.s32 0, %v1761
      %v1912 = vsel %vm1910, %v1911, %v1761
      %v1913 = vand.u32 %v1912, 65535
      %v1914 = vshrl.u32 %v1912, 16
      %v1916 = vmul.u32 %v1913, 61681
      %v1917 = vmul.u32 %v1913, 61680
      %v1918 = vmul.u32 %v1914, 61681
      %v1919 = vmul.u32 %v1914, 61680
      %v1920 = vshll.u32 %v1917, 16
      %v1921 = vshrl.u32 %v1917, 16
      %v1922 = vshll.u32 %v1918, 16
      %v1923 = vshrl.u32 %v1918, 16
      %vm1924 = vc.u32 %v1916, %v1920
      %v1925 = vsel %vm1924, 1, 0
      %v1926 = vadd.s32 %v1916, %v1920
      %v1927 = vadd.s32 %v1919, %v1925
      %vm1928 = vc.u32 %v1926, %v1922
      %v1929 = vsel %vm1928, 1, 0
      %v1930 = vadd.s32 %v1926, %v1922
      %v1931 = vadd.s32 %v1927, %v1929
      %v1932 = vadd.s32 %v1931, %v1921
      %v1933 = vadd.s32 %v1932, %v1923
      %v1934 = vshrl.u32 %v1933, 5
      %v1935 = vmul.u32 %v1934, 34
      %v1936 = vsub.s32 %v1912, %v1935
      %v1937 = vsub.s32 0, %v1936
      %v1938 = vsel %vm1910, %v1937, %v1936
      %vm1939 = vcmp.lt.s32.totalorder %v1762, 0
      %v1940 = vsub.s32 0, %v1762
      %v1941 = vsel %vm1939, %v1940, %v1762
      %v1942 = vand.u32 %v1941, 65535
      %v1943 = vshrl.u32 %v1941, 16
      %v1945 = vmul.u32 %v1942, 61681
      %v1946 = vmul.u32 %v1942, 61680
      %v1947 = vmul.u32 %v1943, 61681
      %v1948 = vmul.u32 %v1943, 61680
      %v1949 = vshll.u32 %v1946, 16
      %v1950 = vshrl.u32 %v1946, 16
      %v1951 = vshll.u32 %v1947, 16
      %v1952 = vshrl.u32 %v1947, 16
      %vm1953 = vc.u32 %v1945, %v1949
      %v1954 = vsel %vm1953, 1, 0
      %v1955 = vadd.s32 %v1945, %v1949
      %v1956 = vadd.s32 %v1948, %v1954
      %vm1957 = vc.u32 %v1955, %v1951
      %v1958 = vsel %vm1957, 1, 0
      %v1959 = vadd.s32 %v1955, %v1951
      %v1960 = vadd.s32 %v1956, %v1958
      %v1961 = vadd.s32 %v1960, %v1950
      %v1962 = vadd.s32 %v1961, %v1952
      %v1963 = vshrl.u32 %v1962, 5
      %v1964 = vmul.u32 %v1963, 34
      %v1965 = vsub.s32 %v1941, %v1964
      %v1966 = vsub.s32 0, %v1965
      %v1967 = vsel %vm1939, %v1966, %v1965
      %vm1968 = vcmp.lt.s32.totalorder %v1763, 0
      %v1969 = vsub.s32 0, %v1763
      %v1970 = vsel %vm1968, %v1969, %v1763
      %v1971 = vand.u32 %v1970, 65535
      %v1972 = vshrl.u32 %v1970, 16
      %v1974 = vmul.u32 %v1971, 61681
      %v1975 = vmul.u32 %v1971, 61680
      %v1976 = vmul.u32 %v1972, 61681
      %v1977 = vmul.u32 %v1972, 61680
      %v1978 = vshll.u32 %v1975, 16
      %v1979 = vshrl.u32 %v1975, 16
      %v1980 = vshll.u32 %v1976, 16
      %v1981 = vshrl.u32 %v1976, 16
      %vm1982 = vc.u32 %v1974, %v1978
      %v1983 = vsel %vm1982, 1, 0
      %v1984 = vadd.s32 %v1974, %v1978
      %v1985 = vadd.s32 %v1977, %v1983
      %vm1986 = vc.u32 %v1984, %v1980
      %v1987 = vsel %vm1986, 1, 0
      %v1988 = vadd.s32 %v1984, %v1980
      %v1989 = vadd.s32 %v1985, %v1987
      %v1990 = vadd.s32 %v1989, %v1979
      %v1991 = vadd.s32 %v1990, %v1981
      %v1992 = vshrl.u32 %v1991, 5
      %v1993 = vmul.u32 %v1992, 34
      %v1994 = vsub.s32 %v1970, %v1993
      %v1995 = vsub.s32 0, %v1994
      %v1996 = vsel %vm1968, %v1995, %v1994
      %vm1997 = vcmp.lt.s32.totalorder %v1764, 0
      %v1998 = vsub.s32 0, %v1764
      %v1999 = vsel %vm1997, %v1998, %v1764
      %v2000 = vand.u32 %v1999, 65535
      %v2001 = vshrl.u32 %v1999, 16
      %v2003 = vmul.u32 %v2000, 61681
      %v2004 = vmul.u32 %v2000, 61680
      %v2005 = vmul.u32 %v2001, 61681
      %v2006 = vmul.u32 %v2001, 61680
      %v2007 = vshll.u32 %v2004, 16
      %v2008 = vshrl.u32 %v2004, 16
      %v2009 = vshll.u32 %v2005, 16
      %v2010 = vshrl.u32 %v2005, 16
      %vm2011 = vc.u32 %v2003, %v2007
      %v2012 = vsel %vm2011, 1, 0
      %v2013 = vadd.s32 %v2003, %v2007
      %v2014 = vadd.s32 %v2006, %v2012
      %vm2015 = vc.u32 %v2013, %v2009
      %v2016 = vsel %vm2015, 1, 0
      %v2017 = vadd.s32 %v2013, %v2009
      %v2018 = vadd.s32 %v2014, %v2016
      %v2019 = vadd.s32 %v2018, %v2008
      %v2020 = vadd.s32 %v2019, %v2010
      %v2021 = vshrl.u32 %v2020, 5
      %v2022 = vmul.u32 %v2021, 34
      %v2023 = vsub.s32 %v1999, %v2022
      %v2024 = vsub.s32 0, %v2023
      %v2025 = vsel %vm1997, %v2024, %v2023
      %vm2026 = vcmp.ne.s32.totalorder %v1793, 0
      %vm2027 = vcmp.ne.s32.totalorder %v1822, 0
      %vm2028 = vcmp.ne.s32.totalorder %v1851, 0
      %vm2029 = vcmp.ne.s32.totalorder %v1880, 0
      %vm2030 = vcmp.ne.s32.totalorder %v1909, 0
      %vm2031 = vcmp.ne.s32.totalorder %v1938, 0
      %vm2032 = vcmp.ne.s32.totalorder %v1967, 0
      %vm2033 = vcmp.ne.s32.totalorder %v1996, 0
      %vm2034 = vcmp.ne.s32.totalorder %v2025, 0
      %vm2035 = vcmp.lt.s32.totalorder %v1793, 0
      %vm2036 = vcmp.lt.s32.totalorder %v1822, 0
      %vm2037 = vcmp.lt.s32.totalorder %v1851, 0
      %vm2038 = vcmp.lt.s32.totalorder %v1880, 0
      %vm2039 = vcmp.lt.s32.totalorder %v1909, 0
      %vm2040 = vcmp.lt.s32.totalorder %v1938, 0
      %vm2041 = vcmp.lt.s32.totalorder %v1967, 0
      %vm2042 = vcmp.lt.s32.totalorder %v1996, 0
      %vm2043 = vcmp.lt.s32.totalorder %v2025, 0
      %vm2044 = vmand %vm2035, %vm2026
      %vm2045 = vmand %vm2036, %vm2027
      %vm2046 = vmand %vm2037, %vm2028
      %vm2047 = vmand %vm2038, %vm2029
      %vm2048 = vmand %vm2039, %vm2030
      %vm2049 = vmand %vm2040, %vm2031
      %vm2050 = vmand %vm2041, %vm2032
      %vm2051 = vmand %vm2042, %vm2033
      %vm2052 = vmand %vm2043, %vm2034
      %v2053 = vadd.s32 %v1793, 34
      %v2054 = vadd.s32 %v1822, 34
      %v2055 = vadd.s32 %v1851, 34
      %v2056 = vadd.s32 %v1880, 34
      %v2057 = vadd.s32 %v1909, 34
      %v2058 = vadd.s32 %v1938, 34
      %v2059 = vadd.s32 %v1967, 34
      %v2060 = vadd.s32 %v1996, 34
      %v2061 = vadd.s32 %v2025, 34
      %v2062 = vsel %vm2044, %v2053, %v1793
      %v2063 = vsel %vm2045, %v2054, %v1822
      %v2064 = vsel %vm2046, %v2055, %v1851
      %v2065 = vsel %vm2047, %v2056, %v1880
      %v2066 = vsel %vm2048, %v2057, %v1909
      %v2067 = vsel %vm2049, %v2058, %v1938
      %v2068 = vsel %vm2050, %v2059, %v1967
      %v2069 = vsel %vm2051, %v2060, %v1996
      %v2070 = vsel %vm2052, %v2061, %v2025
      %vm2071 = vcmp.lt.s32.totalorder %v2062, 32
      %vm2072 = vcmp.lt.s32.totalorder %v2063, 32
      %vm2073 = vcmp.lt.s32.totalorder %v2064, 32
      %vm2074 = vcmp.lt.s32.totalorder %v2065, 32
      %vm2075 = vcmp.lt.s32.totalorder %v2066, 32
      %vm2076 = vcmp.lt.s32.totalorder %v2067, 32
      %vm2077 = vcmp.lt.s32.totalorder %v2068, 32
      %vm2078 = vcmp.lt.s32.totalorder %v2069, 32
      %vm2079 = vcmp.lt.s32.totalorder %v2070, 32
      %v2080 = vsel %vm2071, 1, 0
      %v2081 = vsel %vm2072, 1, 0
      %v2082 = vsel %vm2073, 1, 0
      %v2083 = vsel %vm2074, 1, 0
      %v2084 = vsel %vm2075, 1, 0
      %v2085 = vsel %vm2076, 1, 0
      %v2086 = vsel %vm2077, 1, 0
      %v2087 = vsel %vm2078, 1, 0
      %v2088 = vsel %vm2079, 1, 0
      %vm2089 = vcmp.eq.s32.totalorder %v2080, 1
      %vm2090 = vcmp.eq.s32.totalorder %v2081, 1
      %vm2091 = vcmp.eq.s32.totalorder %v2082, 1
      %vm2092 = vcmp.eq.s32.totalorder %v2083, 1
      %vm2093 = vcmp.eq.s32.totalorder %v2084, 1
      %vm2094 = vcmp.eq.s32.totalorder %v2085, 1
      %vm2095 = vcmp.eq.s32.totalorder %v2086, 1
      %vm2096 = vcmp.eq.s32.totalorder %v2087, 1
      %vm2097 = vcmp.eq.s32.totalorder %v2088, 1
      %v2098 = vsel %vm2089, %v1736, 0.0
      %v2099 = vsel %vm2090, %v1737, 0.0
      %v2100 = vsel %vm2091, %v1738, 0.0
      %v2101 = vsel %vm2092, %v1739, 0.0
      %v2102 = vsel %vm2093, %v1740, 0.0
      %v2103 = vsel %vm2094, %v1741, 0.0
      %v2104 = vsel %vm2095, %v1742, 0.0
      %v2105 = vsel %vm2096, %v1743, 0.0
      %v2106 = vsel %vm2097, %v1744, 0.0
      %v2107 = vadd.f32 %v2098, %v2099
      %v2108 = vadd.f32 %v2107, %v2100
      %v2109 = vadd.f32 %v2108, %v2101
      %v2110 = vadd.f32 %v2109, %v2102
      %v2111 = vadd.f32 %v2110, %v2103
      %v2112 = vadd.f32 %v2111, %v2104
      %v2113 = vadd.f32 %v2112, %v2105
      %vm2114 = vcmask 523264
      %v2115 = vsel %vm2114, %v2106, 0.0
      %v2116 = vadd.f32 %v2113, %v2115
      %2117 = vadd.xlane.f32.xlu0 %v2116
      %v2118 = vpop.xlane.xlu0 %2117
      %vm2119 = vcmask 7168
      %2120 = vst.msk [vmem:[%s255] sm:$0xff] %vm2119, %v2118
      %v2121 = vmul.f32 %v2098, %v2098
      %v2122 = vmul.f32 %v2099, %v2099
      %v2123 = vmul.f32 %v2100, %v2100
      %v2124 = vmul.f32 %v2101, %v2101
      %v2125 = vmul.f32 %v2102, %v2102
      %v2126 = vmul.f32 %v2103, %v2103
      %v2127 = vmul.f32 %v2104, %v2104
      %v2128 = vmul.f32 %v2105, %v2105
      %v2129 = vmul.f32 %v2106, %v2106
      %v2130 = vadd.f32 %v2121, %v2122
      %v2131 = vadd.f32 %v2130, %v2123
      %v2132 = vadd.f32 %v2131, %v2124
      %v2133 = vadd.f32 %v2132, %v2125
      %v2134 = vadd.f32 %v2133, %v2126
      %v2135 = vadd.f32 %v2134, %v2127
      %v2136 = vadd.f32 %v2135, %v2128
      %v2137 = vsel %vm2114, %v2129, 0.0
      %v2138 = vadd.f32 %v2136, %v2137
      %2139 = vadd.xlane.f32.xlu0 %v2138
      %v2140 = vpop.xlane.xlu0 %2139
      %vm2141 = vcmask 15368
      %2142 = vst.msk [vmem:[%s255] sm:$0xff] %vm2141, %v2140
      %p2143 = scmp.lt.s32.totalorder %s17, 1
      %s2144 = scalar_select %p2143, %s17, 1
      %s2145 = smul.addr %s2144, 9
      %s2146 = smul.addr %s2145, 4
      %s2147 = scalar_lea.vmem %s4, %s2146
      %p2148 = scmp.lt.s32.totalorder %s17, 1
      %s2149 = scalar_select %p2148, %s17, 1
      %s2150 = smul.addr %s2149, 8
      %s2151 = scalar_lea.vmem %s5, %s2150
      // Predicated region
      $region37: #{conv_up_block.5} parent=35 // pred_check
        %p2152 = pneg %p129
      $region38: #{conv_up_block.5} parent=35 // pred_check_branch
        %2154 = sbr.rel (%p2152) target = $region40
      $region39: #{conv_up_block.5} parent=35 // pred_region
        _
      $region40: #{conv_up_block.5} parent=35 // pred_fallthru
        _
      // Predicated region
      $region41: #{conv_up_block.5} parent=35 // pred_check
        %p2155 = pneg %p155
      $region42: #{conv_up_block.5} parent=35 // pred_check_branch
        %2157 = sbr.rel (%p2155) target = $region44
      $region43: #{conv_up_block.5} parent=35 // pred_region
        _
      $region44: #{conv_up_block.5} parent=35 // pred_fallthru
        _
    $region36: #{conv_up_block.5} parent=5 // pred_fallthru
      _
    %p2158 = scmp.le.s32.totalorder 2, %s12
    // Predicated region
    $region45: #{conv_up_block.5} parent=5 // pred_check
      %p2159 = pneg %p2158
    $region46: #{conv_up_block.5} parent=5 // pred_check_branch
      %2161 = sbr.rel (%p2159) target = $region48
    $region47: #{conv_up_block.5} parent=5 // pred_region
      %s2162 = ssub.s32 %s12, 2
      // Predicated region
      $region49: #{conv_up_block.5} parent=47 // pred_check
        %p2163 = pneg %p135
      $region50: #{conv_up_block.5} parent=47 // pred_check_branch
        %2165 = sbr.rel (%p2163) target = $region52
      $region51: #{conv_up_block.5} parent=47 // pred_region
        %p2166 = scmp.lt.s32.totalorder %s18, 1
        %s2167 = scalar_select %p2166, %s18, 1
        %s2168 = smul.addr %s2167, 9
        %s2169 = smul.addr %s2168, 4
        %s2170 = scalar_lea.vmem %s4, %s2169
      $region52: #{conv_up_block.5} parent=47 // pred_fallthru
        _
      // Predicated region
      $region53: #{conv_up_block.5} parent=47 // pred_check
        %p2171 = pneg %p161
      $region54: #{conv_up_block.5} parent=47 // pred_check_branch
        %2173 = sbr.rel (%p2171) target = $region56
      $region55: #{conv_up_block.5} parent=47 // pred_region
        %p2174 = scmp.lt.s32.totalorder %s18, 1
        %s2175 = scalar_select %p2174, %s18, 1
        %s2176 = smul.addr %s2175, 8
        %s2177 = scalar_lea.vmem %s5, %s2176
      $region56: #{conv_up_block.5} parent=47 // pred_fallthru
        _
    $region48: #{conv_up_block.5} parent=5 // pred_fallthru
      _
  $region6: #{conv_up_block.5} parent=0 // loop_footer
    %s16 = sadd.s32 1, %s12
  $region7: #{conv_up_block.5} parent=0 // loop_footer_branch
    %11 = sbr.rel target = $region3
  $region8: #{conv_up_block.5} parent=0 // loop_exit
    _

</llo_original>
